<compile_context>
chip_gen: v7x
topology: tpu7x:2x2x1
jax: 0.10.0
libtpu: 0.0.40
codegen_flags: <defaults>
</compile_context>

<pallas_src>
import jax
import jax.numpy as jnp
from jax.experimental import pallas as pl
from jax.experimental.pallas import tpu as pltpu


_ROW_TARGET = 512   # target number of point-rows fed to the MXU per grid step


# ----------------------------- Pallas kernels ------------------------------


def _pointmlp_kernel(x_ref, w1_ref, t1_ref, w2_ref, t2_ref, w3_ref, t3_ref,
                     o_ref):
    """Point MLP (3->64->128->1024) + running max over point tiles.

    x_ref : (1, TB, 3, TN)  tile: TB batch elements x TN points (NCW layout)
    w*    : (Cin, Cout)     bf16 conv1d(k=1) weights with BN scale folded in
    t*    : (1, Cout)       f32 folded bias/shift
    o_ref : (1, TB, 1024)   f32 running-max accumulator / pooled output
    """
    kn = pl.program_id(1)
    nn = pl.num_programs(1)
    _, tb, _, tn = x_ref.shape

    @pl.when(kn == 0)
    def _init():
        o_ref[0] = jnp.full(o_ref.shape[1:], -jnp.inf, o_ref.dtype)

    # (TB, 3, TN) -> (TB*TN, 3): tiny in-kernel transpose instead of a
    # wrapper-side HBM transpose; flattening fills the MXU M dimension.
    x = jnp.transpose(x_ref[0], (0, 2, 1)).reshape(tb * tn, 3)
    x = x.astype(jnp.bfloat16)

    h1 = jnp.maximum(
        jnp.dot(x, w1_ref[...], preferred_element_type=jnp.float32)
        + t1_ref[...], 0.0)                                        # (P, 64)
    h2 = jnp.maximum(
        jnp.dot(h1.astype(jnp.bfloat16), w2_ref[...],
                preferred_element_type=jnp.float32)
        + t2_ref[...], 0.0)                                        # (P, 128)
    z3 = (jnp.dot(h2.astype(jnp.bfloat16), w3_ref[...],
                  preferred_element_type=jnp.float32)
          + t3_ref[...])                                           # (P, 1024)

    tile_max = jnp.max(z3.reshape(tb, tn, -1), axis=1)             # (TB, 1024)
    o_ref[0] = jnp.maximum(o_ref[0], tile_max)

    @pl.when(kn == nn - 1)
    def _finalize():
        # ReLU moved after the max-pool: max(relu(z)) == relu(max(z)).
        o_ref[0] = jnp.maximum(o_ref[0], 0.0)


def _head_kernel(g_ref, w4_ref, t4_ref, w5_ref, t5_ref, w6_ref, b6_ref,
                 o_ref):
    """FC head 1024->512->256->9 (identity already folded into b6)."""
    g = g_ref[...].astype(jnp.bfloat16)                            # (B, 1024)
    f = jnp.maximum(
        jnp.dot(g, w4_ref[...], preferred_element_type=jnp.float32)
        + t4_ref[...], 0.0)                                        # (B, 512)
    f = jnp.maximum(
        jnp.dot(f.astype(jnp.bfloat16), w5_ref[...],
                preferred_element_type=jnp.float32)
        + t5_ref[...], 0.0)                                        # (B, 256)
    o_ref[...] = (
        jnp.dot(f, w6_ref[...], preferred_element_type=jnp.float32)
        + b6_ref[...])                                             # (B, 9)


# ------------------------------- wrapper ------------------------------------


def _fold_bn(w, b, gamma, beta, mean, var, eps=1e-5):
    """Fold y = BN(x @ w.T + b) into  x @ w_f + t_f  (eval-mode BN), in f32."""
    scale = gamma / jnp.sqrt(var + eps)                # (Cout,)
    w_f = w.T * scale[None, :]                         # (Cin, Cout)
    t_f = ((b - mean) * scale + beta)[None, :]         # (1, Cout)
    return w_f.astype(jnp.float32), t_f.astype(jnp.float32)


def _round_up(a, m):
    return ((a + m - 1) // m) * m


@jax.jit
def stn3d_forward(x_bcn, params):
    """x_bcn: (B, 3, N) float32 (PyTorch layout).  Returns (B, 3, 3)."""
    B, C, N = x_bcn.shape
    assert C == 3

    # ---- generation-aware tiling: TB*TN ~ _ROW_TARGET MXU rows per step ----
    if N <= _ROW_TARGET:
        tn = _round_up(N, 8)
    else:
        tn = _ROW_TARGET
    n_pad = _round_up(N, tn)
    tb = max(1, min(B, _ROW_TARGET // tn))
    b_pad = _round_up(B, tb)
    nb = b_pad // tb
    nn = n_pad // tn

    x = x_bcn.astype(jnp.float32)
    if b_pad != B or n_pad != N:
        # Edge replication keeps the per-batch max unchanged for padded points;
        # padded batch rows are discarded after the kernel.
        x = jnp.pad(x, ((0, b_pad - B), (0, 0), (0, n_pad - N)), mode="edge")
    x4 = x.reshape(nb, tb, 3, n_pad)           # leading-dim split only: no copy

    # Fold conv/fc biases and BN params in f32, then cast weights to bf16.
    w1, t1 = _fold_bn(params["w_c1"], params["b_c1"], *params["bn1"])
    w2, t2 = _fold_bn(params["w_c2"], params["b_c2"], *params["bn2"])
    w3, t3 = _fold_bn(params["w_c3"], params["b_c3"], *params["bn3"])
    w4, t4 = _fold_bn(params["w_f1"], params["b_f1"], *params["bn4"])
    w5, t5 = _fold_bn(params["w_f2"], params["b_f2"], *params["bn5"])
    w1, w2, w3 = (w.astype(jnp.bfloat16) for w in (w1, w2, w3))
    w4, w5 = (w.astype(jnp.bfloat16) for w in (w4, w5))
    w6 = params["w_f3"].T.astype(jnp.float32)                      # (256, 9)
    iden = jnp.array([1, 0, 0, 0, 1, 0, 0, 0, 1], dtype=jnp.float32)
    b6 = (params["b_f3"] + iden)[None, :].astype(jnp.float32)      # (1, 9)

    # ---- kernel 1: tiled point MLP + online max-pool over points ----
    const = lambda b, n: (0, 0)
    pooled = pl.pallas_call(
        _pointmlp_kernel,
        out_shape=jax.ShapeDtypeStruct((nb, tb, 1024), jnp.float32),
        grid=(nb, nn),
        in_specs=[
            pl.BlockSpec((1, tb, 3, tn), lambda b, n: (b, 0, 0, n)),
            pl.BlockSpec((3, 64), const),
            pl.BlockSpec((1, 64), const),
            pl.BlockSpec((64, 128), const),
            pl.BlockSpec((1, 128), const),
            pl.BlockSpec((128, 1024), const),
            pl.BlockSpec((1, 1024), const),
        ],
        out_specs=pl.BlockSpec((1, tb, 1024), lambda b, n: (b, 0, 0)),
        compiler_params=pltpu.CompilerParams(
            dimension_semantics=("parallel", "arbitrary"),
            vmem_limit_bytes=32 * 1024 * 1024),
    )(x4, w1, t1, w2, t2, w3, t3)
    pooled = pooled.reshape(b_pad, 1024)[:B]                       # (B, 1024)

    # ---- kernel 2: FC head over the whole (small) batch ----
    full2 = lambda: (0, 0)
    out9 = pl.pallas_call(
        _head_kernel,
        out_shape=jax.ShapeDtypeStruct((B, 9), jnp.float32),
        grid=(),
        in_specs=[
            pl.BlockSpec((B, 1024), full2),
            pl.BlockSpec((1024, 512), full2),
            pl.BlockSpec((1, 512), full2),
            pl.BlockSpec((512, 256), full2),
            pl.BlockSpec((1, 256), full2),
            pl.BlockSpec((256, 9), full2),
            pl.BlockSpec((1, 9), full2),
        ],
        out_specs=pl.BlockSpec((B, 9), full2),
    )(pooled, w4, t4, w5, t5, w6, b6)

    return out9.reshape(B, 3, 3)


# ------------------------- pure-JAX reference (check) ------------------------


def stn3d_reference(x_bcn, params, eps=1e-5):
    def bn(z, p):  # channel axis = 1
        gamma, beta, mean, var = p
        shp = (1, -1) + (1,) * (z.ndim - 2)
        return (z - mean.reshape(shp)) / jnp.sqrt(var.reshape(shp) + eps) \
            * gamma.reshape(shp) + beta.reshape(shp)

    x = x_bcn
    x = jax.nn.relu(bn(jnp.einsum("oc,bcn->bon", params["w_c1"], x)
                       + params["b_c1"][None, :, None], params["bn1"]))
    x = jax.nn.relu(bn(jnp.einsum("oc,bcn->bon", params["w_c2"], x)
                       + params["b_c2"][None, :, None], params["bn2"]))
    x = jax.nn.relu(bn(jnp.einsum("oc,bcn->bon", params["w_c3"], x)
                       + params["b_c3"][None, :, None], params["bn3"]))
    x = jnp.max(x, axis=2)                                        # (B, 1024)
    x = jax.nn.relu(bn(x @ params["w_f1"].T + params["b_f1"], params["bn4"]))
    x = jax.nn.relu(bn(x @ params["w_f2"].T + params["b_f2"], params["bn5"]))
    x = x @ params["w_f3"].T + params["b_f3"]
    iden = jnp.array([1, 0, 0, 0, 1, 0, 0, 0, 1], dtype=jnp.float32)
    return (x + iden[None, :]).reshape(-1, 3, 3)


# --------------------------------- main --------------------------------------


def _init_params(key):
    ks = jax.random.split(key, 32)
    i = iter(range(32))

    def w(shape, scale=0.1):
        return scale * jax.random.normal(ks[next(i)], shape, jnp.float32)

    def bn_params(c):
        gamma = 1.0 + 0.1 * jax.random.normal(ks[next(i)], (c,), jnp.float32)
        beta = 0.1 * jax.random.normal(ks[next(i)], (c,), jnp.float32)
        mean = 0.05 * jax.random.normal(ks[next(i)], (c,), jnp.float32)
        var = 1.0 + 0.1 * jnp.abs(jax.random.normal(ks[next(i)], (c,),
                                                    jnp.float32))
        return (gamma, beta, mean, var)

    return {
        "w_c1": w((64, 3)), "b_c1": w((64,)),
        "w_c2": w((128, 64)), "b_c2": w((128,)),
        "w_c3": w((1024, 128)), "b_c3": w((1024,)),
        "w_f1": w((512, 1024)), "b_f1": w((512,)),
        "w_f2": w((256, 512)), "b_f2": w((256,)),
        "w_f3": w((9, 256)), "b_f3": w((9,)),
        "bn1": bn_params(64), "bn2": bn_params(128), "bn3": bn_params(1024),
        "bn4": bn_params(512), "bn5": bn_params(256),
    }


if __name__ == "__main__":
    key = jax.random.PRNGKey(0)
    kx, kp = jax.random.split(key)

    B, N = 2, 16
    x = jax.random.normal(kx, (B, 3, N), jnp.float32)   # PyTorch layout (B,C,N)
    params = _init_params(kp)

    out = stn3d_forward(x, params)
    out = jax.block_until_ready(out)

    ref = stn3d_reference(x, params)
    assert out.shape == (B, 3, 3), out.shape
    # bf16 MXU operands (f32 accumulation) -> slightly looser tolerance.
    err = float(jnp.max(jnp.abs(out - ref)))
    assert jnp.allclose(out, ref, atol=3e-2, rtol=3e-2), err

    print("KERNEL_OK")
</pallas_src>

<mosaic_0001>
module attributes {stable_mosaic.version = 11 : i64} {
  func.func @_pointmlp_kernel(%arg0: i32, %arg1: i32, %arg2: memref<1x2x3x16xf32, #tpu.memory_space<vmem>>, %arg3: memref<3x64xbf16, #tpu.memory_space<vmem>>, %arg4: memref<1x64xf32, #tpu.memory_space<vmem>>, %arg5: memref<64x128xbf16, #tpu.memory_space<vmem>>, %arg6: memref<1x128xf32, #tpu.memory_space<vmem>>, %arg7: memref<128x1024xbf16, #tpu.memory_space<vmem>>, %arg8: memref<1x1024xf32, #tpu.memory_space<vmem>>, %arg9: memref<1x2x1024xf32, #tpu.memory_space<vmem>>) attributes {dimension_semantics = [#tpu.dimension_semantics<parallel>, #tpu.dimension_semantics<arbitrary>], iteration_bounds = array<i64: 1, 1>, scalar_prefetch = 0 : i64, scratch_operands = 0 : i64, tpu.core_type = #tpu.core_type<tc>, window_params = [{transform_indices = @transform_0, window_bounds = array<i64: 1, 2, 3, 16>}, {pipeline_mode = #tpu.pipeline_mode<synchronous>, transform_indices = @transform_1, window_bounds = array<i64: 3, 64>}, {pipeline_mode = #tpu.pipeline_mode<synchronous>, transform_indices = @transform_2, window_bounds = array<i64: 1, 64>}, {pipeline_mode = #tpu.pipeline_mode<synchronous>, transform_indices = @transform_3, window_bounds = array<i64: 64, 128>}, {pipeline_mode = #tpu.pipeline_mode<synchronous>, transform_indices = @transform_4, window_bounds = array<i64: 1, 128>}, {pipeline_mode = #tpu.pipeline_mode<synchronous>, transform_indices = @transform_5, window_bounds = array<i64: 128, 1024>}, {pipeline_mode = #tpu.pipeline_mode<synchronous>, transform_indices = @transform_6, window_bounds = array<i64: 1, 1024>}, {transform_indices = @transform_7, window_bounds = array<i64: 1, 2, 1024>}]} {
    %c0_i32 = arith.constant 0 : i32
    %0 = arith.cmpi eq, %arg1, %c0_i32 : i32
    %1 = arith.extui %0 : i1 to i32
    %c0_i32_0 = arith.constant 0 : i32
    %2 = arith.cmpi ne, %1, %c0_i32_0 : i32
    scf.if %2 {
      %cst_29 = arith.constant 0xFF800000 : f32
      %40 = vector.broadcast %cst_29 : f32 to vector<2x1024xf32>
      %c0_30 = arith.constant 0 : index
      %c0_31 = arith.constant 0 : index
      %c0_32 = arith.constant 0 : index
      %41 = vector.load %arg9[%c0_30, %c0_31, %c0_32] : memref<1x2x1024xf32, #tpu.memory_space<vmem>>, vector<1x2x1024xf32>
      %42 = vector.shape_cast %41 : vector<1x2x1024xf32> to vector<2x1024xf32>
      %43 = vector.shape_cast %40 : vector<2x1024xf32> to vector<1x2x1024xf32>
      tpu.vector_store %arg9[%c0_30, %c0_31, %c0_32], %43 {strides = array<i32>} : memref<1x2x1024xf32, #tpu.memory_space<vmem>>, vector<1x2x1024xf32>,
    } else {
    }
    %c0 = arith.constant 0 : index
    %c0_1 = arith.constant 0 : index
    %c0_2 = arith.constant 0 : index
    %c0_3 = arith.constant 0 : index
    %3 = vector.load %arg2[%c0, %c0_1, %c0_2, %c0_3] : memref<1x2x3x16xf32, #tpu.memory_space<vmem>>, vector<1x2x3x16xf32>
    %4 = vector.shape_cast %3 : vector<1x2x3x16xf32> to vector<2x3x16xf32>
    %5 = tpu.transpose %4, [0, 2, 1] : vector<2x3x16xf32> -> vector<2x16x3xf32>
    %6 = vector.shape_cast %5 : vector<2x16x3xf32> to vector<32x3xf32>
    %7 = arith.truncf %6 : vector<32x3xf32> to vector<32x3xbf16>
    %c0_4 = arith.constant 0 : index
    %c0_5 = arith.constant 0 : index
    %8 = vector.load %arg3[%c0_4, %c0_5] : memref<3x64xbf16, #tpu.memory_space<vmem>>, vector<3x64xbf16>
    %cst = arith.constant dense<0.000000e+00> : vector<32x64xf32>
    %9 = tpu.matmul %7, %8, %cst {dimension_numbers = #tpu.dot_dimension_numbers<[1], [0], [0], [1], [0, 0, 1, 1], [], []>} : vector<32x3xbf16>, vector<3x64xbf16>, vector<32x64xf32> -> vector<32x64xf32>
    %c0_6 = arith.constant 0 : index
    %c0_7 = arith.constant 0 : index
    %10 = vector.load %arg4[%c0_6, %c0_7] : memref<1x64xf32, #tpu.memory_space<vmem>>, vector<1x64xf32>
    %11 = vector.broadcast %10 : vector<1x64xf32> to vector<32x64xf32>
    %12 = arith.addf %9, %11 : vector<32x64xf32>
    %cst_8 = arith.constant 0.000000e+00 : f32
    %13 = vector.broadcast %cst_8 : f32 to vector<32x64xf32>
    %14 = arith.maximumf %12, %13 : vector<32x64xf32>
    %15 = arith.truncf %14 : vector<32x64xf32> to vector<32x64xbf16>
    %c0_9 = arith.constant 0 : index
    %c0_10 = arith.constant 0 : index
    %16 = vector.load %arg5[%c0_9, %c0_10] : memref<64x128xbf16, #tpu.memory_space<vmem>>, vector<64x128xbf16>
    %cst_11 = arith.constant dense<0.000000e+00> : vector<32x128xf32>
    %17 = tpu.matmul %15, %16, %cst_11 {dimension_numbers = #tpu.dot_dimension_numbers<[1], [0], [0], [1], [0, 0, 1, 1], [], []>} : vector<32x64xbf16>, vector<64x128xbf16>, vector<32x128xf32> -> vector<32x128xf32>
    %c0_12 = arith.constant 0 : index
    %c0_13 = arith.constant 0 : index
    %18 = vector.load %arg6[%c0_12, %c0_13] : memref<1x128xf32, #tpu.memory_space<vmem>>, vector<1x128xf32>
    %19 = vector.broadcast %18 : vector<1x128xf32> to vector<32x128xf32>
    %20 = arith.addf %17, %19 : vector<32x128xf32>
    %cst_14 = arith.constant 0.000000e+00 : f32
    %21 = vector.broadcast %cst_14 : f32 to vector<32x128xf32>
    %22 = arith.maximumf %20, %21 : vector<32x128xf32>
    %23 = arith.truncf %22 : vector<32x128xf32> to vector<32x128xbf16>
    %c0_15 = arith.constant 0 : index
    %c0_16 = arith.constant 0 : index
    %24 = vector.load %arg7[%c0_15, %c0_16] : memref<128x1024xbf16, #tpu.memory_space<vmem>>, vector<128x1024xbf16>
    %cst_17 = arith.constant dense<0.000000e+00> : vector<32x1024xf32>
    %25 = tpu.matmul %23, %24, %cst_17 {dimension_numbers = #tpu.dot_dimension_numbers<[1], [0], [0], [1], [0, 0, 1, 1], [], []>} : vector<32x128xbf16>, vector<128x1024xbf16>, vector<32x1024xf32> -> vector<32x1024xf32>
    %c0_18 = arith.constant 0 : index
    %c0_19 = arith.constant 0 : index
    %26 = vector.load %arg8[%c0_18, %c0_19] : memref<1x1024xf32, #tpu.memory_space<vmem>>, vector<1x1024xf32>
    %27 = vector.broadcast %26 : vector<1x1024xf32> to vector<32x1024xf32>
    %28 = arith.addf %25, %27 : vector<32x1024xf32>
    %29 = vector.shape_cast %28 : vector<32x1024xf32> to vector<2x16x1024xf32>
    %cst_20 = arith.constant dense<0xFF800000> : vector<2x1024xf32>
    %30 = vector.multi_reduction <maximumf>, %29, %cst_20 [1] : vector<2x16x1024xf32> to vector<2x1024xf32>
    %c0_21 = arith.constant 0 : index
    %c0_22 = arith.constant 0 : index
    %c0_23 = arith.constant 0 : index
    %31 = vector.load %arg9[%c0_21, %c0_22, %c0_23] : memref<1x2x1024xf32, #tpu.memory_space<vmem>>, vector<1x2x1024xf32>
    %32 = vector.shape_cast %31 : vector<1x2x1024xf32> to vector<2x1024xf32>
    %33 = arith.maximumf %32, %30 : vector<2x1024xf32>
    %c0_24 = arith.constant 0 : index
    %c0_25 = arith.constant 0 : index
    %c0_26 = arith.constant 0 : index
    %34 = vector.load %arg9[%c0_24, %c0_25, %c0_26] : memref<1x2x1024xf32, #tpu.memory_space<vmem>>, vector<1x2x1024xf32>
    %35 = vector.shape_cast %34 : vector<1x2x1024xf32> to vector<2x1024xf32>
    %36 = vector.shape_cast %33 : vector<2x1024xf32> to vector<1x2x1024xf32>
    tpu.vector_store %arg9[%c0_24, %c0_25, %c0_26], %36 {strides = array<i32>} : memref<1x2x1024xf32, #tpu.memory_space<vmem>>, vector<1x2x1024xf32>,
    %c0_i32_27 = arith.constant 0 : i32
    %37 = arith.cmpi eq, %arg1, %c0_i32_27 : i32
    %38 = arith.extui %37 : i1 to i32
    %c0_i32_28 = arith.constant 0 : i32
    %39 = arith.cmpi ne, %38, %c0_i32_28 : i32
    scf.if %39 {
      %c0_29 = arith.constant 0 : index
      %c0_30 = arith.constant 0 : index
      %c0_31 = arith.constant 0 : index
      %40 = vector.load %arg9[%c0_29, %c0_30, %c0_31] : memref<1x2x1024xf32, #tpu.memory_space<vmem>>, vector<1x2x1024xf32>
      %41 = vector.shape_cast %40 : vector<1x2x1024xf32> to vector<2x1024xf32>
      %cst_32 = arith.constant 0.000000e+00 : f32
      %42 = vector.broadcast %cst_32 : f32 to vector<2x1024xf32>
      %43 = arith.maximumf %41, %42 : vector<2x1024xf32>
      %c0_33 = arith.constant 0 : index
      %c0_34 = arith.constant 0 : index
      %c0_35 = arith.constant 0 : index
      %44 = vector.load %arg9[%c0_33, %c0_34, %c0_35] : memref<1x2x1024xf32, #tpu.memory_space<vmem>>, vector<1x2x1024xf32>
      %45 = vector.shape_cast %44 : vector<1x2x1024xf32> to vector<2x1024xf32>
      %46 = vector.shape_cast %43 : vector<2x1024xf32> to vector<1x2x1024xf32>
      tpu.vector_store %arg9[%c0_33, %c0_34, %c0_35], %46 {strides = array<i32>} : memref<1x2x1024xf32, #tpu.memory_space<vmem>>, vector<1x2x1024xf32>,
    } else {
    }
    return
  }
  func.func @transform_0(%arg0: i32, %arg1: i32) -> (i32, i32, i32, i32) {
    %c0_i32 = arith.constant 0 : i32
    %c0_i32_0 = arith.constant 0 : i32
    %c0_i32_1 = arith.constant 0 : i32
    return %arg0, %c0_i32, %c0_i32_0, %arg1 : i32, i32, i32, i32
  }
  func.func @transform_1(%arg0: i32, %arg1: i32) -> (i32, i32) {
    %c0_i32 = arith.constant 0 : i32
    %c0_i32_0 = arith.constant 0 : i32
    %c0_i32_1 = arith.constant 0 : i32
    return %c0_i32, %c0_i32_0 : i32, i32
  }
  func.func @transform_2(%arg0: i32, %arg1: i32) -> (i32, i32) {
    %c0_i32 = arith.constant 0 : i32
    %c0_i32_0 = arith.constant 0 : i32
    %c0_i32_1 = arith.constant 0 : i32
    return %c0_i32, %c0_i32_0 : i32, i32
  }
  func.func @transform_3(%arg0: i32, %arg1: i32) -> (i32, i32) {
    %c0_i32 = arith.constant 0 : i32
    %c0_i32_0 = arith.constant 0 : i32
    %c0_i32_1 = arith.constant 0 : i32
    return %c0_i32, %c0_i32_0 : i32, i32
  }
  func.func @transform_4(%arg0: i32, %arg1: i32) -> (i32, i32) {
    %c0_i32 = arith.constant 0 : i32
    %c0_i32_0 = arith.constant 0 : i32
    %c0_i32_1 = arith.constant 0 : i32
    return %c0_i32, %c0_i32_0 : i32, i32
  }
  func.func @transform_5(%arg0: i32, %arg1: i32) -> (i32, i32) {
    %c0_i32 = arith.constant 0 : i32
    %c0_i32_0 = arith.constant 0 : i32
    %c0_i32_1 = arith.constant 0 : i32
    return %c0_i32, %c0_i32_0 : i32, i32
  }
  func.func @transform_6(%arg0: i32, %arg1: i32) -> (i32, i32) {
    %c0_i32 = arith.constant 0 : i32
    %c0_i32_0 = arith.constant 0 : i32
    %c0_i32_1 = arith.constant 0 : i32
    return %c0_i32, %c0_i32_0 : i32, i32
  }
  func.func @transform_7(%arg0: i32, %arg1: i32) -> (i32, i32, i32) {
    %c0_i32 = arith.constant 0 : i32
    %c0_i32_0 = arith.constant 0 : i32
    %c0_i32_1 = arith.constant 0 : i32
    return %arg0, %c0_i32, %c0_i32_0 : i32, i32, i32
  }
}

module attributes {stable_mosaic.version = 11 : i64} {
  func.func @_head_kernel(%arg0: memref<2x1024xf32, #tpu.memory_space<vmem>>, %arg1: memref<1024x512xbf16, #tpu.memory_space<vmem>>, %arg2: memref<1x512xf32, #tpu.memory_space<vmem>>, %arg3: memref<512x256xbf16, #tpu.memory_space<vmem>>, %arg4: memref<1x256xf32, #tpu.memory_space<vmem>>, %arg5: memref<256x9xf32, #tpu.memory_space<vmem>>, %arg6: memref<1x9xf32, #tpu.memory_space<vmem>>, %arg7: memref<2x9xf32, #tpu.memory_space<vmem>>) attributes {dimension_semantics = [], scalar_prefetch = 0 : i64, scratch_operands = 0 : i64, tpu.core_type = #tpu.core_type<tc>} {
    %c0 = arith.constant 0 : index
    %c0_0 = arith.constant 0 : index
    %0 = vector.load %arg0[%c0, %c0_0] : memref<2x1024xf32, #tpu.memory_space<vmem>>, vector<2x1024xf32>
    %1 = arith.truncf %0 : vector<2x1024xf32> to vector<2x1024xbf16>
    %c0_1 = arith.constant 0 : index
    %c0_2 = arith.constant 0 : index
    %2 = vector.load %arg1[%c0_1, %c0_2] : memref<1024x512xbf16, #tpu.memory_space<vmem>>, vector<1024x512xbf16>
    %cst = arith.constant dense<0.000000e+00> : vector<2x512xf32>
    %3 = tpu.matmul %1, %2, %cst {dimension_numbers = #tpu.dot_dimension_numbers<[1], [0], [0], [1], [0, 0, 1, 1], [], []>} : vector<2x1024xbf16>, vector<1024x512xbf16>, vector<2x512xf32> -> vector<2x512xf32>
    %c0_3 = arith.constant 0 : index
    %c0_4 = arith.constant 0 : index
    %4 = vector.load %arg2[%c0_3, %c0_4] : memref<1x512xf32, #tpu.memory_space<vmem>>, vector<1x512xf32>
    %5 = vector.broadcast %4 : vector<1x512xf32> to vector<2x512xf32>
    %6 = arith.addf %3, %5 : vector<2x512xf32>
    %cst_5 = arith.constant 0.000000e+00 : f32
    %7 = vector.broadcast %cst_5 : f32 to vector<2x512xf32>
    %8 = arith.maximumf %6, %7 : vector<2x512xf32>
    %9 = arith.truncf %8 : vector<2x512xf32> to vector<2x512xbf16>
    %c0_6 = arith.constant 0 : index
    %c0_7 = arith.constant 0 : index
    %10 = vector.load %arg3[%c0_6, %c0_7] : memref<512x256xbf16, #tpu.memory_space<vmem>>, vector<512x256xbf16>
    %cst_8 = arith.constant dense<0.000000e+00> : vector<2x256xf32>
    %11 = tpu.matmul %9, %10, %cst_8 {dimension_numbers = #tpu.dot_dimension_numbers<[1], [0], [0], [1], [0, 0, 1, 1], [], []>} : vector<2x512xbf16>, vector<512x256xbf16>, vector<2x256xf32> -> vector<2x256xf32>
    %c0_9 = arith.constant 0 : index
    %c0_10 = arith.constant 0 : index
    %12 = vector.load %arg4[%c0_9, %c0_10] : memref<1x256xf32, #tpu.memory_space<vmem>>, vector<1x256xf32>
    %13 = vector.broadcast %12 : vector<1x256xf32> to vector<2x256xf32>
    %14 = arith.addf %11, %13 : vector<2x256xf32>
    %cst_11 = arith.constant 0.000000e+00 : f32
    %15 = vector.broadcast %cst_11 : f32 to vector<2x256xf32>
    %16 = arith.maximumf %14, %15 : vector<2x256xf32>
    %c0_12 = arith.constant 0 : index
    %c0_13 = arith.constant 0 : index
    %17 = vector.load %arg5[%c0_12, %c0_13] : memref<256x9xf32, #tpu.memory_space<vmem>>, vector<256x9xf32>
    %cst_14 = arith.constant dense<0.000000e+00> : vector<2x9xf32>
    %18 = tpu.matmul %16, %17, %cst_14 {dimension_numbers = #tpu.dot_dimension_numbers<[1], [0], [0], [1], [0, 0, 1, 1], [], []>} : vector<2x256xf32>, vector<256x9xf32>, vector<2x9xf32> -> vector<2x9xf32>
    %c0_15 = arith.constant 0 : index
    %c0_16 = arith.constant 0 : index
    %19 = vector.load %arg6[%c0_15, %c0_16] : memref<1x9xf32, #tpu.memory_space<vmem>>, vector<1x9xf32>
    %20 = vector.broadcast %19 : vector<1x9xf32> to vector<2x9xf32>
    %21 = arith.addf %18, %20 : vector<2x9xf32>
    %c0_17 = arith.constant 0 : index
    %c0_18 = arith.constant 0 : index
    %22 = vector.load %arg7[%c0_17, %c0_18] : memref<2x9xf32, #tpu.memory_space<vmem>>, vector<2x9xf32>
    tpu.vector_store %arg7[%c0_17, %c0_18], %21 {strides = array<i32>} : memref<2x9xf32, #tpu.memory_space<vmem>>, vector<2x9xf32>,
    return
  }
}

</mosaic_0001>

<llo_original>
// kernel: stn3d_forward.2
$region0: #{stn3d_forward.2}
  #allocation0 [shape = 'u32[]', space=smem, size = 0x4, offset = 0x4, fixed_abs, tag = 'smem constant byte address 0x4 - core index']
  #allocation1 [shape = 'u32[144,128]{1,0:T(1,128)}', space=vmem, size = 0x12000, scoped, tag = 'internal scratch']
  %s0 = inlined_call_operand.vmem [shape: f32[1,2,3,16], index: 0, kind: input, shape index: {}]
  %s1 = inlined_call_operand.vmem [shape: bf16[3,64], index: 1, kind: input, shape index: {}]
  %s2 = inlined_call_operand.vmem [shape: f32[1,64], index: 2, kind: input, shape index: {}]
  %s3 = inlined_call_operand.vmem [shape: bf16[64,128], index: 3, kind: input, shape index: {}]
  %s4 = inlined_call_operand.vmem [shape: f32[1,128], index: 4, kind: input, shape index: {}]
  %s5 = inlined_call_operand.vmem [shape: bf16[128,1024], index: 5, kind: input, shape index: {}]
  %s6 = inlined_call_operand.vmem [shape: f32[1,1024], index: 6, kind: input, shape index: {}]
  %s7 = inlined_call_operand.vmem [shape: f32[1,2,1024], index: 7, kind: output, shape index: {}]
  %s8 = sld [smem:[#allocation0]]
  $region46: #{stn3d_forward.2} parent=0
    _
  %s10 = ssub.s32 1, %s8
  %s11 = scalar_select 0, %s10, %s8
  // Predicated region
  $region2: #{stn3d_forward.2} parent=0 // pred_check
    _
  $region3: #{stn3d_forward.2} parent=0 // pred_check_branch
    %13 = sbr.rel (0) target = $region5
  $region4: #{stn3d_forward.2} parent=0 // pred_region
    _
  $region5: #{stn3d_forward.2} parent=0 // pred_fallthru
    _
  // Predicated region
  $region6: #{stn3d_forward.2} parent=0 // pred_check
    _
  $region7: #{stn3d_forward.2} parent=0 // pred_check_branch
    %15 = sbr.rel (0) target = $region9
  $region8: #{stn3d_forward.2} parent=0 // pred_region
    _
  $region9: #{stn3d_forward.2} parent=0 // pred_fallthru
    _
  // Predicated region
  $region10: #{stn3d_forward.2} parent=0 // pred_check
    _
  $region11: #{stn3d_forward.2} parent=0 // pred_check_branch
    %17 = sbr.rel (0) target = $region13
  $region12: #{stn3d_forward.2} parent=0 // pred_region
    _
  $region13: #{stn3d_forward.2} parent=0 // pred_fallthru
    _
  // Predicated region
  $region14: #{stn3d_forward.2} parent=0 // pred_check
    _
  $region15: #{stn3d_forward.2} parent=0 // pred_check_branch
    %19 = sbr.rel (0) target = $region17
  $region16: #{stn3d_forward.2} parent=0 // pred_region
    _
  $region17: #{stn3d_forward.2} parent=0 // pred_fallthru
    _
  // Predicated region
  $region18: #{stn3d_forward.2} parent=0 // pred_check
    _
  $region19: #{stn3d_forward.2} parent=0 // pred_check_branch
    %21 = sbr.rel (0) target = $region21
  $region20: #{stn3d_forward.2} parent=0 // pred_region
    _
  $region21: #{stn3d_forward.2} parent=0 // pred_fallthru
    _
  // Predicated region
  $region22: #{stn3d_forward.2} parent=0 // pred_check
    _
  $region23: #{stn3d_forward.2} parent=0 // pred_check_branch
    %23 = sbr.rel (0) target = $region25
  $region24: #{stn3d_forward.2} parent=0 // pred_region
    _
  $region25: #{stn3d_forward.2} parent=0 // pred_fallthru
    _
  // Predicated region
  $region26: #{stn3d_forward.2} parent=0 // pred_check
    _
  $region27: #{stn3d_forward.2} parent=0 // pred_check_branch
    %25 = sbr.rel (0) target = $region29
  $region28: #{stn3d_forward.2} parent=0 // pred_region
    _
  $region29: #{stn3d_forward.2} parent=0 // pred_fallthru
    _
  %p27 = scmp.eq.s32.totalorder 0, 0
  // Predicated region
  $region30: #{stn3d_forward.2} parent=0 // pred_check
    %p28 = pneg %p27
  $region31: #{stn3d_forward.2} parent=0 // pred_check_branch
    %30 = sbr.rel (%p28) target = $region33
  $region32: #{stn3d_forward.2} parent=0 // pred_region
    %31 = vst [vmem:[%s7] sm:$0xff] -inf
    %32 = vst [vmem:[%s7 + $0x8] sm:$0xff] -inf
  $region33: #{stn3d_forward.2} parent=0 // pred_fallthru
    _
  %v33 = vld [vmem:[%s0] sm:$0x7]
  %v34 = vld [vmem:[%s0 + $0x4] sm:$0x7]
  %35 = vxpose.xlu0.b32.start [1/16] %v33, 128
  %36 = vxpose.xlu0.b32.cont [2/16] 0.0, 128
  %37 = vxpose.xlu0.b32.cont [3/16] 0.0, 128
  %38 = vxpose.xlu0.b32.cont [4/16] 0.0, 128
  %39 = vxpose.xlu0.b32.cont [5/16] 0.0, 128
  %40 = vxpose.xlu0.b32.cont [6/16] 0.0, 128
  %41 = vxpose.xlu0.b32.cont [7/16] 0.0, 128
  %42 = vxpose.xlu0.b32.cont [8/16] 0.0, 128
  %43 = vxpose.xlu0.b32.cont [9/16] 0.0, 128
  %44 = vxpose.xlu0.b32.cont [10/16] 0.0, 128
  %45 = vxpose.xlu0.b32.cont [11/16] 0.0, 128
  %46 = vxpose.xlu0.b32.cont [12/16] 0.0, 128
  %47 = vxpose.xlu0.b32.cont [13/16] 0.0, 128
  %48 = vxpose.xlu0.b32.cont [14/16] 0.0, 128
  %49 = vxpose.xlu0.b32.cont [15/16] 0.0, 128
  %50 = vxpose.xlu0.b32.end [16/16] 0.0, 128
  %v51 = vpop.trf.xlu0
  %v52 = vpop.trf.xlu0
  %v53 = vpop.trf.xlu0
  %v54 = vpop.trf.xlu0
  %v55 = vpop.trf.xlu0
  %v56 = vpop.trf.xlu0
  %v57 = vpop.trf.xlu0
  %v58 = vpop.trf.xlu0
  %v59 = vpop.trf.xlu0
  %v60 = vpop.trf.xlu0
  %v61 = vpop.trf.xlu0
  %v62 = vpop.trf.xlu0
  %v63 = vpop.trf.xlu0
  %v64 = vpop.trf.xlu0
  %v65 = vpop.trf.xlu0
  %v66 = vpop.trf.xlu0
  %67 = vxpose.xlu0.b32.start [1/16] %v34, 128
  %68 = vxpose.xlu0.b32.cont [2/16] 0.0, 128
  %69 = vxpose.xlu0.b32.cont [3/16] 0.0, 128
  %70 = vxpose.xlu0.b32.cont [4/16] 0.0, 128
  %71 = vxpose.xlu0.b32.cont [5/16] 0.0, 128
  %72 = vxpose.xlu0.b32.cont [6/16] 0.0, 128
  %73 = vxpose.xlu0.b32.cont [7/16] 0.0, 128
  %74 = vxpose.xlu0.b32.cont [8/16] 0.0, 128
  %75 = vxpose.xlu0.b32.cont [9/16] 0.0, 128
  %76 = vxpose.xlu0.b32.cont [10/16] 0.0, 128
  %77 = vxpose.xlu0.b32.cont [11/16] 0.0, 128
  %78 = vxpose.xlu0.b32.cont [12/16] 0.0, 128
  %79 = vxpose.xlu0.b32.cont [13/16] 0.0, 128
  %80 = vxpose.xlu0.b32.cont [14/16] 0.0, 128
  %81 = vxpose.xlu0.b32.cont [15/16] 0.0, 128
  %82 = vxpose.xlu0.b32.end [16/16] 0.0, 128
  %v83 = vpop.trf.xlu0
  %v84 = vpop.trf.xlu0
  %v85 = vpop.trf.xlu0
  %v86 = vpop.trf.xlu0
  %v87 = vpop.trf.xlu0
  %v88 = vpop.trf.xlu0
  %v89 = vpop.trf.xlu0
  %v90 = vpop.trf.xlu0
  %v91 = vpop.trf.xlu0
  %v92 = vpop.trf.xlu0
  %v93 = vpop.trf.xlu0
  %v94 = vpop.trf.xlu0
  %v95 = vpop.trf.xlu0
  %v96 = vpop.trf.xlu0
  %v97 = vpop.trf.xlu0
  %v98 = vpop.trf.xlu0
  %v99 = vpack.c.bf16 %v52, %v51
  %v100 = vpack.c.bf16 %v84, %v83
  %v101 = vld [vmem:[%s1] sm:$0x3]
  %v102 = vld [vmem:[%s2] sm:$0x1]
  %v104 = vlaneseq
  %v105 = vshrl.u32 %v104, 7
  %v106 = vsub.s32 0, %v105
  %v107 = vrot.slane %v102, %v106
  %vm109 = vcmask 23552
  %v111 = vsel %vm109, %v99, 0
  %v114 = vsel %vm109, %v100, 0
  %vm116 = vcmask 1040384
  %vm117 = vcmask 1041408
  %v118 = vsel %vm116, 4294967295, 65535
  %v119 = vsel %vm117, %v118, 0
  %v121 = vand.u32 %v101, %v119
  %123 = vmatprep.subr.bf16.mxu0 0
  %124 = vmatpush1.bf16.msra.mxu0 %v121
  %125 = vmatprep.subr.bf16.mxu0 0
  %126 = vmatpush1.bf16.msra.mxu0 0
  %127 = vmatprep.subr.bf16.mxu0 0
  %128 = vmatpush1.bf16.msra.mxu0 0
  %129 = vmatprep.subr.bf16.mxu0 0
  %130 = vmatpush1.bf16.msra.mxu0 0
  %131 = vmatprep.subr.bf16.mxu0 0
  %132 = vmatpush1.bf16.msra.mxu0 0
  %133 = vmatprep.subr.bf16.mxu0 0
  %134 = vmatpush1.bf16.msra.mxu0 0
  %135 = vmatprep.subr.bf16.mxu0 0
  %136 = vmatpush1.bf16.msra.mxu0 0
  %137 = vmatprep.subr.bf16.mxu0 0
  %138 = vmatpush1.bf16.msra.mxu0 0
  %139 = vmatprep.subr.bf16.mxu0 0
  %140 = vmatpush1.bf16.msra.mxu0 0
  %141 = vmatprep.subr.bf16.mxu0 0
  %142 = vmatpush1.bf16.msra.mxu0 0
  %143 = vmatprep.subr.bf16.mxu0 0
  %144 = vmatpush1.bf16.msra.mxu0 0
  %145 = vmatprep.subr.bf16.mxu0 0
  %146 = vmatpush1.bf16.msra.mxu0 0
  %147 = vmatprep.subr.bf16.mxu0 0
  %148 = vmatpush1.bf16.msra.mxu0 0
  %149 = vmatprep.subr.bf16.mxu0 0
  %150 = vmatpush1.bf16.msra.mxu0 0
  %151 = vmatprep.subr.bf16.mxu0 0
  %152 = vmatpush1.bf16.msra.mxu0 0
  %153 = vmatprep.subr.bf16.mxu0 0
  %154 = vmatpush1.bf16.msra.mxu0 0
  %155 = vmatprep.mubr.bf16.mxu0 0
  %156 = vmatmul.mubr.bf16.gmra.mrb[0].mxu0 %v111
  %v157 = vpop.f32.mrb[0].mxu0
  %v158 = vadd.f32 %v107, %v157
  %v159 = vpop.f32.mrb[0].mxu0
  %v160 = vpop.f32.mrb[0].mxu0
  %v161 = vadd.f32 %v107, %v160
  %v162 = vpop.f32.mrb[0].mxu0
  %163 = vmatprep.mubr.bf16.mxu0 0
  %164 = vmatmul.mubr.bf16.gmra.mrb[0].mxu0 %v114
  %v165 = vpop.f32.mrb[0].mxu0
  %v166 = vadd.f32 %v107, %v165
  %v167 = vpop.f32.mrb[0].mxu0
  %v168 = vpop.f32.mrb[0].mxu0
  %v169 = vadd.f32 %v107, %v168
  %v170 = vpop.f32.mrb[0].mxu0
  %171 = vdwg.mxu0
  %v172 = vmax.f32 %v158, 0.0
  %v173 = vmax.f32 %v161, 0.0
  %v174 = vmax.f32 %v166, 0.0
  %v175 = vmax.f32 %v169, 0.0
  %v176 = vpack.c.bf16 %v173, %v172
  %v177 = vpack.c.bf16 %v175, %v174
  %v178 = vld [vmem:[%s3] sm:$0xf]
  %v179 = vld [vmem:[%s3 + $0x4] sm:$0xf]
  %v180 = vld [vmem:[%s3 + $0x8] sm:$0xf]
  %v181 = vld [vmem:[%s3 + $0xc] sm:$0xf]
  %v182 = vld [vmem:[%s3 + $0x10] sm:$0xf]
  %v183 = vld [vmem:[%s3 + $0x14] sm:$0xf]
  %v184 = vld [vmem:[%s3 + $0x18] sm:$0xf]
  %v185 = vld [vmem:[%s3 + $0x1c] sm:$0xf]
  %v186 = vld [vmem:[%s4] sm:$0x1]
  %v188 = vlaneseq
  %v189 = vshrl.u32 %v188, 7
  %v190 = vsub.s32 0, %v189
  %v191 = vrot.slane %v186, %v190
  %v201 = vunpack.c.l.b16 %v178
  %v202 = vunpack.c.l.b16 %v179
  %v203 = vunpack.c.l.b16 %v180
  %v204 = vunpack.c.l.b16 %v181
  %v205 = vunpack.c.l.b16 %v182
  %v206 = vunpack.c.l.b16 %v183
  %v207 = vunpack.c.l.b16 %v184
  %v208 = vunpack.c.l.b16 %v185
  %v209 = vpack.c.b16 %v202, %v201
  %v210 = vpack.c.b16 %v204, %v203
  %v211 = vpack.c.b16 %v206, %v205
  %v212 = vpack.c.b16 %v208, %v207
  %vm217 = vcmask 523264
  %v219 = vsel %vm217, %v176, 0
  %v222 = vsel %vm217, %v177, 0
  %224 = vmatprep.subr.bf16.mxu0 0
  %225 = vmatpush1.bf16.msra.mxu0 %v209
  %226 = vmatprep.subr.bf16.mxu0 0
  %227 = vmatpush1.bf16.msra.mxu0 %v210
  %228 = vmatprep.subr.bf16.mxu0 0
  %229 = vmatpush1.bf16.msra.mxu0 %v211
  %230 = vmatprep.subr.bf16.mxu0 0
  %231 = vmatpush1.bf16.msra.mxu0 %v212
  %232 = vmatprep.subr.bf16.mxu0 0
  %233 = vmatpush1.bf16.msra.mxu0 0
  %234 = vmatprep.subr.bf16.mxu0 0
  %235 = vmatpush1.bf16.msra.mxu0 0
  %236 = vmatprep.subr.bf16.mxu0 0
  %237 = vmatpush1.bf16.msra.mxu0 0
  %238 = vmatprep.subr.bf16.mxu0 0
  %239 = vmatpush1.bf16.msra.mxu0 0
  %240 = vmatprep.subr.bf16.mxu0 0
  %241 = vmatpush1.bf16.msra.mxu0 0
  %242 = vmatprep.subr.bf16.mxu0 0
  %243 = vmatpush1.bf16.msra.mxu0 0
  %244 = vmatprep.subr.bf16.mxu0 0
  %245 = vmatpush1.bf16.msra.mxu0 0
  %246 = vmatprep.subr.bf16.mxu0 0
  %247 = vmatpush1.bf16.msra.mxu0 0
  %248 = vmatprep.subr.bf16.mxu0 0
  %249 = vmatpush1.bf16.msra.mxu0 0
  %250 = vmatprep.subr.bf16.mxu0 0
  %251 = vmatpush1.bf16.msra.mxu0 0
  %252 = vmatprep.subr.bf16.mxu0 0
  %253 = vmatpush1.bf16.msra.mxu0 0
  %254 = vmatprep.subr.bf16.mxu0 0
  %255 = vmatpush1.bf16.msra.mxu0 0
  %256 = vmatprep.mubr.bf16.mxu0 0
  %257 = vmatmul.mubr.bf16.gmra.mrb[0].mxu0 %v219
  %v258 = vpop.f32.mrb[0].mxu0
  %v259 = vadd.f32 %v191, %v258
  %v260 = vpop.f32.mrb[0].mxu0
  %v261 = vpop.f32.mrb[0].mxu0
  %v262 = vadd.f32 %v191, %v261
  %v263 = vpop.f32.mrb[0].mxu0
  %264 = vmatprep.mubr.bf16.mxu0 0
  %265 = vmatmul.mubr.bf16.gmra.mrb[0].mxu0 %v222
  %v266 = vpop.f32.mrb[0].mxu0
  %v267 = vadd.f32 %v191, %v266
  %v268 = vpop.f32.mrb[0].mxu0
  %v269 = vpop.f32.mrb[0].mxu0
  %v270 = vadd.f32 %v191, %v269
  %v271 = vpop.f32.mrb[0].mxu0
  %272 = vdwg.mxu0
  %v273 = vmax.f32 %v259, 0.0
  %v274 = vmax.f32 %v262, 0.0
  %v275 = vmax.f32 %v267, 0.0
  %v276 = vmax.f32 %v270, 0.0
  %v277 = vpack.c.bf16 %v274, %v273
  %v278 = vpack.c.bf16 %v276, %v275
  %v279 = vld [vmem:[%s5] sm:$0xff]
  %v280 = vld [vmem:[%s5 + $0x8] sm:$0xff]
  %v281 = vld [vmem:[%s5 + $0x10] sm:$0xff]
  %v282 = vld [vmem:[%s5 + $0x18] sm:$0xff]
  %v283 = vld [vmem:[%s5 + $0x20] sm:$0xff]
  %v284 = vld [vmem:[%s5 + $0x28] sm:$0xff]
  %v285 = vld [vmem:[%s5 + $0x30] sm:$0xff]
  %v286 = vld [vmem:[%s5 + $0x38] sm:$0xff]
  %v287 = vld [vmem:[%s5 + $0x40] sm:$0xff]
  %v288 = vld [vmem:[%s5 + $0x48] sm:$0xff]
  %v289 = vld [vmem:[%s5 + $0x50] sm:$0xff]
  %v290 = vld [vmem:[%s5 + $0x58] sm:$0xff]
  %v291 = vld [vmem:[%s5 + $0x60] sm:$0xff]
  %v292 = vld [vmem:[%s5 + $0x68] sm:$0xff]
  %v293 = vld [vmem:[%s5 + $0x70] sm:$0xff]
  %v294 = vld [vmem:[%s5 + $0x78] sm:$0xff]
  %v295 = vld [vmem:[%s5 + $0x80] sm:$0xff]
  %v296 = vld [vmem:[%s5 + $0x88] sm:$0xff]
  %v297 = vld [vmem:[%s5 + $0x90] sm:$0xff]
  %v298 = vld [vmem:[%s5 + $0x98] sm:$0xff]
  %v299 = vld [vmem:[%s5 + $0xa0] sm:$0xff]
  %v300 = vld [vmem:[%s5 + $0xa8] sm:$0xff]
  %v301 = vld [vmem:[%s5 + $0xb0] sm:$0xff]
  %v302 = vld [vmem:[%s5 + $0xb8] sm:$0xff]
  %v303 = vld [vmem:[%s5 + $0xc0] sm:$0xff]
  %v304 = vld [vmem:[%s5 + $0xc8] sm:$0xff]
  %v305 = vld [vmem:[%s5 + $0xd0] sm:$0xff]
  %v306 = vld [vmem:[%s5 + $0xd8] sm:$0xff]
  %v307 = vld [vmem:[%s5 + $0xe0] sm:$0xff]
  %v308 = vld [vmem:[%s5 + $0xe8] sm:$0xff]
  %v309 = vld [vmem:[%s5 + $0xf0] sm:$0xff]
  %v310 = vld [vmem:[%s5 + $0xf8] sm:$0xff]
  %v311 = vld [vmem:[%s5 + $0x100] sm:$0xff]
  %v312 = vld [vmem:[%s5 + $0x108] sm:$0xff]
  %v313 = vld [vmem:[%s5 + $0x110] sm:$0xff]
  %v314 = vld [vmem:[%s5 + $0x118] sm:$0xff]
  %v315 = vld [vmem:[%s5 + $0x120] sm:$0xff]
  %v316 = vld [vmem:[%s5 + $0x128] sm:$0xff]
  %v317 = vld [vmem:[%s5 + $0x130] sm:$0xff]
  %v318 = vld [vmem:[%s5 + $0x138] sm:$0xff]
  %v319 = vld [vmem:[%s5 + $0x140] sm:$0xff]
  %v320 = vld [vmem:[%s5 + $0x148] sm:$0xff]
  %v321 = vld [vmem:[%s5 + $0x150] sm:$0xff]
  %v322 = vld [vmem:[%s5 + $0x158] sm:$0xff]
  %v323 = vld [vmem:[%s5 + $0x160] sm:$0xff]
  %v324 = vld [vmem:[%s5 + $0x168] sm:$0xff]
  %v325 = vld [vmem:[%s5 + $0x170] sm:$0xff]
  %v326 = vld [vmem:[%s5 + $0x178] sm:$0xff]
  %v327 = vld [vmem:[%s5 + $0x180] sm:$0xff]
  %v328 = vld [vmem:[%s5 + $0x188] sm:$0xff]
  %v329 = vld [vmem:[%s5 + $0x190] sm:$0xff]
  %v330 = vld [vmem:[%s5 + $0x198] sm:$0xff]
  %v331 = vld [vmem:[%s5 + $0x1a0] sm:$0xff]
  %v332 = vld [vmem:[%s5 + $0x1a8] sm:$0xff]
  %v333 = vld [vmem:[%s5 + $0x1b0] sm:$0xff]
  %v334 = vld [vmem:[%s5 + $0x1b8] sm:$0xff]
  %v335 = vld [vmem:[%s5 + $0x1c0] sm:$0xff]
  %v336 = vld [vmem:[%s5 + $0x1c8] sm:$0xff]
  %v337 = vld [vmem:[%s5 + $0x1d0] sm:$0xff]
  %v338 = vld [vmem:[%s5 + $0x1d8] sm:$0xff]
  %v339 = vld [vmem:[%s5 + $0x1e0] sm:$0xff]
  %v340 = vld [vmem:[%s5 + $0x1e8] sm:$0xff]
  %v341 = vld [vmem:[%s5 + $0x1f0] sm:$0xff]
  %v342 = vld [vmem:[%s5 + $0x1f8] sm:$0xff]
  %v343 = vld [vmem:[%s6] sm:$0xff]
  %v345 = vlaneseq
  %v346 = vshrl.u32 %v345, 7
  %v347 = vsub.s32 0, %v346
  %v348 = vrot.slane %v343, %v347
  %v349 = vlaneseq
  %v350 = vshrl.u32 %v349, 7
  %v351 = vsub.s32 1, %v350
  %v352 = vrot.slane %v343, %v351
  %v353 = vlaneseq
  %v354 = vshrl.u32 %v353, 7
  %v355 = vsub.s32 2, %v354
  %v356 = vrot.slane %v343, %v355
  %v357 = vlaneseq
  %v358 = vshrl.u32 %v357, 7
  %v359 = vsub.s32 3, %v358
  %v360 = vrot.slane %v343, %v359
  %v361 = vlaneseq
  %v362 = vshrl.u32 %v361, 7
  %v363 = vsub.s32 4, %v362
  %v364 = vrot.slane %v343, %v363
  %v365 = vlaneseq
  %v366 = vshrl.u32 %v365, 7
  %v367 = vsub.s32 5, %v366
  %v368 = vrot.slane %v343, %v367
  %v369 = vlaneseq
  %v370 = vshrl.u32 %v369, 7
  %v371 = vsub.s32 6, %v370
  %v372 = vrot.slane %v343, %v371
  %v373 = vlaneseq
  %v374 = vshrl.u32 %v373, 7
  %v375 = vsub.s32 7, %v374
  %v376 = vrot.slane %v343, %v375
  %v449 = vunpack.c.l.b16 %v279
  %v450 = vunpack.c.h.b16 %v279
  %v451 = vunpack.c.l.b16 %v280
  %v452 = vunpack.c.h.b16 %v280
  %v453 = vunpack.c.l.b16 %v281
  %v454 = vunpack.c.h.b16 %v281
  %v455 = vunpack.c.l.b16 %v282
  %v456 = vunpack.c.h.b16 %v282
  %v457 = vunpack.c.l.b16 %v283
  %v458 = vunpack.c.h.b16 %v283
  %v459 = vunpack.c.l.b16 %v284
  %v460 = vunpack.c.h.b16 %v284
  %v461 = vunpack.c.l.b16 %v285
  %v462 = vunpack.c.h.b16 %v285
  %v463 = vunpack.c.l.b16 %v286
  %v464 = vunpack.c.h.b16 %v286
  %v465 = vunpack.c.l.b16 %v287
  %v466 = vunpack.c.h.b16 %v287
  %v467 = vunpack.c.l.b16 %v288
  %v468 = vunpack.c.h.b16 %v288
  %v469 = vunpack.c.l.b16 %v289
  %v470 = vunpack.c.h.b16 %v289
  %v471 = vunpack.c.l.b16 %v290
  %v472 = vunpack.c.h.b16 %v290
  %v473 = vunpack.c.l.b16 %v291
  %v474 = vunpack.c.h.b16 %v291
  %v475 = vunpack.c.l.b16 %v292
  %v476 = vunpack.c.h.b16 %v292
  %v477 = vunpack.c.l.b16 %v293
  %v478 = vunpack.c.h.b16 %v293
  %v479 = vunpack.c.l.b16 %v294
  %v480 = vunpack.c.h.b16 %v294
  %v481 = vunpack.c.l.b16 %v295
  %v482 = vunpack.c.h.b16 %v295
  %v483 = vunpack.c.l.b16 %v296
  %v484 = vunpack.c.h.b16 %v296
  %v485 = vunpack.c.l.b16 %v297
  %v486 = vunpack.c.h.b16 %v297
  %v487 = vunpack.c.l.b16 %v298
  %v488 = vunpack.c.h.b16 %v298
  %v489 = vunpack.c.l.b16 %v299
  %v490 = vunpack.c.h.b16 %v299
  %v491 = vunpack.c.l.b16 %v300
  %v492 = vunpack.c.h.b16 %v300
  %v493 = vunpack.c.l.b16 %v301
  %v494 = vunpack.c.h.b16 %v301
  %v495 = vunpack.c.l.b16 %v302
  %v496 = vunpack.c.h.b16 %v302
  %v497 = vunpack.c.l.b16 %v303
  %v498 = vunpack.c.h.b16 %v303
  %v499 = vunpack.c.l.b16 %v304
  %v500 = vunpack.c.h.b16 %v304
  %v501 = vunpack.c.l.b16 %v305
  %v502 = vunpack.c.h.b16 %v305
  %v503 = vunpack.c.l.b16 %v306
  %v504 = vunpack.c.h.b16 %v306
  %v505 = vunpack.c.l.b16 %v307
  %v506 = vunpack.c.h.b16 %v307
  %v507 = vunpack.c.l.b16 %v308
  %v508 = vunpack.c.h.b16 %v308
  %v509 = vunpack.c.l.b16 %v309
  %v510 = vunpack.c.h.b16 %v309
  %v511 = vunpack.c.l.b16 %v310
  %v512 = vunpack.c.h.b16 %v310
  %v513 = vunpack.c.l.b16 %v311
  %v514 = vunpack.c.h.b16 %v311
  %v515 = vunpack.c.l.b16 %v312
  %v516 = vunpack.c.h.b16 %v312
  %v517 = vunpack.c.l.b16 %v313
  %v518 = vunpack.c.h.b16 %v313
  %v519 = vunpack.c.l.b16 %v314
  %v520 = vunpack.c.h.b16 %v314
  %v521 = vunpack.c.l.b16 %v315
  %v522 = vunpack.c.h.b16 %v315
  %v523 = vunpack.c.l.b16 %v316
  %v524 = vunpack.c.h.b16 %v316
  %v525 = vunpack.c.l.b16 %v317
  %v526 = vunpack.c.h.b16 %v317
  %v527 = vunpack.c.l.b16 %v318
  %v528 = vunpack.c.h.b16 %v318
  %v529 = vunpack.c.l.b16 %v319
  %v530 = vunpack.c.h.b16 %v319
  %v531 = vunpack.c.l.b16 %v320
  %v532 = vunpack.c.h.b16 %v320
  %v533 = vunpack.c.l.b16 %v321
  %v534 = vunpack.c.h.b16 %v321
  %v535 = vunpack.c.l.b16 %v322
  %v536 = vunpack.c.h.b16 %v322
  %v537 = vunpack.c.l.b16 %v323
  %v538 = vunpack.c.h.b16 %v323
  %v539 = vunpack.c.l.b16 %v324
  %v540 = vunpack.c.h.b16 %v324
  %v541 = vunpack.c.l.b16 %v325
  %v542 = vunpack.c.h.b16 %v325
  %v543 = vunpack.c.l.b16 %v326
  %v544 = vunpack.c.h.b16 %v326
  %v545 = vunpack.c.l.b16 %v327
  %v546 = vunpack.c.h.b16 %v327
  %v547 = vunpack.c.l.b16 %v328
  %v548 = vunpack.c.h.b16 %v328
  %v549 = vunpack.c.l.b16 %v329
  %v550 = vunpack.c.h.b16 %v329
  %v551 = vunpack.c.l.b16 %v330
  %v552 = vunpack.c.h.b16 %v330
  %v553 = vunpack.c.l.b16 %v331
  %v554 = vunpack.c.h.b16 %v331
  %v555 = vunpack.c.l.b16 %v332
  %v556 = vunpack.c.h.b16 %v332
  %v557 = vunpack.c.l.b16 %v333
  %v558 = vunpack.c.h.b16 %v333
  %v559 = vunpack.c.l.b16 %v334
  %v560 = vunpack.c.h.b16 %v334
  %v561 = vunpack.c.l.b16 %v335
  %v562 = vunpack.c.h.b16 %v335
  %v563 = vunpack.c.l.b16 %v336
  %v564 = vunpack.c.h.b16 %v336
  %v565 = vunpack.c.l.b16 %v337
  %v566 = vunpack.c.h.b16 %v337
  %v567 = vunpack.c.l.b16 %v338
  %v568 = vunpack.c.h.b16 %v338
  %v569 = vunpack.c.l.b16 %v339
  %v570 = vunpack.c.h.b16 %v339
  %v571 = vunpack.c.l.b16 %v340
  %v572 = vunpack.c.h.b16 %v340
  %v573 = vunpack.c.l.b16 %v341
  %v574 = vunpack.c.h.b16 %v341
  %v575 = vunpack.c.l.b16 %v342
  %v576 = vunpack.c.h.b16 %v342
  %v577 = vpack.c.b16 %v457, %v449
  %v578 = vpack.c.b16 %v458, %v450
  %v579 = vpack.c.b16 %v459, %v451
  %v580 = vpack.c.b16 %v460, %v452
  %v581 = vpack.c.b16 %v461, %v453
  %v582 = vpack.c.b16 %v462, %v454
  %v583 = vpack.c.b16 %v463, %v455
  %v584 = vpack.c.b16 %v464, %v456
  %v585 = vpack.c.b16 %v473, %v465
  %v586 = vpack.c.b16 %v474, %v466
  %v587 = vpack.c.b16 %v475, %v467
  %v588 = vpack.c.b16 %v476, %v468
  %v589 = vpack.c.b16 %v477, %v469
  %v590 = vpack.c.b16 %v478, %v470
  %v591 = vpack.c.b16 %v479, %v471
  %v592 = vpack.c.b16 %v480, %v472
  %v593 = vpack.c.b16 %v489, %v481
  %v594 = vpack.c.b16 %v490, %v482
  %v595 = vpack.c.b16 %v491, %v483
  %v596 = vpack.c.b16 %v492, %v484
  %v597 = vpack.c.b16 %v493, %v485
  %v598 = vpack.c.b16 %v494, %v486
  %v599 = vpack.c.b16 %v495, %v487
  %v600 = vpack.c.b16 %v496, %v488
  %v601 = vpack.c.b16 %v505, %v497
  %v602 = vpack.c.b16 %v506, %v498
  %v603 = vpack.c.b16 %v507, %v499
  %v604 = vpack.c.b16 %v508, %v500
  %v605 = vpack.c.b16 %v509, %v501
  %v606 = vpack.c.b16 %v510, %v502
  %v607 = vpack.c.b16 %v511, %v503
  %v608 = vpack.c.b16 %v512, %v504
  %v609 = vpack.c.b16 %v521, %v513
  %v610 = vpack.c.b16 %v522, %v514
  %v611 = vpack.c.b16 %v523, %v515
  %v612 = vpack.c.b16 %v524, %v516
  %v613 = vpack.c.b16 %v525, %v517
  %v614 = vpack.c.b16 %v526, %v518
  %v615 = vpack.c.b16 %v527, %v519
  %v616 = vpack.c.b16 %v528, %v520
  %v617 = vpack.c.b16 %v537, %v529
  %v618 = vpack.c.b16 %v538, %v530
  %v619 = vpack.c.b16 %v539, %v531
  %v620 = vpack.c.b16 %v540, %v532
  %v621 = vpack.c.b16 %v541, %v533
  %v622 = vpack.c.b16 %v542, %v534
  %v623 = vpack.c.b16 %v543, %v535
  %v624 = vpack.c.b16 %v544, %v536
  %v625 = vpack.c.b16 %v553, %v545
  %v626 = vpack.c.b16 %v554, %v546
  %v627 = vpack.c.b16 %v555, %v547
  %v628 = vpack.c.b16 %v556, %v548
  %v629 = vpack.c.b16 %v557, %v549
  %v630 = vpack.c.b16 %v558, %v550
  %v631 = vpack.c.b16 %v559, %v551
  %v632 = vpack.c.b16 %v560, %v552
  %v633 = vpack.c.b16 %v569, %v561
  %v634 = vpack.c.b16 %v570, %v562
  %v635 = vpack.c.b16 %v571, %v563
  %v636 = vpack.c.b16 %v572, %v564
  %v637 = vpack.c.b16 %v573, %v565
  %v638 = vpack.c.b16 %v574, %v566
  %v639 = vpack.c.b16 %v575, %v567
  %v640 = vpack.c.b16 %v576, %v568
  %705 = vmatprep.subr.bf16.mxu0 %v578
  %706 = vmatpush1.bf16.msra.mxu0 %v577
  %707 = vmatprep.subr.bf16.mxu0 %v586
  %708 = vmatpush1.bf16.msra.mxu0 %v585
  %709 = vmatprep.subr.bf16.mxu0 %v594
  %710 = vmatpush1.bf16.msra.mxu0 %v593
  %711 = vmatprep.subr.bf16.mxu0 %v602
  %712 = vmatpush1.bf16.msra.mxu0 %v601
  %713 = vmatprep.subr.bf16.mxu0 %v610
  %714 = vmatpush1.bf16.msra.mxu0 %v609
  %715 = vmatprep.subr.bf16.mxu0 %v618
  %716 = vmatpush1.bf16.msra.mxu0 %v617
  %717 = vmatprep.subr.bf16.mxu0 %v626
  %718 = vmatpush1.bf16.msra.mxu0 %v625
  %719 = vmatprep.subr.bf16.mxu0 %v634
  %720 = vmatpush1.bf16.msra.mxu0 %v633
  %721 = vmatprep.subr.bf16.mxu0 0
  %722 = vmatpush1.bf16.msra.mxu0 0
  %723 = vmatprep.subr.bf16.mxu0 0
  %724 = vmatpush1.bf16.msra.mxu0 0
  %725 = vmatprep.subr.bf16.mxu0 0
  %726 = vmatpush1.bf16.msra.mxu0 0
  %727 = vmatprep.subr.bf16.mxu0 0
  %728 = vmatpush1.bf16.msra.mxu0 0
  %729 = vmatprep.subr.bf16.mxu0 0
  %730 = vmatpush1.bf16.msra.mxu0 0
  %731 = vmatprep.subr.bf16.mxu0 0
  %732 = vmatpush1.bf16.msra.mxu0 0
  %733 = vmatprep.subr.bf16.mxu0 0
  %734 = vmatpush1.bf16.msra.mxu0 0
  %735 = vmatprep.subr.bf16.mxu0 0
  %736 = vmatpush1.bf16.msra.mxu0 0
  %737 = vmatprep.mubr.bf16.mxu0 0
  %738 = vmatmul.mubr.bf16.gmra.mrb[0].mxu0 %v277
  %v739 = vpop.f32.mrb[0].mxu0
  %v740 = vadd.f32 %v348, %v739
  %v741 = vpop.f32.mrb[0].mxu0
  %v742 = vadd.f32 %v352, %v741
  %v743 = vpop.f32.mrb[0].mxu0
  %v744 = vadd.f32 %v348, %v743
  %v745 = vpop.f32.mrb[0].mxu0
  %v746 = vadd.f32 %v352, %v745
  %747 = vmatprep.mubr.bf16.mxu0 0
  %748 = vmatmul.mubr.bf16.gmra.mrb[0].mxu0 %v278
  %v749 = vpop.f32.mrb[0].mxu0
  %v750 = vadd.f32 %v348, %v749
  %v751 = vpop.f32.mrb[0].mxu0
  %v752 = vadd.f32 %v352, %v751
  %v753 = vpop.f32.mrb[0].mxu0
  %v754 = vadd.f32 %v348, %v753
  %v755 = vpop.f32.mrb[0].mxu0
  %v756 = vadd.f32 %v352, %v755
  %757 = vdwg.mxu0
  %758 = vmatprep.subr.bf16.mxu0 %v580
  %759 = vmatpush1.bf16.msra.mxu0 %v579
  %760 = vmatprep.subr.bf16.mxu0 %v588
  %761 = vmatpush1.bf16.msra.mxu0 %v587
  %762 = vmatprep.subr.bf16.mxu0 %v596
  %763 = vmatpush1.bf16.msra.mxu0 %v595
  %764 = vmatprep.subr.bf16.mxu0 %v604
  %765 = vmatpush1.bf16.msra.mxu0 %v603
  %766 = vmatprep.subr.bf16.mxu0 %v612
  %767 = vmatpush1.bf16.msra.mxu0 %v611
  %768 = vmatprep.subr.bf16.mxu0 %v620
  %769 = vmatpush1.bf16.msra.mxu0 %v619
  %770 = vmatprep.subr.bf16.mxu0 %v628
  %771 = vmatpush1.bf16.msra.mxu0 %v627
  %772 = vmatprep.subr.bf16.mxu0 %v636
  %773 = vmatpush1.bf16.msra.mxu0 %v635
  %774 = vmatprep.subr.bf16.mxu0 0
  %775 = vmatpush1.bf16.msra.mxu0 0
  %776 = vmatprep.subr.bf16.mxu0 0
  %777 = vmatpush1.bf16.msra.mxu0 0
  %778 = vmatprep.subr.bf16.mxu0 0
  %779 = vmatpush1.bf16.msra.mxu0 0
  %780 = vmatprep.subr.bf16.mxu0 0
  %781 = vmatpush1.bf16.msra.mxu0 0
  %782 = vmatprep.subr.bf16.mxu0 0
  %783 = vmatpush1.bf16.msra.mxu0 0
  %784 = vmatprep.subr.bf16.mxu0 0
  %785 = vmatpush1.bf16.msra.mxu0 0
  %786 = vmatprep.subr.bf16.mxu0 0
  %787 = vmatpush1.bf16.msra.mxu0 0
  %788 = vmatprep.subr.bf16.mxu0 0
  %789 = vmatpush1.bf16.msra.mxu0 0
  %790 = vmatprep.mubr.bf16.mxu0 0
  %791 = vmatmul.mubr.bf16.gmra.mrb[0].mxu0 %v277
  %v792 = vpop.f32.mrb[0].mxu0
  %v793 = vadd.f32 %v356, %v792
  %v794 = vpop.f32.mrb[0].mxu0
  %v795 = vadd.f32 %v360, %v794
  %v796 = vpop.f32.mrb[0].mxu0
  %v797 = vadd.f32 %v356, %v796
  %v798 = vpop.f32.mrb[0].mxu0
  %v799 = vadd.f32 %v360, %v798
  %800 = vmatprep.mubr.bf16.mxu0 0
  %801 = vmatmul.mubr.bf16.gmra.mrb[0].mxu0 %v278
  %v802 = vpop.f32.mrb[0].mxu0
  %v803 = vadd.f32 %v356, %v802
  %v804 = vpop.f32.mrb[0].mxu0
  %v805 = vadd.f32 %v360, %v804
  %v806 = vpop.f32.mrb[0].mxu0
  %v807 = vadd.f32 %v356, %v806
  %v808 = vpop.f32.mrb[0].mxu0
  %v809 = vadd.f32 %v360, %v808
  %810 = vdwg.mxu0
  %811 = vmatprep.subr.bf16.mxu0 %v582
  %812 = vmatpush1.bf16.msra.mxu0 %v581
  %813 = vmatprep.subr.bf16.mxu0 %v590
  %814 = vmatpush1.bf16.msra.mxu0 %v589
  %815 = vmatprep.subr.bf16.mxu0 %v598
  %816 = vmatpush1.bf16.msra.mxu0 %v597
  %817 = vmatprep.subr.bf16.mxu0 %v606
  %818 = vmatpush1.bf16.msra.mxu0 %v605
  %819 = vmatprep.subr.bf16.mxu0 %v614
  %820 = vmatpush1.bf16.msra.mxu0 %v613
  %821 = vmatprep.subr.bf16.mxu0 %v622
  %822 = vmatpush1.bf16.msra.mxu0 %v621
  %823 = vmatprep.subr.bf16.mxu0 %v630
  %824 = vmatpush1.bf16.msra.mxu0 %v629
  %825 = vmatprep.subr.bf16.mxu0 %v638
  %826 = vmatpush1.bf16.msra.mxu0 %v637
  %827 = vmatprep.subr.bf16.mxu0 0
  %828 = vmatpush1.bf16.msra.mxu0 0
  %829 = vmatprep.subr.bf16.mxu0 0
  %830 = vmatpush1.bf16.msra.mxu0 0
  %831 = vmatprep.subr.bf16.mxu0 0
  %832 = vmatpush1.bf16.msra.mxu0 0
  %833 = vmatprep.subr.bf16.mxu0 0
  %834 = vmatpush1.bf16.msra.mxu0 0
  %835 = vmatprep.subr.bf16.mxu0 0
  %836 = vmatpush1.bf16.msra.mxu0 0
  %837 = vmatprep.subr.bf16.mxu0 0
  %838 = vmatpush1.bf16.msra.mxu0 0
  %839 = vmatprep.subr.bf16.mxu0 0
  %840 = vmatpush1.bf16.msra.mxu0 0
  %841 = vmatprep.subr.bf16.mxu0 0
  %842 = vmatpush1.bf16.msra.mxu0 0
  %843 = vmatprep.mubr.bf16.mxu0 0
  %844 = vmatmul.mubr.bf16.gmra.mrb[0].mxu0 %v277
  %v845 = vpop.f32.mrb[0].mxu0
  %v846 = vadd.f32 %v364, %v845
  %v847 = vpop.f32.mrb[0].mxu0
  %v848 = vadd.f32 %v368, %v847
  %v849 = vpop.f32.mrb[0].mxu0
  %v850 = vadd.f32 %v364, %v849
  %v851 = vpop.f32.mrb[0].mxu0
  %v852 = vadd.f32 %v368, %v851
  %853 = vmatprep.mubr.bf16.mxu0 0
  %854 = vmatmul.mubr.bf16.gmra.mrb[0].mxu0 %v278
  %v855 = vpop.f32.mrb[0].mxu0
  %v856 = vadd.f32 %v364, %v855
  %v857 = vpop.f32.mrb[0].mxu0
  %v858 = vadd.f32 %v368, %v857
  %v859 = vpop.f32.mrb[0].mxu0
  %v860 = vadd.f32 %v364, %v859
  %v861 = vpop.f32.mrb[0].mxu0
  %v862 = vadd.f32 %v368, %v861
  %863 = vdwg.mxu0
  %864 = vmatprep.subr.bf16.mxu0 %v584
  %865 = vmatpush1.bf16.msra.mxu0 %v583
  %866 = vmatprep.subr.bf16.mxu0 %v592
  %867 = vmatpush1.bf16.msra.mxu0 %v591
  %868 = vmatprep.subr.bf16.mxu0 %v600
  %869 = vmatpush1.bf16.msra.mxu0 %v599
  %870 = vmatprep.subr.bf16.mxu0 %v608
  %871 = vmatpush1.bf16.msra.mxu0 %v607
  %872 = vmatprep.subr.bf16.mxu0 %v616
  %873 = vmatpush1.bf16.msra.mxu0 %v615
  %874 = vmatprep.subr.bf16.mxu0 %v624
  %875 = vmatpush1.bf16.msra.mxu0 %v623
  %876 = vmatprep.subr.bf16.mxu0 %v632
  %877 = vmatpush1.bf16.msra.mxu0 %v631
  %878 = vmatprep.subr.bf16.mxu0 %v640
  %879 = vmatpush1.bf16.msra.mxu0 %v639
  %880 = vmatprep.subr.bf16.mxu0 0
  %881 = vmatpush1.bf16.msra.mxu0 0
  %882 = vmatprep.subr.bf16.mxu0 0
  %883 = vmatpush1.bf16.msra.mxu0 0
  %884 = vmatprep.subr.bf16.mxu0 0
  %885 = vmatpush1.bf16.msra.mxu0 0
  %886 = vmatprep.subr.bf16.mxu0 0
  %887 = vmatpush1.bf16.msra.mxu0 0
  %888 = vmatprep.subr.bf16.mxu0 0
  %889 = vmatpush1.bf16.msra.mxu0 0
  %890 = vmatprep.subr.bf16.mxu0 0
  %891 = vmatpush1.bf16.msra.mxu0 0
  %892 = vmatprep.subr.bf16.mxu0 0
  %893 = vmatpush1.bf16.msra.mxu0 0
  %894 = vmatprep.subr.bf16.mxu0 0
  %895 = vmatpush1.bf16.msra.mxu0 0
  %896 = vmatprep.mubr.bf16.mxu0 0
  %897 = vmatmul.mubr.bf16.gmra.mrb[0].mxu0 %v277
  %v898 = vpop.f32.mrb[0].mxu0
  %v899 = vadd.f32 %v372, %v898
  %v900 = vpop.f32.mrb[0].mxu0
  %v901 = vadd.f32 %v376, %v900
  %v902 = vpop.f32.mrb[0].mxu0
  %v903 = vadd.f32 %v372, %v902
  %v904 = vpop.f32.mrb[0].mxu0
  %v905 = vadd.f32 %v376, %v904
  %906 = vmatprep.mubr.bf16.mxu0 0
  %907 = vmatmul.mubr.bf16.gmra.mrb[0].mxu0 %v278
  %v908 = vpop.f32.mrb[0].mxu0
  %v909 = vadd.f32 %v372, %v908
  %v910 = vpop.f32.mrb[0].mxu0
  %v911 = vadd.f32 %v376, %v910
  %v912 = vpop.f32.mrb[0].mxu0
  %v913 = vadd.f32 %v372, %v912
  %v914 = vpop.f32.mrb[0].mxu0
  %v915 = vadd.f32 %v376, %v914
  %916 = vdwg.mxu0
  %v917 = vmax.f32 %v740, %v744
  %v918 = vrot.slane %v917, 4
  %v919 = vmax.f32 %v917, %v918
  %v920 = vrot.slane %v919, 2
  %v921 = vmax.f32 %v919, %v920
  %v922 = vrot.slane %v921, 1
  %v923 = vmax.f32 %v921, %v922
  %v924 = vmax.f32 %v742, %v746
  %v925 = vrot.slane %v924, 4
  %v926 = vmax.f32 %v924, %v925
  %v927 = vrot.slane %v926, 2
  %v928 = vmax.f32 %v926, %v927
  %v929 = vrot.slane %v928, 1
  %v930 = vmax.f32 %v928, %v929
  %v931 = vmax.f32 %v793, %v797
  %v932 = vrot.slane %v931, 4
  %v933 = vmax.f32 %v931, %v932
  %v934 = vrot.slane %v933, 2
  %v935 = vmax.f32 %v933, %v934
  %v936 = vrot.slane %v935, 1
  %v937 = vmax.f32 %v935, %v936
  %v938 = vmax.f32 %v795, %v799
  %v939 = vrot.slane %v938, 4
  %v940 = vmax.f32 %v938, %v939
  %v941 = vrot.slane %v940, 2
  %v942 = vmax.f32 %v940, %v941
  %v943 = vrot.slane %v942, 1
  %v944 = vmax.f32 %v942, %v943
  %v945 = vmax.f32 %v846, %v850
  %v946 = vrot.slane %v945, 4
  %v947 = vmax.f32 %v945, %v946
  %v948 = vrot.slane %v947, 2
  %v949 = vmax.f32 %v947, %v948
  %v950 = vrot.slane %v949, 1
  %v951 = vmax.f32 %v949, %v950
  %v952 = vmax.f32 %v848, %v852
  %v953 = vrot.slane %v952, 4
  %v954 = vmax.f32 %v952, %v953
  %v955 = vrot.slane %v954, 2
  %v956 = vmax.f32 %v954, %v955
  %v957 = vrot.slane %v956, 1
  %v958 = vmax.f32 %v956, %v957
  %v959 = vmax.f32 %v899, %v903
  %v960 = vrot.slane %v959, 4
  %v961 = vmax.f32 %v959, %v960
  %v962 = vrot.slane %v961, 2
  %v963 = vmax.f32 %v961, %v962
  %v964 = vrot.slane %v963, 1
  %v965 = vmax.f32 %v963, %v964
  %v966 = vmax.f32 %v901, %v905
  %v967 = vrot.slane %v966, 4
  %v968 = vmax.f32 %v966, %v967
  %v969 = vrot.slane %v968, 2
  %v970 = vmax.f32 %v968, %v969
  %v971 = vrot.slane %v970, 1
  %v972 = vmax.f32 %v970, %v971
  %v973 = vmax.f32 %v750, %v754
  %v974 = vrot.slane %v973, 4
  %v975 = vmax.f32 %v973, %v974
  %v976 = vrot.slane %v975, 2
  %v977 = vmax.f32 %v975, %v976
  %v978 = vrot.slane %v977, 1
  %v979 = vmax.f32 %v977, %v978
  %v980 = vmax.f32 %v752, %v756
  %v981 = vrot.slane %v980, 4
  %v982 = vmax.f32 %v980, %v981
  %v983 = vrot.slane %v982, 2
  %v984 = vmax.f32 %v982, %v983
  %v985 = vrot.slane %v984, 1
  %v986 = vmax.f32 %v984, %v985
  %v987 = vmax.f32 %v803, %v807
  %v988 = vrot.slane %v987, 4
  %v989 = vmax.f32 %v987, %v988
  %v990 = vrot.slane %v989, 2
  %v991 = vmax.f32 %v989, %v990
  %v992 = vrot.slane %v991, 1
  %v993 = vmax.f32 %v991, %v992
  %v994 = vmax.f32 %v805, %v809
  %v995 = vrot.slane %v994, 4
  %v996 = vmax.f32 %v994, %v995
  %v997 = vrot.slane %v996, 2
  %v998 = vmax.f32 %v996, %v997
  %v999 = vrot.slane %v998, 1
  %v1000 = vmax.f32 %v998, %v999
  %v1001 = vmax.f32 %v856, %v860
  %v1002 = vrot.slane %v1001, 4
  %v1003 = vmax.f32 %v1001, %v1002
  %v1004 = vrot.slane %v1003, 2
  %v1005 = vmax.f32 %v1003, %v1004
  %v1006 = vrot.slane %v1005, 1
  %v1007 = vmax.f32 %v1005, %v1006
  %v1008 = vmax.f32 %v858, %v862
  %v1009 = vrot.slane %v1008, 4
  %v1010 = vmax.f32 %v1008, %v1009
  %v1011 = vrot.slane %v1010, 2
  %v1012 = vmax.f32 %v1010, %v1011
  %v1013 = vrot.slane %v1012, 1
  %v1014 = vmax.f32 %v1012, %v1013
  %v1015 = vmax.f32 %v909, %v913
  %v1016 = vrot.slane %v1015, 4
  %v1017 = vmax.f32 %v1015, %v1016
  %v1018 = vrot.slane %v1017, 2
  %v1019 = vmax.f32 %v1017, %v1018
  %v1020 = vrot.slane %v1019, 1
  %v1021 = vmax.f32 %v1019, %v1020
  %v1022 = vmax.f32 %v911, %v915
  %v1023 = vrot.slane %v1022, 4
  %v1024 = vmax.f32 %v1022, %v1023
  %v1025 = vrot.slane %v1024, 2
  %v1026 = vmax.f32 %v1024, %v1025
  %v1027 = vrot.slane %v1026, 1
  %v1028 = vmax.f32 %v1026, %v1027
  %v1029 = vld [vmem:[%s7] sm:$0xff]
  %v1030 = vld [vmem:[%s7 + $0x8] sm:$0xff]
  %v1047 = vcombine.low %v923, %v930
  %v1048 = vcombine.low %v937, %v944
  %v1050 = vunpack.c.l.s4 1983009808
  %v1051 = vunpack.c.0.s8 %v1050
  %v1052 = vlaneseq
  %v1053 = vshrl.u32 %v1052, 7
  %v1054 = vsub.s32 %v1051, %v1053
  %v1055 = vrot.slane %v1047, %v1054
  %v1057 = vunpack.c.l.s4 1983009808
  %v1058 = vunpack.c.0.s8 %v1057
  %v1059 = vlaneseq
  %v1060 = vshrl.u32 %v1059, 7
  %v1061 = vsub.s32 %v1058, %v1060
  %v1062 = vrot.slane %v1048, %v1061
  %v1063 = vcombine.low %v1055, %v1062
  %v1064 = vcombine.low %v951, %v958
  %v1065 = vcombine.low %v965, %v972
  %v1067 = vunpack.c.l.s4 1983009808
  %v1068 = vunpack.c.0.s8 %v1067
  %v1069 = vlaneseq
  %v1070 = vshrl.u32 %v1069, 7
  %v1071 = vsub.s32 %v1068, %v1070
  %v1072 = vrot.slane %v1064, %v1071
  %v1074 = vunpack.c.l.s4 1983009808
  %v1075 = vunpack.c.0.s8 %v1074
  %v1076 = vlaneseq
  %v1077 = vshrl.u32 %v1076, 7
  %v1078 = vsub.s32 %v1075, %v1077
  %v1079 = vrot.slane %v1065, %v1078
  %v1080 = vcombine.low %v1072, %v1079
  %v1081 = vcombine.low %v979, %v986
  %v1082 = vcombine.low %v993, %v1000
  %v1084 = vunpack.c.l.s4 1983009808
  %v1085 = vunpack.c.0.s8 %v1084
  %v1086 = vlaneseq
  %v1087 = vshrl.u32 %v1086, 7
  %v1088 = vsub.s32 %v1085, %v1087
  %v1089 = vrot.slane %v1081, %v1088
  %v1091 = vunpack.c.l.s4 1983009808
  %v1092 = vunpack.c.0.s8 %v1091
  %v1093 = vlaneseq
  %v1094 = vshrl.u32 %v1093, 7
  %v1095 = vsub.s32 %v1092, %v1094
  %v1096 = vrot.slane %v1082, %v1095
  %v1097 = vcombine.low %v1089, %v1096
  %v1098 = vcombine.low %v1007, %v1014
  %v1099 = vcombine.low %v1021, %v1028
  %v1101 = vunpack.c.l.s4 1983009808
  %v1102 = vunpack.c.0.s8 %v1101
  %v1103 = vlaneseq
  %v1104 = vshrl.u32 %v1103, 7
  %v1105 = vsub.s32 %v1102, %v1104
  %v1106 = vrot.slane %v1098, %v1105
  %v1108 = vunpack.c.l.s4 1983009808
  %v1109 = vunpack.c.0.s8 %v1108
  %v1110 = vlaneseq
  %v1111 = vshrl.u32 %v1110, 7
  %v1112 = vsub.s32 %v1109, %v1111
  %v1113 = vrot.slane %v1099, %v1112
  %v1114 = vcombine.low %v1106, %v1113
  %vm1115 = vcmask 1044484
  %v1116 = vsel %vm1115, %v1063, %v1063
  %vm1117 = vcmask 1046534
  %v1118 = vsel %vm1117, %v1063, %v1116
  %v1119 = vrot.slane %v1097, 7
  %vm1120 = vcmask 1041409
  %v1121 = vsel %vm1120, %v1119, %v1118
  %vm1122 = vcmask 1043459
  %v1123 = vsel %vm1122, %v1119, %v1121
  %vm1124 = vcmask 1045509
  %v1125 = vsel %vm1124, %v1119, %v1123
  %vm1126 = vcmask 1047559
  %v1127 = vsel %vm1126, %v1119, %v1125
  %v1128 = vsel %vm1115, %v1080, %v1080
  %v1129 = vsel %vm1117, %v1080, %v1128
  %v1130 = vrot.slane %v1114, 7
  %v1131 = vsel %vm1120, %v1130, %v1129
  %v1132 = vsel %vm1122, %v1130, %v1131
  %v1133 = vsel %vm1124, %v1130, %v1132
  %v1134 = vsel %vm1126, %v1130, %v1133
  %v1137 = vmax.f32 %v1029, %v1127
  %v1138 = vmax.f32 %v1030, %v1134
  %1139 = vst [vmem:[%s7] sm:$0xff] %v1137
  %1140 = vst [vmem:[%s7 + $0x8] sm:$0xff] %v1138
  // Predicated region
  $region34: #{stn3d_forward.2} parent=0 // pred_check
    %p1141 = pneg %p27
  $region35: #{stn3d_forward.2} parent=0 // pred_check_branch
    %1143 = sbr.rel (%p1141) target = $region37
  $region36: #{stn3d_forward.2} parent=0 // pred_region
    %v1144 = vld [vmem:[%s7] sm:$0xff]
    %v1145 = vld [vmem:[%s7 + $0x8] sm:$0xff]
    %v1146 = vmax.f32 %v1144, 0.0
    %v1147 = vmax.f32 %v1145, 0.0
    %1148 = vst [vmem:[%s7] sm:$0xff] %v1146
    %1149 = vst [vmem:[%s7 + $0x8] sm:$0xff] %v1147
  $region37: #{stn3d_forward.2} parent=0 // pred_fallthru
    _
  // Predicated region
  $region38: #{stn3d_forward.2} parent=0 // pred_check
    _
  $region39: #{stn3d_forward.2} parent=0 // pred_check_branch
    %1151 = sbr.rel (0) target = $region41
  $region40: #{stn3d_forward.2} parent=0 // pred_region
    _
  $region41: #{stn3d_forward.2} parent=0 // pred_fallthru
    _
  // Predicated region
  $region42: #{stn3d_forward.2} parent=0 // pred_check
    _
  $region43: #{stn3d_forward.2} parent=0 // pred_check_branch
    %1153 = sbr.rel (0) target = $region45
  $region44: #{stn3d_forward.2} parent=0 // pred_region
    _
  $region45: #{stn3d_forward.2} parent=0 // pred_fallthru
    _

// kernel: stn3d_forward.3
$region0: #{stn3d_forward.3}
  #allocation0 [shape = 'u32[]', space=smem, size = 0x4, offset = 0x4, fixed_abs, tag = 'smem constant byte address 0x4 - core index']
  #allocation1 [shape = 'u32[144,128]{1,0:T(1,128)}', space=vmem, size = 0x12000, scoped, tag = 'internal scratch']
  %s0 = inlined_call_operand.vmem [shape: f32[2,1024], index: 0, kind: input, shape index: {}]
  %s1 = inlined_call_operand.vmem [shape: bf16[1024,512], index: 1, kind: input, shape index: {}]
  %s2 = inlined_call_operand.vmem [shape: f32[1,512], index: 2, kind: input, shape index: {}]
  %s3 = inlined_call_operand.vmem [shape: bf16[512,256], index: 3, kind: input, shape index: {}]
  %s4 = inlined_call_operand.vmem [shape: f32[1,256], index: 4, kind: input, shape index: {}]
  %s5 = inlined_call_operand.vmem [shape: f32[256,9], index: 5, kind: input, shape index: {}]
  %s6 = inlined_call_operand.vmem [shape: f32[1,9], index: 6, kind: input, shape index: {}]
  %s7 = inlined_call_operand.vmem [shape: f32[2,9], index: 7, kind: output, shape index: {}]
  %s8 = sld [smem:[#allocation0]]
  $region38: #{stn3d_forward.3} parent=0
    _
  %s10 = ssub.s32 1, %s8
  %s11 = scalar_select 0, %s10, %s8
  // Predicated region
  $region2: #{stn3d_forward.3} parent=0 // pred_check
    _
  $region3: #{stn3d_forward.3} parent=0 // pred_check_branch
    %13 = sbr.rel (0) target = $region5
  $region4: #{stn3d_forward.3} parent=0 // pred_region
    _
  $region5: #{stn3d_forward.3} parent=0 // pred_fallthru
    _
  // Predicated region
  $region6: #{stn3d_forward.3} parent=0 // pred_check
    _
  $region7: #{stn3d_forward.3} parent=0 // pred_check_branch
    %15 = sbr.rel (0) target = $region9
  $region8: #{stn3d_forward.3} parent=0 // pred_region
    _
  $region9: #{stn3d_forward.3} parent=0 // pred_fallthru
    _
  // Predicated region
  $region10: #{stn3d_forward.3} parent=0 // pred_check
    _
  $region11: #{stn3d_forward.3} parent=0 // pred_check_branch
    %17 = sbr.rel (0) target = $region13
  $region12: #{stn3d_forward.3} parent=0 // pred_region
    _
  $region13: #{stn3d_forward.3} parent=0 // pred_fallthru
    _
  // Predicated region
  $region14: #{stn3d_forward.3} parent=0 // pred_check
    _
  $region15: #{stn3d_forward.3} parent=0 // pred_check_branch
    %19 = sbr.rel (0) target = $region17
  $region16: #{stn3d_forward.3} parent=0 // pred_region
    _
  $region17: #{stn3d_forward.3} parent=0 // pred_fallthru
    _
  // Predicated region
  $region18: #{stn3d_forward.3} parent=0 // pred_check
    _
  $region19: #{stn3d_forward.3} parent=0 // pred_check_branch
    %21 = sbr.rel (0) target = $region21
  $region20: #{stn3d_forward.3} parent=0 // pred_region
    _
  $region21: #{stn3d_forward.3} parent=0 // pred_fallthru
    _
  // Predicated region
  $region22: #{stn3d_forward.3} parent=0 // pred_check
    _
  $region23: #{stn3d_forward.3} parent=0 // pred_check_branch
    %23 = sbr.rel (0) target = $region25
  $region24: #{stn3d_forward.3} parent=0 // pred_region
    _
  $region25: #{stn3d_forward.3} parent=0 // pred_fallthru
    _
  // Predicated region
  $region26: #{stn3d_forward.3} parent=0 // pred_check
    _
  $region27: #{stn3d_forward.3} parent=0 // pred_check_branch
    %25 = sbr.rel (0) target = $region29
  $region28: #{stn3d_forward.3} parent=0 // pred_region
    _
  $region29: #{stn3d_forward.3} parent=0 // pred_fallthru
    _
  %v26 = vld [vmem:[%s0] sm:$0xff]
  %v27 = vld [vmem:[%s0 + $0x8] sm:$0xff]
  %v30 = vcombine.high %v26, %v26
  %v32 = vunpack.c.l.s4 1983009808
  %v33 = vunpack.c.0.s8 %v32
  %v34 = vlaneseq
  %v35 = vshrl.u32 %v34, 7
  %v36 = vsub.s32 %v33, %v35
  %v37 = vrot.slane %v26, %v36
  %v39 = vunpack.c.l.s4 1983009808
  %v40 = vunpack.c.0.s8 %v39
  %v41 = vlaneseq
  %v42 = vshrl.u32 %v41, 7
  %v43 = vsub.s32 %v40, %v42
  %v44 = vrot.slane %v30, %v43
  %v45 = vcombine.high %v37, %v37
  %v46 = vcombine.high %v44, %v44
  %v47 = vcombine.high %v27, %v27
  %v49 = vunpack.c.l.s4 1983009808
  %v50 = vunpack.c.0.s8 %v49
  %v51 = vlaneseq
  %v52 = vshrl.u32 %v51, 7
  %v53 = vsub.s32 %v50, %v52
  %v54 = vrot.slane %v27, %v53
  %v56 = vunpack.c.l.s4 1983009808
  %v57 = vunpack.c.0.s8 %v56
  %v58 = vlaneseq
  %v59 = vshrl.u32 %v58, 7
  %v60 = vsub.s32 %v57, %v59
  %v61 = vrot.slane %v47, %v60
  %v62 = vcombine.high %v54, %v54
  %v63 = vcombine.high %v61, %v61
  %v72 = vpack.c.bf16 %v37, %v37
  %v73 = vpack.c.bf16 %v45, %v45
  %v74 = vpack.c.bf16 %v44, %v44
  %v75 = vpack.c.bf16 %v46, %v46
  %v76 = vpack.c.bf16 %v54, %v54
  %v77 = vpack.c.bf16 %v62, %v62
  %v78 = vpack.c.bf16 %v61, %v61
  %v79 = vpack.c.bf16 %v63, %v63
  %v80 = vld [vmem:[%s1] sm:$0xff]
  %v81 = vld [vmem:[%s1 + $0x8] sm:$0xff]
  %v82 = vld [vmem:[%s1 + $0x10] sm:$0xff]
  %v83 = vld [vmem:[%s1 + $0x18] sm:$0xff]
  %v84 = vld [vmem:[%s1 + $0x20] sm:$0xff]
  %v85 = vld [vmem:[%s1 + $0x28] sm:$0xff]
  %v86 = vld [vmem:[%s1 + $0x30] sm:$0xff]
  %v87 = vld [vmem:[%s1 + $0x38] sm:$0xff]
  %v88 = vld [vmem:[%s1 + $0x40] sm:$0xff]
  %v89 = vld [vmem:[%s1 + $0x48] sm:$0xff]
  %v90 = vld [vmem:[%s1 + $0x50] sm:$0xff]
  %v91 = vld [vmem:[%s1 + $0x58] sm:$0xff]
  %v92 = vld [vmem:[%s1 + $0x60] sm:$0xff]
  %v93 = vld [vmem:[%s1 + $0x68] sm:$0xff]
  %v94 = vld [vmem:[%s1 + $0x70] sm:$0xff]
  %v95 = vld [vmem:[%s1 + $0x78] sm:$0xff]
  %v96 = vld [vmem:[%s1 + $0x80] sm:$0xff]
  %v97 = vld [vmem:[%s1 + $0x88] sm:$0xff]
  %v98 = vld [vmem:[%s1 + $0x90] sm:$0xff]
  %v99 = vld [vmem:[%s1 + $0x98] sm:$0xff]
  %v100 = vld [vmem:[%s1 + $0xa0] sm:$0xff]
  %v101 = vld [vmem:[%s1 + $0xa8] sm:$0xff]
  %v102 = vld [vmem:[%s1 + $0xb0] sm:$0xff]
  %v103 = vld [vmem:[%s1 + $0xb8] sm:$0xff]
  %v104 = vld [vmem:[%s1 + $0xc0] sm:$0xff]
  %v105 = vld [vmem:[%s1 + $0xc8] sm:$0xff]
  %v106 = vld [vmem:[%s1 + $0xd0] sm:$0xff]
  %v107 = vld [vmem:[%s1 + $0xd8] sm:$0xff]
  %v108 = vld [vmem:[%s1 + $0xe0] sm:$0xff]
  %v109 = vld [vmem:[%s1 + $0xe8] sm:$0xff]
  %v110 = vld [vmem:[%s1 + $0xf0] sm:$0xff]
  %v111 = vld [vmem:[%s1 + $0xf8] sm:$0xff]
  %v112 = vld [vmem:[%s1 + $0x100] sm:$0xff]
  %v113 = vld [vmem:[%s1 + $0x108] sm:$0xff]
  %v114 = vld [vmem:[%s1 + $0x110] sm:$0xff]
  %v115 = vld [vmem:[%s1 + $0x118] sm:$0xff]
  %v116 = vld [vmem:[%s1 + $0x120] sm:$0xff]
  %v117 = vld [vmem:[%s1 + $0x128] sm:$0xff]
  %v118 = vld [vmem:[%s1 + $0x130] sm:$0xff]
  %v119 = vld [vmem:[%s1 + $0x138] sm:$0xff]
  %v120 = vld [vmem:[%s1 + $0x140] sm:$0xff]
  %v121 = vld [vmem:[%s1 + $0x148] sm:$0xff]
  %v122 = vld [vmem:[%s1 + $0x150] sm:$0xff]
  %v123 = vld [vmem:[%s1 + $0x158] sm:$0xff]
  %v124 = vld [vmem:[%s1 + $0x160] sm:$0xff]
  %v125 = vld [vmem:[%s1 + $0x168] sm:$0xff]
  %v126 = vld [vmem:[%s1 + $0x170] sm:$0xff]
  %v127 = vld [vmem:[%s1 + $0x178] sm:$0xff]
  %v128 = vld [vmem:[%s1 + $0x180] sm:$0xff]
  %v129 = vld [vmem:[%s1 + $0x188] sm:$0xff]
  %v130 = vld [vmem:[%s1 + $0x190] sm:$0xff]
  %v131 = vld [vmem:[%s1 + $0x198] sm:$0xff]
  %v132 = vld [vmem:[%s1 + $0x1a0] sm:$0xff]
  %v133 = vld [vmem:[%s1 + $0x1a8] sm:$0xff]
  %v134 = vld [vmem:[%s1 + $0x1b0] sm:$0xff]
  %v135 = vld [vmem:[%s1 + $0x1b8] sm:$0xff]
  %v136 = vld [vmem:[%s1 + $0x1c0] sm:$0xff]
  %v137 = vld [vmem:[%s1 + $0x1c8] sm:$0xff]
  %v138 = vld [vmem:[%s1 + $0x1d0] sm:$0xff]
  %v139 = vld [vmem:[%s1 + $0x1d8] sm:$0xff]
  %v140 = vld [vmem:[%s1 + $0x1e0] sm:$0xff]
  %v141 = vld [vmem:[%s1 + $0x1e8] sm:$0xff]
  %v142 = vld [vmem:[%s1 + $0x1f0] sm:$0xff]
  %v143 = vld [vmem:[%s1 + $0x1f8] sm:$0xff]
  %v144 = vld [vmem:[%s1 + $0x200] sm:$0xff]
  %v145 = vld [vmem:[%s1 + $0x208] sm:$0xff]
  %v146 = vld [vmem:[%s1 + $0x210] sm:$0xff]
  %v147 = vld [vmem:[%s1 + $0x218] sm:$0xff]
  %v148 = vld [vmem:[%s1 + $0x220] sm:$0xff]
  %v149 = vld [vmem:[%s1 + $0x228] sm:$0xff]
  %v150 = vld [vmem:[%s1 + $0x230] sm:$0xff]
  %v151 = vld [vmem:[%s1 + $0x238] sm:$0xff]
  %v152 = vld [vmem:[%s1 + $0x240] sm:$0xff]
  %v153 = vld [vmem:[%s1 + $0x248] sm:$0xff]
  %v154 = vld [vmem:[%s1 + $0x250] sm:$0xff]
  %v155 = vld [vmem:[%s1 + $0x258] sm:$0xff]
  %v156 = vld [vmem:[%s1 + $0x260] sm:$0xff]
  %v157 = vld [vmem:[%s1 + $0x268] sm:$0xff]
  %v158 = vld [vmem:[%s1 + $0x270] sm:$0xff]
  %v159 = vld [vmem:[%s1 + $0x278] sm:$0xff]
  %v160 = vld [vmem:[%s1 + $0x280] sm:$0xff]
  %v161 = vld [vmem:[%s1 + $0x288] sm:$0xff]
  %v162 = vld [vmem:[%s1 + $0x290] sm:$0xff]
  %v163 = vld [vmem:[%s1 + $0x298] sm:$0xff]
  %v164 = vld [vmem:[%s1 + $0x2a0] sm:$0xff]
  %v165 = vld [vmem:[%s1 + $0x2a8] sm:$0xff]
  %v166 = vld [vmem:[%s1 + $0x2b0] sm:$0xff]
  %v167 = vld [vmem:[%s1 + $0x2b8] sm:$0xff]
  %v168 = vld [vmem:[%s1 + $0x2c0] sm:$0xff]
  %v169 = vld [vmem:[%s1 + $0x2c8] sm:$0xff]
  %v170 = vld [vmem:[%s1 + $0x2d0] sm:$0xff]
  %v171 = vld [vmem:[%s1 + $0x2d8] sm:$0xff]
  %v172 = vld [vmem:[%s1 + $0x2e0] sm:$0xff]
  %v173 = vld [vmem:[%s1 + $0x2e8] sm:$0xff]
  %v174 = vld [vmem:[%s1 + $0x2f0] sm:$0xff]
  %v175 = vld [vmem:[%s1 + $0x2f8] sm:$0xff]
  %v176 = vld [vmem:[%s1 + $0x300] sm:$0xff]
  %v177 = vld [vmem:[%s1 + $0x308] sm:$0xff]
  %v178 = vld [vmem:[%s1 + $0x310] sm:$0xff]
  %v179 = vld [vmem:[%s1 + $0x318] sm:$0xff]
  %v180 = vld [vmem:[%s1 + $0x320] sm:$0xff]
  %v181 = vld [vmem:[%s1 + $0x328] sm:$0xff]
  %v182 = vld [vmem:[%s1 + $0x330] sm:$0xff]
  %v183 = vld [vmem:[%s1 + $0x338] sm:$0xff]
  %v184 = vld [vmem:[%s1 + $0x340] sm:$0xff]
  %v185 = vld [vmem:[%s1 + $0x348] sm:$0xff]
  %v186 = vld [vmem:[%s1 + $0x350] sm:$0xff]
  %v187 = vld [vmem:[%s1 + $0x358] sm:$0xff]
  %v188 = vld [vmem:[%s1 + $0x360] sm:$0xff]
  %v189 = vld [vmem:[%s1 + $0x368] sm:$0xff]
  %v190 = vld [vmem:[%s1 + $0x370] sm:$0xff]
  %v191 = vld [vmem:[%s1 + $0x378] sm:$0xff]
  %v192 = vld [vmem:[%s1 + $0x380] sm:$0xff]
  %v193 = vld [vmem:[%s1 + $0x388] sm:$0xff]
  %v194 = vld [vmem:[%s1 + $0x390] sm:$0xff]
  %v195 = vld [vmem:[%s1 + $0x398] sm:$0xff]
  %v196 = vld [vmem:[%s1 + $0x3a0] sm:$0xff]
  %v197 = vld [vmem:[%s1 + $0x3a8] sm:$0xff]
  %v198 = vld [vmem:[%s1 + $0x3b0] sm:$0xff]
  %v199 = vld [vmem:[%s1 + $0x3b8] sm:$0xff]
  %v200 = vld [vmem:[%s1 + $0x3c0] sm:$0xff]
  %v201 = vld [vmem:[%s1 + $0x3c8] sm:$0xff]
  %v202 = vld [vmem:[%s1 + $0x3d0] sm:$0xff]
  %v203 = vld [vmem:[%s1 + $0x3d8] sm:$0xff]
  %v204 = vld [vmem:[%s1 + $0x3e0] sm:$0xff]
  %v205 = vld [vmem:[%s1 + $0x3e8] sm:$0xff]
  %v206 = vld [vmem:[%s1 + $0x3f0] sm:$0xff]
  %v207 = vld [vmem:[%s1 + $0x3f8] sm:$0xff]
  %v208 = vld [vmem:[%s1 + $0x400] sm:$0xff]
  %v209 = vld [vmem:[%s1 + $0x408] sm:$0xff]
  %v210 = vld [vmem:[%s1 + $0x410] sm:$0xff]
  %v211 = vld [vmem:[%s1 + $0x418] sm:$0xff]
  %v212 = vld [vmem:[%s1 + $0x420] sm:$0xff]
  %v213 = vld [vmem:[%s1 + $0x428] sm:$0xff]
  %v214 = vld [vmem:[%s1 + $0x430] sm:$0xff]
  %v215 = vld [vmem:[%s1 + $0x438] sm:$0xff]
  %v216 = vld [vmem:[%s1 + $0x440] sm:$0xff]
  %v217 = vld [vmem:[%s1 + $0x448] sm:$0xff]
  %v218 = vld [vmem:[%s1 + $0x450] sm:$0xff]
  %v219 = vld [vmem:[%s1 + $0x458] sm:$0xff]
  %v220 = vld [vmem:[%s1 + $0x460] sm:$0xff]
  %v221 = vld [vmem:[%s1 + $0x468] sm:$0xff]
  %v222 = vld [vmem:[%s1 + $0x470] sm:$0xff]
  %v223 = vld [vmem:[%s1 + $0x478] sm:$0xff]
  %v224 = vld [vmem:[%s1 + $0x480] sm:$0xff]
  %v225 = vld [vmem:[%s1 + $0x488] sm:$0xff]
  %v226 = vld [vmem:[%s1 + $0x490] sm:$0xff]
  %v227 = vld [vmem:[%s1 + $0x498] sm:$0xff]
  %v228 = vld [vmem:[%s1 + $0x4a0] sm:$0xff]
  %v229 = vld [vmem:[%s1 + $0x4a8] sm:$0xff]
  %v230 = vld [vmem:[%s1 + $0x4b0] sm:$0xff]
  %v231 = vld [vmem:[%s1 + $0x4b8] sm:$0xff]
  %v232 = vld [vmem:[%s1 + $0x4c0] sm:$0xff]
  %v233 = vld [vmem:[%s1 + $0x4c8] sm:$0xff]
  %v234 = vld [vmem:[%s1 + $0x4d0] sm:$0xff]
  %v235 = vld [vmem:[%s1 + $0x4d8] sm:$0xff]
  %v236 = vld [vmem:[%s1 + $0x4e0] sm:$0xff]
  %v237 = vld [vmem:[%s1 + $0x4e8] sm:$0xff]
  %v238 = vld [vmem:[%s1 + $0x4f0] sm:$0xff]
  %v239 = vld [vmem:[%s1 + $0x4f8] sm:$0xff]
  %v240 = vld [vmem:[%s1 + $0x500] sm:$0xff]
  %v241 = vld [vmem:[%s1 + $0x508] sm:$0xff]
  %v242 = vld [vmem:[%s1 + $0x510] sm:$0xff]
  %v243 = vld [vmem:[%s1 + $0x518] sm:$0xff]
  %v244 = vld [vmem:[%s1 + $0x520] sm:$0xff]
  %v245 = vld [vmem:[%s1 + $0x528] sm:$0xff]
  %v246 = vld [vmem:[%s1 + $0x530] sm:$0xff]
  %v247 = vld [vmem:[%s1 + $0x538] sm:$0xff]
  %v248 = vld [vmem:[%s1 + $0x540] sm:$0xff]
  %v249 = vld [vmem:[%s1 + $0x548] sm:$0xff]
  %v250 = vld [vmem:[%s1 + $0x550] sm:$0xff]
  %v251 = vld [vmem:[%s1 + $0x558] sm:$0xff]
  %v252 = vld [vmem:[%s1 + $0x560] sm:$0xff]
  %v253 = vld [vmem:[%s1 + $0x568] sm:$0xff]
  %v254 = vld [vmem:[%s1 + $0x570] sm:$0xff]
  %v255 = vld [vmem:[%s1 + $0x578] sm:$0xff]
  %v256 = vld [vmem:[%s1 + $0x580] sm:$0xff]
  %v257 = vld [vmem:[%s1 + $0x588] sm:$0xff]
  %v258 = vld [vmem:[%s1 + $0x590] sm:$0xff]
  %v259 = vld [vmem:[%s1 + $0x598] sm:$0xff]
  %v260 = vld [vmem:[%s1 + $0x5a0] sm:$0xff]
  %v261 = vld [vmem:[%s1 + $0x5a8] sm:$0xff]
  %v262 = vld [vmem:[%s1 + $0x5b0] sm:$0xff]
  %v263 = vld [vmem:[%s1 + $0x5b8] sm:$0xff]
  %v264 = vld [vmem:[%s1 + $0x5c0] sm:$0xff]
  %v265 = vld [vmem:[%s1 + $0x5c8] sm:$0xff]
  %v266 = vld [vmem:[%s1 + $0x5d0] sm:$0xff]
  %v267 = vld [vmem:[%s1 + $0x5d8] sm:$0xff]
  %v268 = vld [vmem:[%s1 + $0x5e0] sm:$0xff]
  %v269 = vld [vmem:[%s1 + $0x5e8] sm:$0xff]
  %v270 = vld [vmem:[%s1 + $0x5f0] sm:$0xff]
  %v271 = vld [vmem:[%s1 + $0x5f8] sm:$0xff]
  %v272 = vld [vmem:[%s1 + $0x600] sm:$0xff]
  %v273 = vld [vmem:[%s1 + $0x608] sm:$0xff]
  %v274 = vld [vmem:[%s1 + $0x610] sm:$0xff]
  %v275 = vld [vmem:[%s1 + $0x618] sm:$0xff]
  %v276 = vld [vmem:[%s1 + $0x620] sm:$0xff]
  %v277 = vld [vmem:[%s1 + $0x628] sm:$0xff]
  %v278 = vld [vmem:[%s1 + $0x630] sm:$0xff]
  %v279 = vld [vmem:[%s1 + $0x638] sm:$0xff]
  %v280 = vld [vmem:[%s1 + $0x640] sm:$0xff]
  %v281 = vld [vmem:[%s1 + $0x648] sm:$0xff]
  %v282 = vld [vmem:[%s1 + $0x650] sm:$0xff]
  %v283 = vld [vmem:[%s1 + $0x658] sm:$0xff]
  %v284 = vld [vmem:[%s1 + $0x660] sm:$0xff]
  %v285 = vld [vmem:[%s1 + $0x668] sm:$0xff]
  %v286 = vld [vmem:[%s1 + $0x670] sm:$0xff]
  %v287 = vld [vmem:[%s1 + $0x678] sm:$0xff]
  %v288 = vld [vmem:[%s1 + $0x680] sm:$0xff]
  %v289 = vld [vmem:[%s1 + $0x688] sm:$0xff]
  %v290 = vld [vmem:[%s1 + $0x690] sm:$0xff]
  %v291 = vld [vmem:[%s1 + $0x698] sm:$0xff]
  %v292 = vld [vmem:[%s1 + $0x6a0] sm:$0xff]
  %v293 = vld [vmem:[%s1 + $0x6a8] sm:$0xff]
  %v294 = vld [vmem:[%s1 + $0x6b0] sm:$0xff]
  %v295 = vld [vmem:[%s1 + $0x6b8] sm:$0xff]
  %v296 = vld [vmem:[%s1 + $0x6c0] sm:$0xff]
  %v297 = vld [vmem:[%s1 + $0x6c8] sm:$0xff]
  %v298 = vld [vmem:[%s1 + $0x6d0] sm:$0xff]
  %v299 = vld [vmem:[%s1 + $0x6d8] sm:$0xff]
  %v300 = vld [vmem:[%s1 + $0x6e0] sm:$0xff]
  %v301 = vld [vmem:[%s1 + $0x6e8] sm:$0xff]
  %v302 = vld [vmem:[%s1 + $0x6f0] sm:$0xff]
  %v303 = vld [vmem:[%s1 + $0x6f8] sm:$0xff]
  %v304 = vld [vmem:[%s1 + $0x700] sm:$0xff]
  %v305 = vld [vmem:[%s1 + $0x708] sm:$0xff]
  %v306 = vld [vmem:[%s1 + $0x710] sm:$0xff]
  %v307 = vld [vmem:[%s1 + $0x718] sm:$0xff]
  %v308 = vld [vmem:[%s1 + $0x720] sm:$0xff]
  %v309 = vld [vmem:[%s1 + $0x728] sm:$0xff]
  %v310 = vld [vmem:[%s1 + $0x730] sm:$0xff]
  %v311 = vld [vmem:[%s1 + $0x738] sm:$0xff]
  %v312 = vld [vmem:[%s1 + $0x740] sm:$0xff]
  %v313 = vld [vmem:[%s1 + $0x748] sm:$0xff]
  %v314 = vld [vmem:[%s1 + $0x750] sm:$0xff]
  %v315 = vld [vmem:[%s1 + $0x758] sm:$0xff]
  %v316 = vld [vmem:[%s1 + $0x760] sm:$0xff]
  %v317 = vld [vmem:[%s1 + $0x768] sm:$0xff]
  %v318 = vld [vmem:[%s1 + $0x770] sm:$0xff]
  %v319 = vld [vmem:[%s1 + $0x778] sm:$0xff]
  %v320 = vld [vmem:[%s1 + $0x780] sm:$0xff]
  %v321 = vld [vmem:[%s1 + $0x788] sm:$0xff]
  %v322 = vld [vmem:[%s1 + $0x790] sm:$0xff]
  %v323 = vld [vmem:[%s1 + $0x798] sm:$0xff]
  %v324 = vld [vmem:[%s1 + $0x7a0] sm:$0xff]
  %v325 = vld [vmem:[%s1 + $0x7a8] sm:$0xff]
  %v326 = vld [vmem:[%s1 + $0x7b0] sm:$0xff]
  %v327 = vld [vmem:[%s1 + $0x7b8] sm:$0xff]
  %v328 = vld [vmem:[%s1 + $0x7c0] sm:$0xff]
  %v329 = vld [vmem:[%s1 + $0x7c8] sm:$0xff]
  %v330 = vld [vmem:[%s1 + $0x7d0] sm:$0xff]
  %v331 = vld [vmem:[%s1 + $0x7d8] sm:$0xff]
  %v332 = vld [vmem:[%s1 + $0x7e0] sm:$0xff]
  %v333 = vld [vmem:[%s1 + $0x7e8] sm:$0xff]
  %v334 = vld [vmem:[%s1 + $0x7f0] sm:$0xff]
  %v335 = vld [vmem:[%s1 + $0x7f8] sm:$0xff]
  %v336 = vld [vmem:[%s2] sm:$0xf]
  %v338 = vlaneseq
  %v339 = vshrl.u32 %v338, 7
  %v340 = vsub.s32 0, %v339
  %v341 = vrot.slane %v336, %v340
  %v342 = vlaneseq
  %v343 = vshrl.u32 %v342, 7
  %v344 = vsub.s32 1, %v343
  %v345 = vrot.slane %v336, %v344
  %v346 = vlaneseq
  %v347 = vshrl.u32 %v346, 7
  %v348 = vsub.s32 2, %v347
  %v349 = vrot.slane %v336, %v348
  %v350 = vlaneseq
  %v351 = vshrl.u32 %v350, 7
  %v352 = vsub.s32 3, %v351
  %v353 = vrot.slane %v336, %v352
  %v614 = vunpack.c.l.b16 %v80
  %v615 = vunpack.c.h.b16 %v80
  %v616 = vunpack.c.l.b16 %v81
  %v617 = vunpack.c.h.b16 %v81
  %v618 = vunpack.c.l.b16 %v82
  %v619 = vunpack.c.h.b16 %v82
  %v620 = vunpack.c.l.b16 %v83
  %v621 = vunpack.c.h.b16 %v83
  %v622 = vunpack.c.l.b16 %v84
  %v623 = vunpack.c.h.b16 %v84
  %v624 = vunpack.c.l.b16 %v85
  %v625 = vunpack.c.h.b16 %v85
  %v626 = vunpack.c.l.b16 %v86
  %v627 = vunpack.c.h.b16 %v86
  %v628 = vunpack.c.l.b16 %v87
  %v629 = vunpack.c.h.b16 %v87
  %v630 = vunpack.c.l.b16 %v88
  %v631 = vunpack.c.h.b16 %v88
  %v632 = vunpack.c.l.b16 %v89
  %v633 = vunpack.c.h.b16 %v89
  %v634 = vunpack.c.l.b16 %v90
  %v635 = vunpack.c.h.b16 %v90
  %v636 = vunpack.c.l.b16 %v91
  %v637 = vunpack.c.h.b16 %v91
  %v638 = vunpack.c.l.b16 %v92
  %v639 = vunpack.c.h.b16 %v92
  %v640 = vunpack.c.l.b16 %v93
  %v641 = vunpack.c.h.b16 %v93
  %v642 = vunpack.c.l.b16 %v94
  %v643 = vunpack.c.h.b16 %v94
  %v644 = vunpack.c.l.b16 %v95
  %v645 = vunpack.c.h.b16 %v95
  %v646 = vunpack.c.l.b16 %v96
  %v647 = vunpack.c.h.b16 %v96
  %v648 = vunpack.c.l.b16 %v97
  %v649 = vunpack.c.h.b16 %v97
  %v650 = vunpack.c.l.b16 %v98
  %v651 = vunpack.c.h.b16 %v98
  %v652 = vunpack.c.l.b16 %v99
  %v653 = vunpack.c.h.b16 %v99
  %v654 = vunpack.c.l.b16 %v100
  %v655 = vunpack.c.h.b16 %v100
  %v656 = vunpack.c.l.b16 %v101
  %v657 = vunpack.c.h.b16 %v101
  %v658 = vunpack.c.l.b16 %v102
  %v659 = vunpack.c.h.b16 %v102
  %v660 = vunpack.c.l.b16 %v103
  %v661 = vunpack.c.h.b16 %v103
  %v662 = vunpack.c.l.b16 %v104
  %v663 = vunpack.c.h.b16 %v104
  %v664 = vunpack.c.l.b16 %v105
  %v665 = vunpack.c.h.b16 %v105
  %v666 = vunpack.c.l.b16 %v106
  %v667 = vunpack.c.h.b16 %v106
  %v668 = vunpack.c.l.b16 %v107
  %v669 = vunpack.c.h.b16 %v107
  %v670 = vunpack.c.l.b16 %v108
  %v671 = vunpack.c.h.b16 %v108
  %v672 = vunpack.c.l.b16 %v109
  %v673 = vunpack.c.h.b16 %v109
  %v674 = vunpack.c.l.b16 %v110
  %v675 = vunpack.c.h.b16 %v110
  %v676 = vunpack.c.l.b16 %v111
  %v677 = vunpack.c.h.b16 %v111
  %v678 = vunpack.c.l.b16 %v112
  %v679 = vunpack.c.h.b16 %v112
  %v680 = vunpack.c.l.b16 %v113
  %v681 = vunpack.c.h.b16 %v113
  %v682 = vunpack.c.l.b16 %v114
  %v683 = vunpack.c.h.b16 %v114
  %v684 = vunpack.c.l.b16 %v115
  %v685 = vunpack.c.h.b16 %v115
  %v686 = vunpack.c.l.b16 %v116
  %v687 = vunpack.c.h.b16 %v116
  %v688 = vunpack.c.l.b16 %v117
  %v689 = vunpack.c.h.b16 %v117
  %v690 = vunpack.c.l.b16 %v118
  %v691 = vunpack.c.h.b16 %v118
  %v692 = vunpack.c.l.b16 %v119
  %v693 = vunpack.c.h.b16 %v119
  %v694 = vunpack.c.l.b16 %v120
  %v695 = vunpack.c.h.b16 %v120
  %v696 = vunpack.c.l.b16 %v121
  %v697 = vunpack.c.h.b16 %v121
  %v698 = vunpack.c.l.b16 %v122
  %v699 = vunpack.c.h.b16 %v122
  %v700 = vunpack.c.l.b16 %v123
  %v701 = vunpack.c.h.b16 %v123
  %v702 = vunpack.c.l.b16 %v124
  %v703 = vunpack.c.h.b16 %v124
  %v704 = vunpack.c.l.b16 %v125
  %v705 = vunpack.c.h.b16 %v125
  %v706 = vunpack.c.l.b16 %v126
  %v707 = vunpack.c.h.b16 %v126
  %v708 = vunpack.c.l.b16 %v127
  %v709 = vunpack.c.h.b16 %v127
  %v710 = vunpack.c.l.b16 %v128
  %v711 = vunpack.c.h.b16 %v128
  %v712 = vunpack.c.l.b16 %v129
  %v713 = vunpack.c.h.b16 %v129
  %v714 = vunpack.c.l.b16 %v130
  %v715 = vunpack.c.h.b16 %v130
  %v716 = vunpack.c.l.b16 %v131
  %v717 = vunpack.c.h.b16 %v131
  %v718 = vunpack.c.l.b16 %v132
  %v719 = vunpack.c.h.b16 %v132
  %v720 = vunpack.c.l.b16 %v133
  %v721 = vunpack.c.h.b16 %v133
  %v722 = vunpack.c.l.b16 %v134
  %v723 = vunpack.c.h.b16 %v134
  %v724 = vunpack.c.l.b16 %v135
  %v725 = vunpack.c.h.b16 %v135
  %v726 = vunpack.c.l.b16 %v136
  %v727 = vunpack.c.h.b16 %v136
  %v728 = vunpack.c.l.b16 %v137
  %v729 = vunpack.c.h.b16 %v137
  %v730 = vunpack.c.l.b16 %v138
  %v731 = vunpack.c.h.b16 %v138
  %v732 = vunpack.c.l.b16 %v139
  %v733 = vunpack.c.h.b16 %v139
  %v734 = vunpack.c.l.b16 %v140
  %v735 = vunpack.c.h.b16 %v140
  %v736 = vunpack.c.l.b16 %v141
  %v737 = vunpack.c.h.b16 %v141
  %v738 = vunpack.c.l.b16 %v142
  %v739 = vunpack.c.h.b16 %v142
  %v740 = vunpack.c.l.b16 %v143
  %v741 = vunpack.c.h.b16 %v143
  %v742 = vunpack.c.l.b16 %v144
  %v743 = vunpack.c.h.b16 %v144
  %v744 = vunpack.c.l.b16 %v145
  %v745 = vunpack.c.h.b16 %v145
  %v746 = vunpack.c.l.b16 %v146
  %v747 = vunpack.c.h.b16 %v146
  %v748 = vunpack.c.l.b16 %v147
  %v749 = vunpack.c.h.b16 %v147
  %v750 = vunpack.c.l.b16 %v148
  %v751 = vunpack.c.h.b16 %v148
  %v752 = vunpack.c.l.b16 %v149
  %v753 = vunpack.c.h.b16 %v149
  %v754 = vunpack.c.l.b16 %v150
  %v755 = vunpack.c.h.b16 %v150
  %v756 = vunpack.c.l.b16 %v151
  %v757 = vunpack.c.h.b16 %v151
  %v758 = vunpack.c.l.b16 %v152
  %v759 = vunpack.c.h.b16 %v152
  %v760 = vunpack.c.l.b16 %v153
  %v761 = vunpack.c.h.b16 %v153
  %v762 = vunpack.c.l.b16 %v154
  %v763 = vunpack.c.h.b16 %v154
  %v764 = vunpack.c.l.b16 %v155
  %v765 = vunpack.c.h.b16 %v155
  %v766 = vunpack.c.l.b16 %v156
  %v767 = vunpack.c.h.b16 %v156
  %v768 = vunpack.c.l.b16 %v157
  %v769 = vunpack.c.h.b16 %v157
  %v770 = vunpack.c.l.b16 %v158
  %v771 = vunpack.c.h.b16 %v158
  %v772 = vunpack.c.l.b16 %v159
  %v773 = vunpack.c.h.b16 %v159
  %v774 = vunpack.c.l.b16 %v160
  %v775 = vunpack.c.h.b16 %v160
  %v776 = vunpack.c.l.b16 %v161
  %v777 = vunpack.c.h.b16 %v161
  %v778 = vunpack.c.l.b16 %v162
  %v779 = vunpack.c.h.b16 %v162
  %v780 = vunpack.c.l.b16 %v163
  %v781 = vunpack.c.h.b16 %v163
  %v782 = vunpack.c.l.b16 %v164
  %v783 = vunpack.c.h.b16 %v164
  %v784 = vunpack.c.l.b16 %v165
  %v785 = vunpack.c.h.b16 %v165
  %v786 = vunpack.c.l.b16 %v166
  %v787 = vunpack.c.h.b16 %v166
  %v788 = vunpack.c.l.b16 %v167
  %v789 = vunpack.c.h.b16 %v167
  %v790 = vunpack.c.l.b16 %v168
  %v791 = vunpack.c.h.b16 %v168
  %v792 = vunpack.c.l.b16 %v169
  %v793 = vunpack.c.h.b16 %v169
  %v794 = vunpack.c.l.b16 %v170
  %v795 = vunpack.c.h.b16 %v170
  %v796 = vunpack.c.l.b16 %v171
  %v797 = vunpack.c.h.b16 %v171
  %v798 = vunpack.c.l.b16 %v172
  %v799 = vunpack.c.h.b16 %v172
  %v800 = vunpack.c.l.b16 %v173
  %v801 = vunpack.c.h.b16 %v173
  %v802 = vunpack.c.l.b16 %v174
  %v803 = vunpack.c.h.b16 %v174
  %v804 = vunpack.c.l.b16 %v175
  %v805 = vunpack.c.h.b16 %v175
  %v806 = vunpack.c.l.b16 %v176
  %v807 = vunpack.c.h.b16 %v176
  %v808 = vunpack.c.l.b16 %v177
  %v809 = vunpack.c.h.b16 %v177
  %v810 = vunpack.c.l.b16 %v178
  %v811 = vunpack.c.h.b16 %v178
  %v812 = vunpack.c.l.b16 %v179
  %v813 = vunpack.c.h.b16 %v179
  %v814 = vunpack.c.l.b16 %v180
  %v815 = vunpack.c.h.b16 %v180
  %v816 = vunpack.c.l.b16 %v181
  %v817 = vunpack.c.h.b16 %v181
  %v818 = vunpack.c.l.b16 %v182
  %v819 = vunpack.c.h.b16 %v182
  %v820 = vunpack.c.l.b16 %v183
  %v821 = vunpack.c.h.b16 %v183
  %v822 = vunpack.c.l.b16 %v184
  %v823 = vunpack.c.h.b16 %v184
  %v824 = vunpack.c.l.b16 %v185
  %v825 = vunpack.c.h.b16 %v185
  %v826 = vunpack.c.l.b16 %v186
  %v827 = vunpack.c.h.b16 %v186
  %v828 = vunpack.c.l.b16 %v187
  %v829 = vunpack.c.h.b16 %v187
  %v830 = vunpack.c.l.b16 %v188
  %v831 = vunpack.c.h.b16 %v188
  %v832 = vunpack.c.l.b16 %v189
  %v833 = vunpack.c.h.b16 %v189
  %v834 = vunpack.c.l.b16 %v190
  %v835 = vunpack.c.h.b16 %v190
  %v836 = vunpack.c.l.b16 %v191
  %v837 = vunpack.c.h.b16 %v191
  %v838 = vunpack.c.l.b16 %v192
  %v839 = vunpack.c.h.b16 %v192
  %v840 = vunpack.c.l.b16 %v193
  %v841 = vunpack.c.h.b16 %v193
  %v842 = vunpack.c.l.b16 %v194
  %v843 = vunpack.c.h.b16 %v194
  %v844 = vunpack.c.l.b16 %v195
  %v845 = vunpack.c.h.b16 %v195
  %v846 = vunpack.c.l.b16 %v196
  %v847 = vunpack.c.h.b16 %v196
  %v848 = vunpack.c.l.b16 %v197
  %v849 = vunpack.c.h.b16 %v197
  %v850 = vunpack.c.l.b16 %v198
  %v851 = vunpack.c.h.b16 %v198
  %v852 = vunpack.c.l.b16 %v199
  %v853 = vunpack.c.h.b16 %v199
  %v854 = vunpack.c.l.b16 %v200
  %v855 = vunpack.c.h.b16 %v200
  %v856 = vunpack.c.l.b16 %v201
  %v857 = vunpack.c.h.b16 %v201
  %v858 = vunpack.c.l.b16 %v202
  %v859 = vunpack.c.h.b16 %v202
  %v860 = vunpack.c.l.b16 %v203
  %v861 = vunpack.c.h.b16 %v203
  %v862 = vunpack.c.l.b16 %v204
  %v863 = vunpack.c.h.b16 %v204
  %v864 = vunpack.c.l.b16 %v205
  %v865 = vunpack.c.h.b16 %v205
  %v866 = vunpack.c.l.b16 %v206
  %v867 = vunpack.c.h.b16 %v206
  %v868 = vunpack.c.l.b16 %v207
  %v869 = vunpack.c.h.b16 %v207
  %v870 = vunpack.c.l.b16 %v208
  %v871 = vunpack.c.h.b16 %v208
  %v872 = vunpack.c.l.b16 %v209
  %v873 = vunpack.c.h.b16 %v209
  %v874 = vunpack.c.l.b16 %v210
  %v875 = vunpack.c.h.b16 %v210
  %v876 = vunpack.c.l.b16 %v211
  %v877 = vunpack.c.h.b16 %v211
  %v878 = vunpack.c.l.b16 %v212
  %v879 = vunpack.c.h.b16 %v212
  %v880 = vunpack.c.l.b16 %v213
  %v881 = vunpack.c.h.b16 %v213
  %v882 = vunpack.c.l.b16 %v214
  %v883 = vunpack.c.h.b16 %v214
  %v884 = vunpack.c.l.b16 %v215
  %v885 = vunpack.c.h.b16 %v215
  %v886 = vunpack.c.l.b16 %v216
  %v887 = vunpack.c.h.b16 %v216
  %v888 = vunpack.c.l.b16 %v217
  %v889 = vunpack.c.h.b16 %v217
  %v890 = vunpack.c.l.b16 %v218
  %v891 = vunpack.c.h.b16 %v218
  %v892 = vunpack.c.l.b16 %v219
  %v893 = vunpack.c.h.b16 %v219
  %v894 = vunpack.c.l.b16 %v220
  %v895 = vunpack.c.h.b16 %v220
  %v896 = vunpack.c.l.b16 %v221
  %v897 = vunpack.c.h.b16 %v221
  %v898 = vunpack.c.l.b16 %v222
  %v899 = vunpack.c.h.b16 %v222
  %v900 = vunpack.c.l.b16 %v223
  %v901 = vunpack.c.h.b16 %v223
  %v902 = vunpack.c.l.b16 %v224
  %v903 = vunpack.c.h.b16 %v224
  %v904 = vunpack.c.l.b16 %v225
  %v905 = vunpack.c.h.b16 %v225
  %v906 = vunpack.c.l.b16 %v226
  %v907 = vunpack.c.h.b16 %v226
  %v908 = vunpack.c.l.b16 %v227
  %v909 = vunpack.c.h.b16 %v227
  %v910 = vunpack.c.l.b16 %v228
  %v911 = vunpack.c.h.b16 %v228
  %v912 = vunpack.c.l.b16 %v229
  %v913 = vunpack.c.h.b16 %v229
  %v914 = vunpack.c.l.b16 %v230
  %v915 = vunpack.c.h.b16 %v230
  %v916 = vunpack.c.l.b16 %v231
  %v917 = vunpack.c.h.b16 %v231
  %v918 = vunpack.c.l.b16 %v232
  %v919 = vunpack.c.h.b16 %v232
  %v920 = vunpack.c.l.b16 %v233
  %v921 = vunpack.c.h.b16 %v233
  %v922 = vunpack.c.l.b16 %v234
  %v923 = vunpack.c.h.b16 %v234
  %v924 = vunpack.c.l.b16 %v235
  %v925 = vunpack.c.h.b16 %v235
  %v926 = vunpack.c.l.b16 %v236
  %v927 = vunpack.c.h.b16 %v236
  %v928 = vunpack.c.l.b16 %v237
  %v929 = vunpack.c.h.b16 %v237
  %v930 = vunpack.c.l.b16 %v238
  %v931 = vunpack.c.h.b16 %v238
  %v932 = vunpack.c.l.b16 %v239
  %v933 = vunpack.c.h.b16 %v239
  %v934 = vunpack.c.l.b16 %v240
  %v935 = vunpack.c.h.b16 %v240
  %v936 = vunpack.c.l.b16 %v241
  %v937 = vunpack.c.h.b16 %v241
  %v938 = vunpack.c.l.b16 %v242
  %v939 = vunpack.c.h.b16 %v242
  %v940 = vunpack.c.l.b16 %v243
  %v941 = vunpack.c.h.b16 %v243
  %v942 = vunpack.c.l.b16 %v244
  %v943 = vunpack.c.h.b16 %v244
  %v944 = vunpack.c.l.b16 %v245
  %v945 = vunpack.c.h.b16 %v245
  %v946 = vunpack.c.l.b16 %v246
  %v947 = vunpack.c.h.b16 %v246
  %v948 = vunpack.c.l.b16 %v247
  %v949 = vunpack.c.h.b16 %v247
  %v950 = vunpack.c.l.b16 %v248
  %v951 = vunpack.c.h.b16 %v248
  %v952 = vunpack.c.l.b16 %v249
  %v953 = vunpack.c.h.b16 %v249
  %v954 = vunpack.c.l.b16 %v250
  %v955 = vunpack.c.h.b16 %v250
  %v956 = vunpack.c.l.b16 %v251
  %v957 = vunpack.c.h.b16 %v251
  %v958 = vunpack.c.l.b16 %v252
  %v959 = vunpack.c.h.b16 %v252
  %v960 = vunpack.c.l.b16 %v253
  %v961 = vunpack.c.h.b16 %v253
  %v962 = vunpack.c.l.b16 %v254
  %v963 = vunpack.c.h.b16 %v254
  %v964 = vunpack.c.l.b16 %v255
  %v965 = vunpack.c.h.b16 %v255
  %v966 = vunpack.c.l.b16 %v256
  %v967 = vunpack.c.h.b16 %v256
  %v968 = vunpack.c.l.b16 %v257
  %v969 = vunpack.c.h.b16 %v257
  %v970 = vunpack.c.l.b16 %v258
  %v971 = vunpack.c.h.b16 %v258
  %v972 = vunpack.c.l.b16 %v259
  %v973 = vunpack.c.h.b16 %v259
  %v974 = vunpack.c.l.b16 %v260
  %v975 = vunpack.c.h.b16 %v260
  %v976 = vunpack.c.l.b16 %v261
  %v977 = vunpack.c.h.b16 %v261
  %v978 = vunpack.c.l.b16 %v262
  %v979 = vunpack.c.h.b16 %v262
  %v980 = vunpack.c.l.b16 %v263
  %v981 = vunpack.c.h.b16 %v263
  %v982 = vunpack.c.l.b16 %v264
  %v983 = vunpack.c.h.b16 %v264
  %v984 = vunpack.c.l.b16 %v265
  %v985 = vunpack.c.h.b16 %v265
  %v986 = vunpack.c.l.b16 %v266
  %v987 = vunpack.c.h.b16 %v266
  %v988 = vunpack.c.l.b16 %v267
  %v989 = vunpack.c.h.b16 %v267
  %v990 = vunpack.c.l.b16 %v268
  %v991 = vunpack.c.h.b16 %v268
  %v992 = vunpack.c.l.b16 %v269
  %v993 = vunpack.c.h.b16 %v269
  %v994 = vunpack.c.l.b16 %v270
  %v995 = vunpack.c.h.b16 %v270
  %v996 = vunpack.c.l.b16 %v271
  %v997 = vunpack.c.h.b16 %v271
  %v998 = vunpack.c.l.b16 %v272
  %v999 = vunpack.c.h.b16 %v272
  %v1000 = vunpack.c.l.b16 %v273
  %v1001 = vunpack.c.h.b16 %v273
  %v1002 = vunpack.c.l.b16 %v274
  %v1003 = vunpack.c.h.b16 %v274
  %v1004 = vunpack.c.l.b16 %v275
  %v1005 = vunpack.c.h.b16 %v275
  %v1006 = vunpack.c.l.b16 %v276
  %v1007 = vunpack.c.h.b16 %v276
  %v1008 = vunpack.c.l.b16 %v277
  %v1009 = vunpack.c.h.b16 %v277
  %v1010 = vunpack.c.l.b16 %v278
  %v1011 = vunpack.c.h.b16 %v278
  %v1012 = vunpack.c.l.b16 %v279
  %v1013 = vunpack.c.h.b16 %v279
  %v1014 = vunpack.c.l.b16 %v280
  %v1015 = vunpack.c.h.b16 %v280
  %v1016 = vunpack.c.l.b16 %v281
  %v1017 = vunpack.c.h.b16 %v281
  %v1018 = vunpack.c.l.b16 %v282
  %v1019 = vunpack.c.h.b16 %v282
  %v1020 = vunpack.c.l.b16 %v283
  %v1021 = vunpack.c.h.b16 %v283
  %v1022 = vunpack.c.l.b16 %v284
  %v1023 = vunpack.c.h.b16 %v284
  %v1024 = vunpack.c.l.b16 %v285
  %v1025 = vunpack.c.h.b16 %v285
  %v1026 = vunpack.c.l.b16 %v286
  %v1027 = vunpack.c.h.b16 %v286
  %v1028 = vunpack.c.l.b16 %v287
  %v1029 = vunpack.c.h.b16 %v287
  %v1030 = vunpack.c.l.b16 %v288
  %v1031 = vunpack.c.h.b16 %v288
  %v1032 = vunpack.c.l.b16 %v289
  %v1033 = vunpack.c.h.b16 %v289
  %v1034 = vunpack.c.l.b16 %v290
  %v1035 = vunpack.c.h.b16 %v290
  %v1036 = vunpack.c.l.b16 %v291
  %v1037 = vunpack.c.h.b16 %v291
  %v1038 = vunpack.c.l.b16 %v292
  %v1039 = vunpack.c.h.b16 %v292
  %v1040 = vunpack.c.l.b16 %v293
  %v1041 = vunpack.c.h.b16 %v293
  %v1042 = vunpack.c.l.b16 %v294
  %v1043 = vunpack.c.h.b16 %v294
  %v1044 = vunpack.c.l.b16 %v295
  %v1045 = vunpack.c.h.b16 %v295
  %v1046 = vunpack.c.l.b16 %v296
  %v1047 = vunpack.c.h.b16 %v296
  %v1048 = vunpack.c.l.b16 %v297
  %v1049 = vunpack.c.h.b16 %v297
  %v1050 = vunpack.c.l.b16 %v298
  %v1051 = vunpack.c.h.b16 %v298
  %v1052 = vunpack.c.l.b16 %v299
  %v1053 = vunpack.c.h.b16 %v299
  %v1054 = vunpack.c.l.b16 %v300
  %v1055 = vunpack.c.h.b16 %v300
  %v1056 = vunpack.c.l.b16 %v301
  %v1057 = vunpack.c.h.b16 %v301
  %v1058 = vunpack.c.l.b16 %v302
  %v1059 = vunpack.c.h.b16 %v302
  %v1060 = vunpack.c.l.b16 %v303
  %v1061 = vunpack.c.h.b16 %v303
  %v1062 = vunpack.c.l.b16 %v304
  %v1063 = vunpack.c.h.b16 %v304
  %v1064 = vunpack.c.l.b16 %v305
  %v1065 = vunpack.c.h.b16 %v305
  %v1066 = vunpack.c.l.b16 %v306
  %v1067 = vunpack.c.h.b16 %v306
  %v1068 = vunpack.c.l.b16 %v307
  %v1069 = vunpack.c.h.b16 %v307
  %v1070 = vunpack.c.l.b16 %v308
  %v1071 = vunpack.c.h.b16 %v308
  %v1072 = vunpack.c.l.b16 %v309
  %v1073 = vunpack.c.h.b16 %v309
  %v1074 = vunpack.c.l.b16 %v310
  %v1075 = vunpack.c.h.b16 %v310
  %v1076 = vunpack.c.l.b16 %v311
  %v1077 = vunpack.c.h.b16 %v311
  %v1078 = vunpack.c.l.b16 %v312
  %v1079 = vunpack.c.h.b16 %v312
  %v1080 = vunpack.c.l.b16 %v313
  %v1081 = vunpack.c.h.b16 %v313
  %v1082 = vunpack.c.l.b16 %v314
  %v1083 = vunpack.c.h.b16 %v314
  %v1084 = vunpack.c.l.b16 %v315
  %v1085 = vunpack.c.h.b16 %v315
  %v1086 = vunpack.c.l.b16 %v316
  %v1087 = vunpack.c.h.b16 %v316
  %v1088 = vunpack.c.l.b16 %v317
  %v1089 = vunpack.c.h.b16 %v317
  %v1090 = vunpack.c.l.b16 %v318
  %v1091 = vunpack.c.h.b16 %v318
  %v1092 = vunpack.c.l.b16 %v319
  %v1093 = vunpack.c.h.b16 %v319
  %v1094 = vunpack.c.l.b16 %v320
  %v1095 = vunpack.c.h.b16 %v320
  %v1096 = vunpack.c.l.b16 %v321
  %v1097 = vunpack.c.h.b16 %v321
  %v1098 = vunpack.c.l.b16 %v322
  %v1099 = vunpack.c.h.b16 %v322
  %v1100 = vunpack.c.l.b16 %v323
  %v1101 = vunpack.c.h.b16 %v323
  %v1102 = vunpack.c.l.b16 %v324
  %v1103 = vunpack.c.h.b16 %v324
  %v1104 = vunpack.c.l.b16 %v325
  %v1105 = vunpack.c.h.b16 %v325
  %v1106 = vunpack.c.l.b16 %v326
  %v1107 = vunpack.c.h.b16 %v326
  %v1108 = vunpack.c.l.b16 %v327
  %v1109 = vunpack.c.h.b16 %v327
  %v1110 = vunpack.c.l.b16 %v328
  %v1111 = vunpack.c.h.b16 %v328
  %v1112 = vunpack.c.l.b16 %v329
  %v1113 = vunpack.c.h.b16 %v329
  %v1114 = vunpack.c.l.b16 %v330
  %v1115 = vunpack.c.h.b16 %v330
  %v1116 = vunpack.c.l.b16 %v331
  %v1117 = vunpack.c.h.b16 %v331
  %v1118 = vunpack.c.l.b16 %v332
  %v1119 = vunpack.c.h.b16 %v332
  %v1120 = vunpack.c.l.b16 %v333
  %v1121 = vunpack.c.h.b16 %v333
  %v1122 = vunpack.c.l.b16 %v334
  %v1123 = vunpack.c.h.b16 %v334
  %v1124 = vunpack.c.l.b16 %v335
  %v1125 = vunpack.c.h.b16 %v335
  %v1126 = vpack.c.b16 %v618, %v614
  %v1127 = vpack.c.b16 %v619, %v615
  %v1128 = vpack.c.b16 %v620, %v616
  %v1129 = vpack.c.b16 %v621, %v617
  %v1130 = vpack.c.b16 %v626, %v622
  %v1131 = vpack.c.b16 %v627, %v623
  %v1132 = vpack.c.b16 %v628, %v624
  %v1133 = vpack.c.b16 %v629, %v625
  %v1134 = vpack.c.b16 %v634, %v630
  %v1135 = vpack.c.b16 %v635, %v631
  %v1136 = vpack.c.b16 %v636, %v632
  %v1137 = vpack.c.b16 %v637, %v633
  %v1138 = vpack.c.b16 %v642, %v638
  %v1139 = vpack.c.b16 %v643, %v639
  %v1140 = vpack.c.b16 %v644, %v640
  %v1141 = vpack.c.b16 %v645, %v641
  %v1142 = vpack.c.b16 %v650, %v646
  %v1143 = vpack.c.b16 %v651, %v647
  %v1144 = vpack.c.b16 %v652, %v648
  %v1145 = vpack.c.b16 %v653, %v649
  %v1146 = vpack.c.b16 %v658, %v654
  %v1147 = vpack.c.b16 %v659, %v655
  %v1148 = vpack.c.b16 %v660, %v656
  %v1149 = vpack.c.b16 %v661, %v657
  %v1150 = vpack.c.b16 %v666, %v662
  %v1151 = vpack.c.b16 %v667, %v663
  %v1152 = vpack.c.b16 %v668, %v664
  %v1153 = vpack.c.b16 %v669, %v665
  %v1154 = vpack.c.b16 %v674, %v670
  %v1155 = vpack.c.b16 %v675, %v671
  %v1156 = vpack.c.b16 %v676, %v672
  %v1157 = vpack.c.b16 %v677, %v673
  %v1158 = vpack.c.b16 %v682, %v678
  %v1159 = vpack.c.b16 %v683, %v679
  %v1160 = vpack.c.b16 %v684, %v680
  %v1161 = vpack.c.b16 %v685, %v681
  %v1162 = vpack.c.b16 %v690, %v686
  %v1163 = vpack.c.b16 %v691, %v687
  %v1164 = vpack.c.b16 %v692, %v688
  %v1165 = vpack.c.b16 %v693, %v689
  %v1166 = vpack.c.b16 %v698, %v694
  %v1167 = vpack.c.b16 %v699, %v695
  %v1168 = vpack.c.b16 %v700, %v696
  %v1169 = vpack.c.b16 %v701, %v697
  %v1170 = vpack.c.b16 %v706, %v702
  %v1171 = vpack.c.b16 %v707, %v703
  %v1172 = vpack.c.b16 %v708, %v704
  %v1173 = vpack.c.b16 %v709, %v705
  %v1174 = vpack.c.b16 %v714, %v710
  %v1175 = vpack.c.b16 %v715, %v711
  %v1176 = vpack.c.b16 %v716, %v712
  %v1177 = vpack.c.b16 %v717, %v713
  %v1178 = vpack.c.b16 %v722, %v718
  %v1179 = vpack.c.b16 %v723, %v719
  %v1180 = vpack.c.b16 %v724, %v720
  %v1181 = vpack.c.b16 %v725, %v721
  %v1182 = vpack.c.b16 %v730, %v726
  %v1183 = vpack.c.b16 %v731, %v727
  %v1184 = vpack.c.b16 %v732, %v728
  %v1185 = vpack.c.b16 %v733, %v729
  %v1186 = vpack.c.b16 %v738, %v734
  %v1187 = vpack.c.b16 %v739, %v735
  %v1188 = vpack.c.b16 %v740, %v736
  %v1189 = vpack.c.b16 %v741, %v737
  %v1190 = vpack.c.b16 %v746, %v742
  %v1191 = vpack.c.b16 %v747, %v743
  %v1192 = vpack.c.b16 %v748, %v744
  %v1193 = vpack.c.b16 %v749, %v745
  %v1194 = vpack.c.b16 %v754, %v750
  %v1195 = vpack.c.b16 %v755, %v751
  %v1196 = vpack.c.b16 %v756, %v752
  %v1197 = vpack.c.b16 %v757, %v753
  %v1198 = vpack.c.b16 %v762, %v758
  %v1199 = vpack.c.b16 %v763, %v759
  %v1200 = vpack.c.b16 %v764, %v760
  %v1201 = vpack.c.b16 %v765, %v761
  %v1202 = vpack.c.b16 %v770, %v766
  %v1203 = vpack.c.b16 %v771, %v767
  %v1204 = vpack.c.b16 %v772, %v768
  %v1205 = vpack.c.b16 %v773, %v769
  %v1206 = vpack.c.b16 %v778, %v774
  %v1207 = vpack.c.b16 %v779, %v775
  %v1208 = vpack.c.b16 %v780, %v776
  %v1209 = vpack.c.b16 %v781, %v777
  %v1210 = vpack.c.b16 %v786, %v782
  %v1211 = vpack.c.b16 %v787, %v783
  %v1212 = vpack.c.b16 %v788, %v784
  %v1213 = vpack.c.b16 %v789, %v785
  %v1214 = vpack.c.b16 %v794, %v790
  %v1215 = vpack.c.b16 %v795, %v791
  %v1216 = vpack.c.b16 %v796, %v792
  %v1217 = vpack.c.b16 %v797, %v793
  %v1218 = vpack.c.b16 %v802, %v798
  %v1219 = vpack.c.b16 %v803, %v799
  %v1220 = vpack.c.b16 %v804, %v800
  %v1221 = vpack.c.b16 %v805, %v801
  %v1222 = vpack.c.b16 %v810, %v806
  %v1223 = vpack.c.b16 %v811, %v807
  %v1224 = vpack.c.b16 %v812, %v808
  %v1225 = vpack.c.b16 %v813, %v809
  %v1226 = vpack.c.b16 %v818, %v814
  %v1227 = vpack.c.b16 %v819, %v815
  %v1228 = vpack.c.b16 %v820, %v816
  %v1229 = vpack.c.b16 %v821, %v817
  %v1230 = vpack.c.b16 %v826, %v822
  %v1231 = vpack.c.b16 %v827, %v823
  %v1232 = vpack.c.b16 %v828, %v824
  %v1233 = vpack.c.b16 %v829, %v825
  %v1234 = vpack.c.b16 %v834, %v830
  %v1235 = vpack.c.b16 %v835, %v831
  %v1236 = vpack.c.b16 %v836, %v832
  %v1237 = vpack.c.b16 %v837, %v833
  %v1238 = vpack.c.b16 %v842, %v838
  %v1239 = vpack.c.b16 %v843, %v839
  %v1240 = vpack.c.b16 %v844, %v840
  %v1241 = vpack.c.b16 %v845, %v841
  %v1242 = vpack.c.b16 %v850, %v846
  %v1243 = vpack.c.b16 %v851, %v847
  %v1244 = vpack.c.b16 %v852, %v848
  %v1245 = vpack.c.b16 %v853, %v849
  %v1246 = vpack.c.b16 %v858, %v854
  %v1247 = vpack.c.b16 %v859, %v855
  %v1248 = vpack.c.b16 %v860, %v856
  %v1249 = vpack.c.b16 %v861, %v857
  %v1250 = vpack.c.b16 %v866, %v862
  %v1251 = vpack.c.b16 %v867, %v863
  %v1252 = vpack.c.b16 %v868, %v864
  %v1253 = vpack.c.b16 %v869, %v865
  %v1254 = vpack.c.b16 %v874, %v870
  %v1255 = vpack.c.b16 %v875, %v871
  %v1256 = vpack.c.b16 %v876, %v872
  %v1257 = vpack.c.b16 %v877, %v873
  %v1258 = vpack.c.b16 %v882, %v878
  %v1259 = vpack.c.b16 %v883, %v879
  %v1260 = vpack.c.b16 %v884, %v880
  %v1261 = vpack.c.b16 %v885, %v881
  %v1262 = vpack.c.b16 %v890, %v886
  %v1263 = vpack.c.b16 %v891, %v887
  %v1264 = vpack.c.b16 %v892, %v888
  %v1265 = vpack.c.b16 %v893, %v889
  %v1266 = vpack.c.b16 %v898, %v894
  %v1267 = vpack.c.b16 %v899, %v895
  %v1268 = vpack.c.b16 %v900, %v896
  %v1269 = vpack.c.b16 %v901, %v897
  %v1270 = vpack.c.b16 %v906, %v902
  %v1271 = vpack.c.b16 %v907, %v903
  %v1272 = vpack.c.b16 %v908, %v904
  %v1273 = vpack.c.b16 %v909, %v905
  %v1274 = vpack.c.b16 %v914, %v910
  %v1275 = vpack.c.b16 %v915, %v911
  %v1276 = vpack.c.b16 %v916, %v912
  %v1277 = vpack.c.b16 %v917, %v913
  %v1278 = vpack.c.b16 %v922, %v918
  %v1279 = vpack.c.b16 %v923, %v919
  %v1280 = vpack.c.b16 %v924, %v920
  %v1281 = vpack.c.b16 %v925, %v921
  %v1282 = vpack.c.b16 %v930, %v926
  %v1283 = vpack.c.b16 %v931, %v927
  %v1284 = vpack.c.b16 %v932, %v928
  %v1285 = vpack.c.b16 %v933, %v929
  %v1286 = vpack.c.b16 %v938, %v934
  %v1287 = vpack.c.b16 %v939, %v935
  %v1288 = vpack.c.b16 %v940, %v936
  %v1289 = vpack.c.b16 %v941, %v937
  %v1290 = vpack.c.b16 %v946, %v942
  %v1291 = vpack.c.b16 %v947, %v943
  %v1292 = vpack.c.b16 %v948, %v944
  %v1293 = vpack.c.b16 %v949, %v945
  %v1294 = vpack.c.b16 %v954, %v950
  %v1295 = vpack.c.b16 %v955, %v951
  %v1296 = vpack.c.b16 %v956, %v952
  %v1297 = vpack.c.b16 %v957, %v953
  %v1298 = vpack.c.b16 %v962, %v958
  %v1299 = vpack.c.b16 %v963, %v959
  %v1300 = vpack.c.b16 %v964, %v960
  %v1301 = vpack.c.b16 %v965, %v961
  %v1302 = vpack.c.b16 %v970, %v966
  %v1303 = vpack.c.b16 %v971, %v967
  %v1304 = vpack.c.b16 %v972, %v968
  %v1305 = vpack.c.b16 %v973, %v969
  %v1306 = vpack.c.b16 %v978, %v974
  %v1307 = vpack.c.b16 %v979, %v975
  %v1308 = vpack.c.b16 %v980, %v976
  %v1309 = vpack.c.b16 %v981, %v977
  %v1310 = vpack.c.b16 %v986, %v982
  %v1311 = vpack.c.b16 %v987, %v983
  %v1312 = vpack.c.b16 %v988, %v984
  %v1313 = vpack.c.b16 %v989, %v985
  %v1314 = vpack.c.b16 %v994, %v990
  %v1315 = vpack.c.b16 %v995, %v991
  %v1316 = vpack.c.b16 %v996, %v992
  %v1317 = vpack.c.b16 %v997, %v993
  %v1318 = vpack.c.b16 %v1002, %v998
  %v1319 = vpack.c.b16 %v1003, %v999
  %v1320 = vpack.c.b16 %v1004, %v1000
  %v1321 = vpack.c.b16 %v1005, %v1001
  %v1322 = vpack.c.b16 %v1010, %v1006
  %v1323 = vpack.c.b16 %v1011, %v1007
  %v1324 = vpack.c.b16 %v1012, %v1008
  %v1325 = vpack.c.b16 %v1013, %v1009
  %v1326 = vpack.c.b16 %v1018, %v1014
  %v1327 = vpack.c.b16 %v1019, %v1015
  %v1328 = vpack.c.b16 %v1020, %v1016
  %v1329 = vpack.c.b16 %v1021, %v1017
  %v1330 = vpack.c.b16 %v1026, %v1022
  %v1331 = vpack.c.b16 %v1027, %v1023
  %v1332 = vpack.c.b16 %v1028, %v1024
  %v1333 = vpack.c.b16 %v1029, %v1025
  %v1334 = vpack.c.b16 %v1034, %v1030
  %v1335 = vpack.c.b16 %v1035, %v1031
  %v1336 = vpack.c.b16 %v1036, %v1032
  %v1337 = vpack.c.b16 %v1037, %v1033
  %v1338 = vpack.c.b16 %v1042, %v1038
  %v1339 = vpack.c.b16 %v1043, %v1039
  %v1340 = vpack.c.b16 %v1044, %v1040
  %v1341 = vpack.c.b16 %v1045, %v1041
  %v1342 = vpack.c.b16 %v1050, %v1046
  %v1343 = vpack.c.b16 %v1051, %v1047
  %v1344 = vpack.c.b16 %v1052, %v1048
  %v1345 = vpack.c.b16 %v1053, %v1049
  %v1346 = vpack.c.b16 %v1058, %v1054
  %v1347 = vpack.c.b16 %v1059, %v1055
  %v1348 = vpack.c.b16 %v1060, %v1056
  %v1349 = vpack.c.b16 %v1061, %v1057
  %v1350 = vpack.c.b16 %v1066, %v1062
  %v1351 = vpack.c.b16 %v1067, %v1063
  %v1352 = vpack.c.b16 %v1068, %v1064
  %v1353 = vpack.c.b16 %v1069, %v1065
  %v1354 = vpack.c.b16 %v1074, %v1070
  %v1355 = vpack.c.b16 %v1075, %v1071
  %v1356 = vpack.c.b16 %v1076, %v1072
  %v1357 = vpack.c.b16 %v1077, %v1073
  %v1358 = vpack.c.b16 %v1082, %v1078
  %v1359 = vpack.c.b16 %v1083, %v1079
  %v1360 = vpack.c.b16 %v1084, %v1080
  %v1361 = vpack.c.b16 %v1085, %v1081
  %v1362 = vpack.c.b16 %v1090, %v1086
  %v1363 = vpack.c.b16 %v1091, %v1087
  %v1364 = vpack.c.b16 %v1092, %v1088
  %v1365 = vpack.c.b16 %v1093, %v1089
  %v1366 = vpack.c.b16 %v1098, %v1094
  %v1367 = vpack.c.b16 %v1099, %v1095
  %v1368 = vpack.c.b16 %v1100, %v1096
  %v1369 = vpack.c.b16 %v1101, %v1097
  %v1370 = vpack.c.b16 %v1106, %v1102
  %v1371 = vpack.c.b16 %v1107, %v1103
  %v1372 = vpack.c.b16 %v1108, %v1104
  %v1373 = vpack.c.b16 %v1109, %v1105
  %v1374 = vpack.c.b16 %v1114, %v1110
  %v1375 = vpack.c.b16 %v1115, %v1111
  %v1376 = vpack.c.b16 %v1116, %v1112
  %v1377 = vpack.c.b16 %v1117, %v1113
  %v1378 = vpack.c.b16 %v1122, %v1118
  %v1379 = vpack.c.b16 %v1123, %v1119
  %v1380 = vpack.c.b16 %v1124, %v1120
  %v1381 = vpack.c.b16 %v1125, %v1121
  %1638 = vmatprep.subr.bf16.mxu0 %v1127
  %1639 = vmatpush1.bf16.msra.mxu0 %v1126
  %1640 = vmatprep.subr.bf16.mxu0 %v1131
  %1641 = vmatpush1.bf16.msra.mxu0 %v1130
  %1642 = vmatprep.subr.bf16.mxu0 %v1135
  %1643 = vmatpush1.bf16.msra.mxu0 %v1134
  %1644 = vmatprep.subr.bf16.mxu0 %v1139
  %1645 = vmatpush1.bf16.msra.mxu0 %v1138
  %1646 = vmatprep.subr.bf16.mxu0 %v1143
  %1647 = vmatpush1.bf16.msra.mxu0 %v1142
  %1648 = vmatprep.subr.bf16.mxu0 %v1147
  %1649 = vmatpush1.bf16.msra.mxu0 %v1146
  %1650 = vmatprep.subr.bf16.mxu0 %v1151
  %1651 = vmatpush1.bf16.msra.mxu0 %v1150
  %1652 = vmatprep.subr.bf16.mxu0 %v1155
  %1653 = vmatpush1.bf16.msra.mxu0 %v1154
  %1654 = vmatprep.subr.bf16.mxu0 %v1159
  %1655 = vmatpush1.bf16.msra.mxu0 %v1158
  %1656 = vmatprep.subr.bf16.mxu0 %v1163
  %1657 = vmatpush1.bf16.msra.mxu0 %v1162
  %1658 = vmatprep.subr.bf16.mxu0 %v1167
  %1659 = vmatpush1.bf16.msra.mxu0 %v1166
  %1660 = vmatprep.subr.bf16.mxu0 %v1171
  %1661 = vmatpush1.bf16.msra.mxu0 %v1170
  %1662 = vmatprep.subr.bf16.mxu0 %v1175
  %1663 = vmatpush1.bf16.msra.mxu0 %v1174
  %1664 = vmatprep.subr.bf16.mxu0 %v1179
  %1665 = vmatpush1.bf16.msra.mxu0 %v1178
  %1666 = vmatprep.subr.bf16.mxu0 %v1183
  %1667 = vmatpush1.bf16.msra.mxu0 %v1182
  %1668 = vmatprep.subr.bf16.mxu0 %v1187
  %1669 = vmatpush1.bf16.msra.mxu0 %v1186
  %1670 = vmatprep.mubr.bf16.mxu0 %v73
  %1671 = vmatmul.mubr.bf16.gmra.mrb[0].mxu0 %v72
  %v1672 = vpop.f32.mrb[0].mxu0
  %v1673 = vadd.f32 %v341, %v1672
  %v1674 = vpop.f32.mrb[0].mxu0
  %v1675 = vadd.f32 %v345, %v1674
  %v1676 = vpop.f32.mrb[0].mxu0
  %v1677 = vpop.f32.mrb[0].mxu0
  %1678 = vdwg.mxu0
  %1679 = vmatprep.subr.bf16.mxu0 %v1191
  %1680 = vmatpush1.bf16.msra.mxu0 %v1190
  %1681 = vmatprep.subr.bf16.mxu0 %v1195
  %1682 = vmatpush1.bf16.msra.mxu0 %v1194
  %1683 = vmatprep.subr.bf16.mxu0 %v1199
  %1684 = vmatpush1.bf16.msra.mxu0 %v1198
  %1685 = vmatprep.subr.bf16.mxu0 %v1203
  %1686 = vmatpush1.bf16.msra.mxu0 %v1202
  %1687 = vmatprep.subr.bf16.mxu0 %v1207
  %1688 = vmatpush1.bf16.msra.mxu0 %v1206
  %1689 = vmatprep.subr.bf16.mxu0 %v1211
  %1690 = vmatpush1.bf16.msra.mxu0 %v1210
  %1691 = vmatprep.subr.bf16.mxu0 %v1215
  %1692 = vmatpush1.bf16.msra.mxu0 %v1214
  %1693 = vmatprep.subr.bf16.mxu0 %v1219
  %1694 = vmatpush1.bf16.msra.mxu0 %v1218
  %1695 = vmatprep.subr.bf16.mxu0 %v1223
  %1696 = vmatpush1.bf16.msra.mxu0 %v1222
  %1697 = vmatprep.subr.bf16.mxu0 %v1227
  %1698 = vmatpush1.bf16.msra.mxu0 %v1226
  %1699 = vmatprep.subr.bf16.mxu0 %v1231
  %1700 = vmatpush1.bf16.msra.mxu0 %v1230
  %1701 = vmatprep.subr.bf16.mxu0 %v1235
  %1702 = vmatpush1.bf16.msra.mxu0 %v1234
  %1703 = vmatprep.subr.bf16.mxu0 %v1239
  %1704 = vmatpush1.bf16.msra.mxu0 %v1238
  %1705 = vmatprep.subr.bf16.mxu0 %v1243
  %1706 = vmatpush1.bf16.msra.mxu0 %v1242
  %1707 = vmatprep.subr.bf16.mxu0 %v1247
  %1708 = vmatpush1.bf16.msra.mxu0 %v1246
  %1709 = vmatprep.subr.bf16.mxu0 %v1251
  %1710 = vmatpush1.bf16.msra.mxu0 %v1250
  %1711 = vmatprep.mubr.bf16.mxu0 %v75
  %1712 = vmatmul.mubr.bf16.gmra.mrb[0].mxu0 %v74
  %v1713 = vpop.f32.mrb[0].mxu0
  %v1714 = vadd.f32 %v1673, %v1713
  %v1715 = vpop.f32.mrb[0].mxu0
  %v1716 = vadd.f32 %v1675, %v1715
  %v1717 = vpop.f32.mrb[0].mxu0
  %v1718 = vpop.f32.mrb[0].mxu0
  %1719 = vdwg.mxu0
  %1720 = vmatprep.subr.bf16.mxu0 %v1255
  %1721 = vmatpush1.bf16.msra.mxu0 %v1254
  %1722 = vmatprep.subr.bf16.mxu0 %v1259
  %1723 = vmatpush1.bf16.msra.mxu0 %v1258
  %1724 = vmatprep.subr.bf16.mxu0 %v1263
  %1725 = vmatpush1.bf16.msra.mxu0 %v1262
  %1726 = vmatprep.subr.bf16.mxu0 %v1267
  %1727 = vmatpush1.bf16.msra.mxu0 %v1266
  %1728 = vmatprep.subr.bf16.mxu0 %v1271
  %1729 = vmatpush1.bf16.msra.mxu0 %v1270
  %1730 = vmatprep.subr.bf16.mxu0 %v1275
  %1731 = vmatpush1.bf16.msra.mxu0 %v1274
  %1732 = vmatprep.subr.bf16.mxu0 %v1279
  %1733 = vmatpush1.bf16.msra.mxu0 %v1278
  %1734 = vmatprep.subr.bf16.mxu0 %v1283
  %1735 = vmatpush1.bf16.msra.mxu0 %v1282
  %1736 = vmatprep.subr.bf16.mxu0 %v1287
  %1737 = vmatpush1.bf16.msra.mxu0 %v1286
  %1738 = vmatprep.subr.bf16.mxu0 %v1291
  %1739 = vmatpush1.bf16.msra.mxu0 %v1290
  %1740 = vmatprep.subr.bf16.mxu0 %v1295
  %1741 = vmatpush1.bf16.msra.mxu0 %v1294
  %1742 = vmatprep.subr.bf16.mxu0 %v1299
  %1743 = vmatpush1.bf16.msra.mxu0 %v1298
  %1744 = vmatprep.subr.bf16.mxu0 %v1303
  %1745 = vmatpush1.bf16.msra.mxu0 %v1302
  %1746 = vmatprep.subr.bf16.mxu0 %v1307
  %1747 = vmatpush1.bf16.msra.mxu0 %v1306
  %1748 = vmatprep.subr.bf16.mxu0 %v1311
  %1749 = vmatpush1.bf16.msra.mxu0 %v1310
  %1750 = vmatprep.subr.bf16.mxu0 %v1315
  %1751 = vmatpush1.bf16.msra.mxu0 %v1314
  %1752 = vmatprep.mubr.bf16.mxu0 %v77
  %1753 = vmatmul.mubr.bf16.gmra.mrb[0].mxu0 %v76
  %v1754 = vpop.f32.mrb[0].mxu0
  %v1755 = vadd.f32 %v1714, %v1754
  %v1756 = vpop.f32.mrb[0].mxu0
  %v1757 = vadd.f32 %v1716, %v1756
  %v1758 = vpop.f32.mrb[0].mxu0
  %v1759 = vpop.f32.mrb[0].mxu0
  %1760 = vdwg.mxu0
  %1761 = vmatprep.subr.bf16.mxu0 %v1319
  %1762 = vmatpush1.bf16.msra.mxu0 %v1318
  %1763 = vmatprep.subr.bf16.mxu0 %v1323
  %1764 = vmatpush1.bf16.msra.mxu0 %v1322
  %1765 = vmatprep.subr.bf16.mxu0 %v1327
  %1766 = vmatpush1.bf16.msra.mxu0 %v1326
  %1767 = vmatprep.subr.bf16.mxu0 %v1331
  %1768 = vmatpush1.bf16.msra.mxu0 %v1330
  %1769 = vmatprep.subr.bf16.mxu0 %v1335
  %1770 = vmatpush1.bf16.msra.mxu0 %v1334
  %1771 = vmatprep.subr.bf16.mxu0 %v1339
  %1772 = vmatpush1.bf16.msra.mxu0 %v1338
  %1773 = vmatprep.subr.bf16.mxu0 %v1343
  %1774 = vmatpush1.bf16.msra.mxu0 %v1342
  %1775 = vmatprep.subr.bf16.mxu0 %v1347
  %1776 = vmatpush1.bf16.msra.mxu0 %v1346
  %1777 = vmatprep.subr.bf16.mxu0 %v1351
  %1778 = vmatpush1.bf16.msra.mxu0 %v1350
  %1779 = vmatprep.subr.bf16.mxu0 %v1355
  %1780 = vmatpush1.bf16.msra.mxu0 %v1354
  %1781 = vmatprep.subr.bf16.mxu0 %v1359
  %1782 = vmatpush1.bf16.msra.mxu0 %v1358
  %1783 = vmatprep.subr.bf16.mxu0 %v1363
  %1784 = vmatpush1.bf16.msra.mxu0 %v1362
  %1785 = vmatprep.subr.bf16.mxu0 %v1367
  %1786 = vmatpush1.bf16.msra.mxu0 %v1366
  %1787 = vmatprep.subr.bf16.mxu0 %v1371
  %1788 = vmatpush1.bf16.msra.mxu0 %v1370
  %1789 = vmatprep.subr.bf16.mxu0 %v1375
  %1790 = vmatpush1.bf16.msra.mxu0 %v1374
  %1791 = vmatprep.subr.bf16.mxu0 %v1379
  %1792 = vmatpush1.bf16.msra.mxu0 %v1378
  %1793 = vmatprep.mubr.bf16.mxu0 %v79
  %1794 = vmatmul.mubr.bf16.gmra.mrb[0].mxu0 %v78
  %v1795 = vpop.f32.mrb[0].mxu0
  %v1796 = vadd.f32 %v1755, %v1795
  %v1797 = vpop.f32.mrb[0].mxu0
  %v1798 = vadd.f32 %v1757, %v1797
  %v1799 = vpop.f32.mrb[0].mxu0
  %v1800 = vpop.f32.mrb[0].mxu0
  %1801 = vdwg.mxu0
  %1802 = vmatprep.subr.bf16.mxu0 %v1129
  %1803 = vmatpush1.bf16.msra.mxu0 %v1128
  %1804 = vmatprep.subr.bf16.mxu0 %v1133
  %1805 = vmatpush1.bf16.msra.mxu0 %v1132
  %1806 = vmatprep.subr.bf16.mxu0 %v1137
  %1807 = vmatpush1.bf16.msra.mxu0 %v1136
  %1808 = vmatprep.subr.bf16.mxu0 %v1141
  %1809 = vmatpush1.bf16.msra.mxu0 %v1140
  %1810 = vmatprep.subr.bf16.mxu0 %v1145
  %1811 = vmatpush1.bf16.msra.mxu0 %v1144
  %1812 = vmatprep.subr.bf16.mxu0 %v1149
  %1813 = vmatpush1.bf16.msra.mxu0 %v1148
  %1814 = vmatprep.subr.bf16.mxu0 %v1153
  %1815 = vmatpush1.bf16.msra.mxu0 %v1152
  %1816 = vmatprep.subr.bf16.mxu0 %v1157
  %1817 = vmatpush1.bf16.msra.mxu0 %v1156
  %1818 = vmatprep.subr.bf16.mxu0 %v1161
  %1819 = vmatpush1.bf16.msra.mxu0 %v1160
  %1820 = vmatprep.subr.bf16.mxu0 %v1165
  %1821 = vmatpush1.bf16.msra.mxu0 %v1164
  %1822 = vmatprep.subr.bf16.mxu0 %v1169
  %1823 = vmatpush1.bf16.msra.mxu0 %v1168
  %1824 = vmatprep.subr.bf16.mxu0 %v1173
  %1825 = vmatpush1.bf16.msra.mxu0 %v1172
  %1826 = vmatprep.subr.bf16.mxu0 %v1177
  %1827 = vmatpush1.bf16.msra.mxu0 %v1176
  %1828 = vmatprep.subr.bf16.mxu0 %v1181
  %1829 = vmatpush1.bf16.msra.mxu0 %v1180
  %1830 = vmatprep.subr.bf16.mxu0 %v1185
  %1831 = vmatpush1.bf16.msra.mxu0 %v1184
  %1832 = vmatprep.subr.bf16.mxu0 %v1189
  %1833 = vmatpush1.bf16.msra.mxu0 %v1188
  %1834 = vmatprep.mubr.bf16.mxu0 %v73
  %1835 = vmatmul.mubr.bf16.gmra.mrb[0].mxu0 %v72
  %v1836 = vpop.f32.mrb[0].mxu0
  %v1837 = vadd.f32 %v349, %v1836
  %v1838 = vpop.f32.mrb[0].mxu0
  %v1839 = vadd.f32 %v353, %v1838
  %v1840 = vpop.f32.mrb[0].mxu0
  %v1841 = vpop.f32.mrb[0].mxu0
  %1842 = vdwg.mxu0
  %1843 = vmatprep.subr.bf16.mxu0 %v1193
  %1844 = vmatpush1.bf16.msra.mxu0 %v1192
  %1845 = vmatprep.subr.bf16.mxu0 %v1197
  %1846 = vmatpush1.bf16.msra.mxu0 %v1196
  %1847 = vmatprep.subr.bf16.mxu0 %v1201
  %1848 = vmatpush1.bf16.msra.mxu0 %v1200
  %1849 = vmatprep.subr.bf16.mxu0 %v1205
  %1850 = vmatpush1.bf16.msra.mxu0 %v1204
  %1851 = vmatprep.subr.bf16.mxu0 %v1209
  %1852 = vmatpush1.bf16.msra.mxu0 %v1208
  %1853 = vmatprep.subr.bf16.mxu0 %v1213
  %1854 = vmatpush1.bf16.msra.mxu0 %v1212
  %1855 = vmatprep.subr.bf16.mxu0 %v1217
  %1856 = vmatpush1.bf16.msra.mxu0 %v1216
  %1857 = vmatprep.subr.bf16.mxu0 %v1221
  %1858 = vmatpush1.bf16.msra.mxu0 %v1220
  %1859 = vmatprep.subr.bf16.mxu0 %v1225
  %1860 = vmatpush1.bf16.msra.mxu0 %v1224
  %1861 = vmatprep.subr.bf16.mxu0 %v1229
  %1862 = vmatpush1.bf16.msra.mxu0 %v1228
  %1863 = vmatprep.subr.bf16.mxu0 %v1233
  %1864 = vmatpush1.bf16.msra.mxu0 %v1232
  %1865 = vmatprep.subr.bf16.mxu0 %v1237
  %1866 = vmatpush1.bf16.msra.mxu0 %v1236
  %1867 = vmatprep.subr.bf16.mxu0 %v1241
  %1868 = vmatpush1.bf16.msra.mxu0 %v1240
  %1869 = vmatprep.subr.bf16.mxu0 %v1245
  %1870 = vmatpush1.bf16.msra.mxu0 %v1244
  %1871 = vmatprep.subr.bf16.mxu0 %v1249
  %1872 = vmatpush1.bf16.msra.mxu0 %v1248
  %1873 = vmatprep.subr.bf16.mxu0 %v1253
  %1874 = vmatpush1.bf16.msra.mxu0 %v1252
  %1875 = vmatprep.mubr.bf16.mxu0 %v75
  %1876 = vmatmul.mubr.bf16.gmra.mrb[0].mxu0 %v74
  %v1877 = vpop.f32.mrb[0].mxu0
  %v1878 = vadd.f32 %v1837, %v1877
  %v1879 = vpop.f32.mrb[0].mxu0
  %v1880 = vadd.f32 %v1839, %v1879
  %v1881 = vpop.f32.mrb[0].mxu0
  %v1882 = vpop.f32.mrb[0].mxu0
  %1883 = vdwg.mxu0
  %1884 = vmatprep.subr.bf16.mxu0 %v1257
  %1885 = vmatpush1.bf16.msra.mxu0 %v1256
  %1886 = vmatprep.subr.bf16.mxu0 %v1261
  %1887 = vmatpush1.bf16.msra.mxu0 %v1260
  %1888 = vmatprep.subr.bf16.mxu0 %v1265
  %1889 = vmatpush1.bf16.msra.mxu0 %v1264
  %1890 = vmatprep.subr.bf16.mxu0 %v1269
  %1891 = vmatpush1.bf16.msra.mxu0 %v1268
  %1892 = vmatprep.subr.bf16.mxu0 %v1273
  %1893 = vmatpush1.bf16.msra.mxu0 %v1272
  %1894 = vmatprep.subr.bf16.mxu0 %v1277
  %1895 = vmatpush1.bf16.msra.mxu0 %v1276
  %1896 = vmatprep.subr.bf16.mxu0 %v1281
  %1897 = vmatpush1.bf16.msra.mxu0 %v1280
  %1898 = vmatprep.subr.bf16.mxu0 %v1285
  %1899 = vmatpush1.bf16.msra.mxu0 %v1284
  %1900 = vmatprep.subr.bf16.mxu0 %v1289
  %1901 = vmatpush1.bf16.msra.mxu0 %v1288
  %1902 = vmatprep.subr.bf16.mxu0 %v1293
  %1903 = vmatpush1.bf16.msra.mxu0 %v1292
  %1904 = vmatprep.subr.bf16.mxu0 %v1297
  %1905 = vmatpush1.bf16.msra.mxu0 %v1296
  %1906 = vmatprep.subr.bf16.mxu0 %v1301
  %1907 = vmatpush1.bf16.msra.mxu0 %v1300
  %1908 = vmatprep.subr.bf16.mxu0 %v1305
  %1909 = vmatpush1.bf16.msra.mxu0 %v1304
  %1910 = vmatprep.subr.bf16.mxu0 %v1309
  %1911 = vmatpush1.bf16.msra.mxu0 %v1308
  %1912 = vmatprep.subr.bf16.mxu0 %v1313
  %1913 = vmatpush1.bf16.msra.mxu0 %v1312
  %1914 = vmatprep.subr.bf16.mxu0 %v1317
  %1915 = vmatpush1.bf16.msra.mxu0 %v1316
  %1916 = vmatprep.mubr.bf16.mxu0 %v77
  %1917 = vmatmul.mubr.bf16.gmra.mrb[0].mxu0 %v76
  %v1918 = vpop.f32.mrb[0].mxu0
  %v1919 = vadd.f32 %v1878, %v1918
  %v1920 = vpop.f32.mrb[0].mxu0
  %v1921 = vadd.f32 %v1880, %v1920
  %v1922 = vpop.f32.mrb[0].mxu0
  %v1923 = vpop.f32.mrb[0].mxu0
  %1924 = vdwg.mxu0
  %1925 = vmatprep.subr.bf16.mxu0 %v1321
  %1926 = vmatpush1.bf16.msra.mxu0 %v1320
  %1927 = vmatprep.subr.bf16.mxu0 %v1325
  %1928 = vmatpush1.bf16.msra.mxu0 %v1324
  %1929 = vmatprep.subr.bf16.mxu0 %v1329
  %1930 = vmatpush1.bf16.msra.mxu0 %v1328
  %1931 = vmatprep.subr.bf16.mxu0 %v1333
  %1932 = vmatpush1.bf16.msra.mxu0 %v1332
  %1933 = vmatprep.subr.bf16.mxu0 %v1337
  %1934 = vmatpush1.bf16.msra.mxu0 %v1336
  %1935 = vmatprep.subr.bf16.mxu0 %v1341
  %1936 = vmatpush1.bf16.msra.mxu0 %v1340
  %1937 = vmatprep.subr.bf16.mxu0 %v1345
  %1938 = vmatpush1.bf16.msra.mxu0 %v1344
  %1939 = vmatprep.subr.bf16.mxu0 %v1349
  %1940 = vmatpush1.bf16.msra.mxu0 %v1348
  %1941 = vmatprep.subr.bf16.mxu0 %v1353
  %1942 = vmatpush1.bf16.msra.mxu0 %v1352
  %1943 = vmatprep.subr.bf16.mxu0 %v1357
  %1944 = vmatpush1.bf16.msra.mxu0 %v1356
  %1945 = vmatprep.subr.bf16.mxu0 %v1361
  %1946 = vmatpush1.bf16.msra.mxu0 %v1360
  %1947 = vmatprep.subr.bf16.mxu0 %v1365
  %1948 = vmatpush1.bf16.msra.mxu0 %v1364
  %1949 = vmatprep.subr.bf16.mxu0 %v1369
  %1950 = vmatpush1.bf16.msra.mxu0 %v1368
  %1951 = vmatprep.subr.bf16.mxu0 %v1373
  %1952 = vmatpush1.bf16.msra.mxu0 %v1372
  %1953 = vmatprep.subr.bf16.mxu0 %v1377
  %1954 = vmatpush1.bf16.msra.mxu0 %v1376
  %1955 = vmatprep.subr.bf16.mxu0 %v1381
  %1956 = vmatpush1.bf16.msra.mxu0 %v1380
  %1957 = vmatprep.mubr.bf16.mxu0 %v79
  %1958 = vmatmul.mubr.bf16.gmra.mrb[0].mxu0 %v78
  %v1959 = vpop.f32.mrb[0].mxu0
  %v1960 = vadd.f32 %v1919, %v1959
  %v1961 = vpop.f32.mrb[0].mxu0
  %v1962 = vadd.f32 %v1921, %v1961
  %v1963 = vpop.f32.mrb[0].mxu0
  %v1964 = vpop.f32.mrb[0].mxu0
  %1965 = vdwg.mxu0
  %v1966 = vmax.f32 %v1796, 0.0
  %v1967 = vmax.f32 %v1798, 0.0
  %v1968 = vmax.f32 %v1960, 0.0
  %v1969 = vmax.f32 %v1962, 0.0
  %v1970 = vpack.c.bf16 %v1966, %v1966
  %v1971 = vpack.c.bf16 %v1967, %v1967
  %v1972 = vpack.c.bf16 %v1968, %v1968
  %v1973 = vpack.c.bf16 %v1969, %v1969
  %v1974 = vld [vmem:[%s3] sm:$0xff]
  %v1975 = vld [vmem:[%s3 + $0x8] sm:$0xff]
  %v1976 = vld [vmem:[%s3 + $0x10] sm:$0xff]
  %v1977 = vld [vmem:[%s3 + $0x18] sm:$0xff]
  %v1978 = vld [vmem:[%s3 + $0x20] sm:$0xff]
  %v1979 = vld [vmem:[%s3 + $0x28] sm:$0xff]
  %v1980 = vld [vmem:[%s3 + $0x30] sm:$0xff]
  %v1981 = vld [vmem:[%s3 + $0x38] sm:$0xff]
  %v1982 = vld [vmem:[%s3 + $0x40] sm:$0xff]
  %v1983 = vld [vmem:[%s3 + $0x48] sm:$0xff]
  %v1984 = vld [vmem:[%s3 + $0x50] sm:$0xff]
  %v1985 = vld [vmem:[%s3 + $0x58] sm:$0xff]
  %v1986 = vld [vmem:[%s3 + $0x60] sm:$0xff]
  %v1987 = vld [vmem:[%s3 + $0x68] sm:$0xff]
  %v1988 = vld [vmem:[%s3 + $0x70] sm:$0xff]
  %v1989 = vld [vmem:[%s3 + $0x78] sm:$0xff]
  %v1990 = vld [vmem:[%s3 + $0x80] sm:$0xff]
  %v1991 = vld [vmem:[%s3 + $0x88] sm:$0xff]
  %v1992 = vld [vmem:[%s3 + $0x90] sm:$0xff]
  %v1993 = vld [vmem:[%s3 + $0x98] sm:$0xff]
  %v1994 = vld [vmem:[%s3 + $0xa0] sm:$0xff]
  %v1995 = vld [vmem:[%s3 + $0xa8] sm:$0xff]
  %v1996 = vld [vmem:[%s3 + $0xb0] sm:$0xff]
  %v1997 = vld [vmem:[%s3 + $0xb8] sm:$0xff]
  %v1998 = vld [vmem:[%s3 + $0xc0] sm:$0xff]
  %v1999 = vld [vmem:[%s3 + $0xc8] sm:$0xff]
  %v2000 = vld [vmem:[%s3 + $0xd0] sm:$0xff]
  %v2001 = vld [vmem:[%s3 + $0xd8] sm:$0xff]
  %v2002 = vld [vmem:[%s3 + $0xe0] sm:$0xff]
  %v2003 = vld [vmem:[%s3 + $0xe8] sm:$0xff]
  %v2004 = vld [vmem:[%s3 + $0xf0] sm:$0xff]
  %v2005 = vld [vmem:[%s3 + $0xf8] sm:$0xff]
  %v2006 = vld [vmem:[%s3 + $0x100] sm:$0xff]
  %v2007 = vld [vmem:[%s3 + $0x108] sm:$0xff]
  %v2008 = vld [vmem:[%s3 + $0x110] sm:$0xff]
  %v2009 = vld [vmem:[%s3 + $0x118] sm:$0xff]
  %v2010 = vld [vmem:[%s3 + $0x120] sm:$0xff]
  %v2011 = vld [vmem:[%s3 + $0x128] sm:$0xff]
  %v2012 = vld [vmem:[%s3 + $0x130] sm:$0xff]
  %v2013 = vld [vmem:[%s3 + $0x138] sm:$0xff]
  %v2014 = vld [vmem:[%s3 + $0x140] sm:$0xff]
  %v2015 = vld [vmem:[%s3 + $0x148] sm:$0xff]
  %v2016 = vld [vmem:[%s3 + $0x150] sm:$0xff]
  %v2017 = vld [vmem:[%s3 + $0x158] sm:$0xff]
  %v2018 = vld [vmem:[%s3 + $0x160] sm:$0xff]
  %v2019 = vld [vmem:[%s3 + $0x168] sm:$0xff]
  %v2020 = vld [vmem:[%s3 + $0x170] sm:$0xff]
  %v2021 = vld [vmem:[%s3 + $0x178] sm:$0xff]
  %v2022 = vld [vmem:[%s3 + $0x180] sm:$0xff]
  %v2023 = vld [vmem:[%s3 + $0x188] sm:$0xff]
  %v2024 = vld [vmem:[%s3 + $0x190] sm:$0xff]
  %v2025 = vld [vmem:[%s3 + $0x198] sm:$0xff]
  %v2026 = vld [vmem:[%s3 + $0x1a0] sm:$0xff]
  %v2027 = vld [vmem:[%s3 + $0x1a8] sm:$0xff]
  %v2028 = vld [vmem:[%s3 + $0x1b0] sm:$0xff]
  %v2029 = vld [vmem:[%s3 + $0x1b8] sm:$0xff]
  %v2030 = vld [vmem:[%s3 + $0x1c0] sm:$0xff]
  %v2031 = vld [vmem:[%s3 + $0x1c8] sm:$0xff]
  %v2032 = vld [vmem:[%s3 + $0x1d0] sm:$0xff]
  %v2033 = vld [vmem:[%s3 + $0x1d8] sm:$0xff]
  %v2034 = vld [vmem:[%s3 + $0x1e0] sm:$0xff]
  %v2035 = vld [vmem:[%s3 + $0x1e8] sm:$0xff]
  %v2036 = vld [vmem:[%s3 + $0x1f0] sm:$0xff]
  %v2037 = vld [vmem:[%s3 + $0x1f8] sm:$0xff]
  %v2038 = vld [vmem:[%s4] sm:$0x3]
  %v2040 = vlaneseq
  %v2041 = vshrl.u32 %v2040, 7
  %v2042 = vsub.s32 0, %v2041
  %v2043 = vrot.slane %v2038, %v2042
  %v2044 = vlaneseq
  %v2045 = vshrl.u32 %v2044, 7
  %v2046 = vsub.s32 1, %v2045
  %v2047 = vrot.slane %v2038, %v2046
  %v2114 = vunpack.c.l.b16 %v1974
  %v2115 = vunpack.c.h.b16 %v1974
  %v2116 = vunpack.c.l.b16 %v1975
  %v2117 = vunpack.c.h.b16 %v1975
  %v2118 = vunpack.c.l.b16 %v1976
  %v2119 = vunpack.c.h.b16 %v1976
  %v2120 = vunpack.c.l.b16 %v1977
  %v2121 = vunpack.c.h.b16 %v1977
  %v2122 = vunpack.c.l.b16 %v1978
  %v2123 = vunpack.c.h.b16 %v1978
  %v2124 = vunpack.c.l.b16 %v1979
  %v2125 = vunpack.c.h.b16 %v1979
  %v2126 = vunpack.c.l.b16 %v1980
  %v2127 = vunpack.c.h.b16 %v1980
  %v2128 = vunpack.c.l.b16 %v1981
  %v2129 = vunpack.c.h.b16 %v1981
  %v2130 = vunpack.c.l.b16 %v1982
  %v2131 = vunpack.c.h.b16 %v1982
  %v2132 = vunpack.c.l.b16 %v1983
  %v2133 = vunpack.c.h.b16 %v1983
  %v2134 = vunpack.c.l.b16 %v1984
  %v2135 = vunpack.c.h.b16 %v1984
  %v2136 = vunpack.c.l.b16 %v1985
  %v2137 = vunpack.c.h.b16 %v1985
  %v2138 = vunpack.c.l.b16 %v1986
  %v2139 = vunpack.c.h.b16 %v1986
  %v2140 = vunpack.c.l.b16 %v1987
  %v2141 = vunpack.c.h.b16 %v1987
  %v2142 = vunpack.c.l.b16 %v1988
  %v2143 = vunpack.c.h.b16 %v1988
  %v2144 = vunpack.c.l.b16 %v1989
  %v2145 = vunpack.c.h.b16 %v1989
  %v2146 = vunpack.c.l.b16 %v1990
  %v2147 = vunpack.c.h.b16 %v1990
  %v2148 = vunpack.c.l.b16 %v1991
  %v2149 = vunpack.c.h.b16 %v1991
  %v2150 = vunpack.c.l.b16 %v1992
  %v2151 = vunpack.c.h.b16 %v1992
  %v2152 = vunpack.c.l.b16 %v1993
  %v2153 = vunpack.c.h.b16 %v1993
  %v2154 = vunpack.c.l.b16 %v1994
  %v2155 = vunpack.c.h.b16 %v1994
  %v2156 = vunpack.c.l.b16 %v1995
  %v2157 = vunpack.c.h.b16 %v1995
  %v2158 = vunpack.c.l.b16 %v1996
  %v2159 = vunpack.c.h.b16 %v1996
  %v2160 = vunpack.c.l.b16 %v1997
  %v2161 = vunpack.c.h.b16 %v1997
  %v2162 = vunpack.c.l.b16 %v1998
  %v2163 = vunpack.c.h.b16 %v1998
  %v2164 = vunpack.c.l.b16 %v1999
  %v2165 = vunpack.c.h.b16 %v1999
  %v2166 = vunpack.c.l.b16 %v2000
  %v2167 = vunpack.c.h.b16 %v2000
  %v2168 = vunpack.c.l.b16 %v2001
  %v2169 = vunpack.c.h.b16 %v2001
  %v2170 = vunpack.c.l.b16 %v2002
  %v2171 = vunpack.c.h.b16 %v2002
  %v2172 = vunpack.c.l.b16 %v2003
  %v2173 = vunpack.c.h.b16 %v2003
  %v2174 = vunpack.c.l.b16 %v2004
  %v2175 = vunpack.c.h.b16 %v2004
  %v2176 = vunpack.c.l.b16 %v2005
  %v2177 = vunpack.c.h.b16 %v2005
  %v2178 = vunpack.c.l.b16 %v2006
  %v2179 = vunpack.c.h.b16 %v2006
  %v2180 = vunpack.c.l.b16 %v2007
  %v2181 = vunpack.c.h.b16 %v2007
  %v2182 = vunpack.c.l.b16 %v2008
  %v2183 = vunpack.c.h.b16 %v2008
  %v2184 = vunpack.c.l.b16 %v2009
  %v2185 = vunpack.c.h.b16 %v2009
  %v2186 = vunpack.c.l.b16 %v2010
  %v2187 = vunpack.c.h.b16 %v2010
  %v2188 = vunpack.c.l.b16 %v2011
  %v2189 = vunpack.c.h.b16 %v2011
  %v2190 = vunpack.c.l.b16 %v2012
  %v2191 = vunpack.c.h.b16 %v2012
  %v2192 = vunpack.c.l.b16 %v2013
  %v2193 = vunpack.c.h.b16 %v2013
  %v2194 = vunpack.c.l.b16 %v2014
  %v2195 = vunpack.c.h.b16 %v2014
  %v2196 = vunpack.c.l.b16 %v2015
  %v2197 = vunpack.c.h.b16 %v2015
  %v2198 = vunpack.c.l.b16 %v2016
  %v2199 = vunpack.c.h.b16 %v2016
  %v2200 = vunpack.c.l.b16 %v2017
  %v2201 = vunpack.c.h.b16 %v2017
  %v2202 = vunpack.c.l.b16 %v2018
  %v2203 = vunpack.c.h.b16 %v2018
  %v2204 = vunpack.c.l.b16 %v2019
  %v2205 = vunpack.c.h.b16 %v2019
  %v2206 = vunpack.c.l.b16 %v2020
  %v2207 = vunpack.c.h.b16 %v2020
  %v2208 = vunpack.c.l.b16 %v2021
  %v2209 = vunpack.c.h.b16 %v2021
  %v2210 = vunpack.c.l.b16 %v2022
  %v2211 = vunpack.c.h.b16 %v2022
  %v2212 = vunpack.c.l.b16 %v2023
  %v2213 = vunpack.c.h.b16 %v2023
  %v2214 = vunpack.c.l.b16 %v2024
  %v2215 = vunpack.c.h.b16 %v2024
  %v2216 = vunpack.c.l.b16 %v2025
  %v2217 = vunpack.c.h.b16 %v2025
  %v2218 = vunpack.c.l.b16 %v2026
  %v2219 = vunpack.c.h.b16 %v2026
  %v2220 = vunpack.c.l.b16 %v2027
  %v2221 = vunpack.c.h.b16 %v2027
  %v2222 = vunpack.c.l.b16 %v2028
  %v2223 = vunpack.c.h.b16 %v2028
  %v2224 = vunpack.c.l.b16 %v2029
  %v2225 = vunpack.c.h.b16 %v2029
  %v2226 = vunpack.c.l.b16 %v2030
  %v2227 = vunpack.c.h.b16 %v2030
  %v2228 = vunpack.c.l.b16 %v2031
  %v2229 = vunpack.c.h.b16 %v2031
  %v2230 = vunpack.c.l.b16 %v2032
  %v2231 = vunpack.c.h.b16 %v2032
  %v2232 = vunpack.c.l.b16 %v2033
  %v2233 = vunpack.c.h.b16 %v2033
  %v2234 = vunpack.c.l.b16 %v2034
  %v2235 = vunpack.c.h.b16 %v2034
  %v2236 = vunpack.c.l.b16 %v2035
  %v2237 = vunpack.c.h.b16 %v2035
  %v2238 = vunpack.c.l.b16 %v2036
  %v2239 = vunpack.c.h.b16 %v2036
  %v2240 = vunpack.c.l.b16 %v2037
  %v2241 = vunpack.c.h.b16 %v2037
  %v2242 = vpack.c.b16 %v2116, %v2114
  %v2243 = vpack.c.b16 %v2117, %v2115
  %v2244 = vpack.c.b16 %v2120, %v2118
  %v2245 = vpack.c.b16 %v2121, %v2119
  %v2246 = vpack.c.b16 %v2124, %v2122
  %v2247 = vpack.c.b16 %v2125, %v2123
  %v2248 = vpack.c.b16 %v2128, %v2126
  %v2249 = vpack.c.b16 %v2129, %v2127
  %v2250 = vpack.c.b16 %v2132, %v2130
  %v2251 = vpack.c.b16 %v2133, %v2131
  %v2252 = vpack.c.b16 %v2136, %v2134
  %v2253 = vpack.c.b16 %v2137, %v2135
  %v2254 = vpack.c.b16 %v2140, %v2138
  %v2255 = vpack.c.b16 %v2141, %v2139
  %v2256 = vpack.c.b16 %v2144, %v2142
  %v2257 = vpack.c.b16 %v2145, %v2143
  %v2258 = vpack.c.b16 %v2148, %v2146
  %v2259 = vpack.c.b16 %v2149, %v2147
  %v2260 = vpack.c.b16 %v2152, %v2150
  %v2261 = vpack.c.b16 %v2153, %v2151
  %v2262 = vpack.c.b16 %v2156, %v2154
  %v2263 = vpack.c.b16 %v2157, %v2155
  %v2264 = vpack.c.b16 %v2160, %v2158
  %v2265 = vpack.c.b16 %v2161, %v2159
  %v2266 = vpack.c.b16 %v2164, %v2162
  %v2267 = vpack.c.b16 %v2165, %v2163
  %v2268 = vpack.c.b16 %v2168, %v2166
  %v2269 = vpack.c.b16 %v2169, %v2167
  %v2270 = vpack.c.b16 %v2172, %v2170
  %v2271 = vpack.c.b16 %v2173, %v2171
  %v2272 = vpack.c.b16 %v2176, %v2174
  %v2273 = vpack.c.b16 %v2177, %v2175
  %v2274 = vpack.c.b16 %v2180, %v2178
  %v2275 = vpack.c.b16 %v2181, %v2179
  %v2276 = vpack.c.b16 %v2184, %v2182
  %v2277 = vpack.c.b16 %v2185, %v2183
  %v2278 = vpack.c.b16 %v2188, %v2186
  %v2279 = vpack.c.b16 %v2189, %v2187
  %v2280 = vpack.c.b16 %v2192, %v2190
  %v2281 = vpack.c.b16 %v2193, %v2191
  %v2282 = vpack.c.b16 %v2196, %v2194
  %v2283 = vpack.c.b16 %v2197, %v2195
  %v2284 = vpack.c.b16 %v2200, %v2198
  %v2285 = vpack.c.b16 %v2201, %v2199
  %v2286 = vpack.c.b16 %v2204, %v2202
  %v2287 = vpack.c.b16 %v2205, %v2203
  %v2288 = vpack.c.b16 %v2208, %v2206
  %v2289 = vpack.c.b16 %v2209, %v2207
  %v2290 = vpack.c.b16 %v2212, %v2210
  %v2291 = vpack.c.b16 %v2213, %v2211
  %v2292 = vpack.c.b16 %v2216, %v2214
  %v2293 = vpack.c.b16 %v2217, %v2215
  %v2294 = vpack.c.b16 %v2220, %v2218
  %v2295 = vpack.c.b16 %v2221, %v2219
  %v2296 = vpack.c.b16 %v2224, %v2222
  %v2297 = vpack.c.b16 %v2225, %v2223
  %v2298 = vpack.c.b16 %v2228, %v2226
  %v2299 = vpack.c.b16 %v2229, %v2227
  %v2300 = vpack.c.b16 %v2232, %v2230
  %v2301 = vpack.c.b16 %v2233, %v2231
  %v2302 = vpack.c.b16 %v2236, %v2234
  %v2303 = vpack.c.b16 %v2237, %v2235
  %v2304 = vpack.c.b16 %v2240, %v2238
  %v2305 = vpack.c.b16 %v2241, %v2239
  %2370 = vmatprep.subr.bf16.mxu0 %v2243
  %2371 = vmatpush1.bf16.msra.mxu0 %v2242
  %2372 = vmatprep.subr.bf16.mxu0 %v2245
  %2373 = vmatpush1.bf16.msra.mxu0 %v2244
  %2374 = vmatprep.subr.bf16.mxu0 %v2247
  %2375 = vmatpush1.bf16.msra.mxu0 %v2246
  %2376 = vmatprep.subr.bf16.mxu0 %v2249
  %2377 = vmatpush1.bf16.msra.mxu0 %v2248
  %2378 = vmatprep.subr.bf16.mxu0 %v2251
  %2379 = vmatpush1.bf16.msra.mxu0 %v2250
  %2380 = vmatprep.subr.bf16.mxu0 %v2253
  %2381 = vmatpush1.bf16.msra.mxu0 %v2252
  %2382 = vmatprep.subr.bf16.mxu0 %v2255
  %2383 = vmatpush1.bf16.msra.mxu0 %v2254
  %2384 = vmatprep.subr.bf16.mxu0 %v2257
  %2385 = vmatpush1.bf16.msra.mxu0 %v2256
  %2386 = vmatprep.subr.bf16.mxu0 %v2259
  %2387 = vmatpush1.bf16.msra.mxu0 %v2258
  %2388 = vmatprep.subr.bf16.mxu0 %v2261
  %2389 = vmatpush1.bf16.msra.mxu0 %v2260
  %2390 = vmatprep.subr.bf16.mxu0 %v2263
  %2391 = vmatpush1.bf16.msra.mxu0 %v2262
  %2392 = vmatprep.subr.bf16.mxu0 %v2265
  %2393 = vmatpush1.bf16.msra.mxu0 %v2264
  %2394 = vmatprep.subr.bf16.mxu0 %v2267
  %2395 = vmatpush1.bf16.msra.mxu0 %v2266
  %2396 = vmatprep.subr.bf16.mxu0 %v2269
  %2397 = vmatpush1.bf16.msra.mxu0 %v2268
  %2398 = vmatprep.subr.bf16.mxu0 %v2271
  %2399 = vmatpush1.bf16.msra.mxu0 %v2270
  %2400 = vmatprep.subr.bf16.mxu0 %v2273
  %2401 = vmatpush1.bf16.msra.mxu0 %v2272
  %2402 = vmatprep.mubr.bf16.mxu0 %v1971
  %2403 = vmatmul.mubr.bf16.gmra.mrb[0].mxu0 %v1970
  %v2404 = vpop.f32.mrb[0].mxu0
  %v2405 = vadd.f32 %v2043, %v2404
  %v2406 = vpop.f32.mrb[0].mxu0
  %v2407 = vadd.f32 %v2047, %v2406
  %v2408 = vpop.f32.mrb[0].mxu0
  %v2409 = vpop.f32.mrb[0].mxu0
  %2410 = vdwg.mxu0
  %2411 = vmatprep.subr.bf16.mxu0 %v2275
  %2412 = vmatpush1.bf16.msra.mxu0 %v2274
  %2413 = vmatprep.subr.bf16.mxu0 %v2277
  %2414 = vmatpush1.bf16.msra.mxu0 %v2276
  %2415 = vmatprep.subr.bf16.mxu0 %v2279
  %2416 = vmatpush1.bf16.msra.mxu0 %v2278
  %2417 = vmatprep.subr.bf16.mxu0 %v2281
  %2418 = vmatpush1.bf16.msra.mxu0 %v2280
  %2419 = vmatprep.subr.bf16.mxu0 %v2283
  %2420 = vmatpush1.bf16.msra.mxu0 %v2282
  %2421 = vmatprep.subr.bf16.mxu0 %v2285
  %2422 = vmatpush1.bf16.msra.mxu0 %v2284
  %2423 = vmatprep.subr.bf16.mxu0 %v2287
  %2424 = vmatpush1.bf16.msra.mxu0 %v2286
  %2425 = vmatprep.subr.bf16.mxu0 %v2289
  %2426 = vmatpush1.bf16.msra.mxu0 %v2288
  %2427 = vmatprep.subr.bf16.mxu0 %v2291
  %2428 = vmatpush1.bf16.msra.mxu0 %v2290
  %2429 = vmatprep.subr.bf16.mxu0 %v2293
  %2430 = vmatpush1.bf16.msra.mxu0 %v2292
  %2431 = vmatprep.subr.bf16.mxu0 %v2295
  %2432 = vmatpush1.bf16.msra.mxu0 %v2294
  %2433 = vmatprep.subr.bf16.mxu0 %v2297
  %2434 = vmatpush1.bf16.msra.mxu0 %v2296
  %2435 = vmatprep.subr.bf16.mxu0 %v2299
  %2436 = vmatpush1.bf16.msra.mxu0 %v2298
  %2437 = vmatprep.subr.bf16.mxu0 %v2301
  %2438 = vmatpush1.bf16.msra.mxu0 %v2300
  %2439 = vmatprep.subr.bf16.mxu0 %v2303
  %2440 = vmatpush1.bf16.msra.mxu0 %v2302
  %2441 = vmatprep.subr.bf16.mxu0 %v2305
  %2442 = vmatpush1.bf16.msra.mxu0 %v2304
  %2443 = vmatprep.mubr.bf16.mxu0 %v1973
  %2444 = vmatmul.mubr.bf16.gmra.mrb[0].mxu0 %v1972
  %v2445 = vpop.f32.mrb[0].mxu0
  %v2446 = vadd.f32 %v2405, %v2445
  %v2447 = vpop.f32.mrb[0].mxu0
  %v2448 = vadd.f32 %v2407, %v2447
  %v2449 = vpop.f32.mrb[0].mxu0
  %v2450 = vpop.f32.mrb[0].mxu0
  %2451 = vdwg.mxu0
  %v2452 = vmax.f32 %v2446, 0.0
  %v2453 = vmax.f32 %v2448, 0.0
  %v2454 = vld [vmem:[%s5] sm:$0xff]
  %v2455 = vld [vmem:[%s5 + $0x8] sm:$0xff]
  %v2456 = vld [vmem:[%s5 + $0x10] sm:$0xff]
  %v2457 = vld [vmem:[%s5 + $0x18] sm:$0xff]
  %v2458 = vld [vmem:[%s5 + $0x20] sm:$0xff]
  %v2459 = vld [vmem:[%s5 + $0x28] sm:$0xff]
  %v2460 = vld [vmem:[%s5 + $0x30] sm:$0xff]
  %v2461 = vld [vmem:[%s5 + $0x38] sm:$0xff]
  %v2462 = vld [vmem:[%s5 + $0x40] sm:$0xff]
  %v2463 = vld [vmem:[%s5 + $0x48] sm:$0xff]
  %v2464 = vld [vmem:[%s5 + $0x50] sm:$0xff]
  %v2465 = vld [vmem:[%s5 + $0x58] sm:$0xff]
  %v2466 = vld [vmem:[%s5 + $0x60] sm:$0xff]
  %v2467 = vld [vmem:[%s5 + $0x68] sm:$0xff]
  %v2468 = vld [vmem:[%s5 + $0x70] sm:$0xff]
  %v2469 = vld [vmem:[%s5 + $0x78] sm:$0xff]
  %v2470 = vld [vmem:[%s5 + $0x80] sm:$0xff]
  %v2471 = vld [vmem:[%s5 + $0x88] sm:$0xff]
  %v2472 = vld [vmem:[%s5 + $0x90] sm:$0xff]
  %v2473 = vld [vmem:[%s5 + $0x98] sm:$0xff]
  %v2474 = vld [vmem:[%s5 + $0xa0] sm:$0xff]
  %v2475 = vld [vmem:[%s5 + $0xa8] sm:$0xff]
  %v2476 = vld [vmem:[%s5 + $0xb0] sm:$0xff]
  %v2477 = vld [vmem:[%s5 + $0xb8] sm:$0xff]
  %v2478 = vld [vmem:[%s5 + $0xc0] sm:$0xff]
  %v2479 = vld [vmem:[%s5 + $0xc8] sm:$0xff]
  %v2480 = vld [vmem:[%s5 + $0xd0] sm:$0xff]
  %v2481 = vld [vmem:[%s5 + $0xd8] sm:$0xff]
  %v2482 = vld [vmem:[%s5 + $0xe0] sm:$0xff]
  %v2483 = vld [vmem:[%s5 + $0xe8] sm:$0xff]
  %v2484 = vld [vmem:[%s5 + $0xf0] sm:$0xff]
  %v2485 = vld [vmem:[%s5 + $0xf8] sm:$0xff]
  %v2486 = vld [vmem:[%s6] sm:$0x1]
  %v2488 = vlaneseq
  %v2489 = vshrl.u32 %v2488, 7
  %v2490 = vsub.s32 0, %v2489
  %v2491 = vrot.slane %v2486, %v2490
  %2493 = vmatprep.subr.mxu0 0.0
  %2494 = vmatpush1.msra.mxu0 %v2454
  %2495 = vmatprep.subr.mxu0 0.0
  %2496 = vmatpush1.msra.mxu0 %v2455
  %2497 = vmatprep.subr.mxu0 0.0
  %2498 = vmatpush1.msra.mxu0 %v2456
  %2499 = vmatprep.subr.mxu0 0.0
  %2500 = vmatpush1.msra.mxu0 %v2457
  %2501 = vmatprep.subr.mxu0 0.0
  %2502 = vmatpush1.msra.mxu0 %v2458
  %2503 = vmatprep.subr.mxu0 0.0
  %2504 = vmatpush1.msra.mxu0 %v2459
  %2505 = vmatprep.subr.mxu0 0.0
  %2506 = vmatpush1.msra.mxu0 %v2460
  %2507 = vmatprep.subr.mxu0 0.0
  %2508 = vmatpush1.msra.mxu0 %v2461
  %2509 = vmatprep.subr.mxu0 0.0
  %2510 = vmatpush1.msra.mxu0 %v2462
  %2511 = vmatprep.subr.mxu0 0.0
  %2512 = vmatpush1.msra.mxu0 %v2463
  %2513 = vmatprep.subr.mxu0 0.0
  %2514 = vmatpush1.msra.mxu0 %v2464
  %2515 = vmatprep.subr.mxu0 0.0
  %2516 = vmatpush1.msra.mxu0 %v2465
  %2517 = vmatprep.subr.mxu0 0.0
  %2518 = vmatpush1.msra.mxu0 %v2466
  %2519 = vmatprep.subr.mxu0 0.0
  %2520 = vmatpush1.msra.mxu0 %v2467
  %2521 = vmatprep.subr.mxu0 0.0
  %2522 = vmatpush1.msra.mxu0 %v2468
  %2523 = vmatprep.subr.mxu0 0.0
  %2524 = vmatpush1.msra.mxu0 %v2469
  %2525 = vmatprep.subr.mxu0 0.0
  %2526 = vmatpush1.msra.mxu0 %v2470
  %2527 = vmatprep.subr.mxu0 0.0
  %2528 = vmatpush1.msra.mxu0 %v2471
  %2529 = vmatprep.subr.mxu0 0.0
  %2530 = vmatpush1.msra.mxu0 %v2472
  %2531 = vmatprep.subr.mxu0 0.0
  %2532 = vmatpush1.msra.mxu0 %v2473
  %2533 = vmatprep.subr.mxu0 0.0
  %2534 = vmatpush1.msra.mxu0 %v2474
  %2535 = vmatprep.subr.mxu0 0.0
  %2536 = vmatpush1.msra.mxu0 %v2475
  %2537 = vmatprep.subr.mxu0 0.0
  %2538 = vmatpush1.msra.mxu0 %v2476
  %2539 = vmatprep.subr.mxu0 0.0
  %2540 = vmatpush1.msra.mxu0 %v2477
  %2541 = vmatprep.subr.mxu0 0.0
  %2542 = vmatpush1.msra.mxu0 %v2478
  %2543 = vmatprep.subr.mxu0 0.0
  %2544 = vmatpush1.msra.mxu0 %v2479
  %2545 = vmatprep.subr.mxu0 0.0
  %2546 = vmatpush1.msra.mxu0 %v2480
  %2547 = vmatprep.subr.mxu0 0.0
  %2548 = vmatpush1.msra.mxu0 %v2481
  %2549 = vmatprep.subr.mxu0 0.0
  %2550 = vmatpush1.msra.mxu0 %v2482
  %2551 = vmatprep.subr.mxu0 0.0
  %2552 = vmatpush1.msra.mxu0 %v2483
  %2553 = vmatprep.subr.mxu0 0.0
  %2554 = vmatpush1.msra.mxu0 %v2484
  %2555 = vmatprep.subr.mxu0 0.0
  %2556 = vmatpush1.msra.mxu0 %v2485
  %2557 = vmatprep.mubr.f32.mxu0 %v2453
  %2558 = vmatmul.mubr.f32.gmra.mrb[0].mxu0 %v2452
  %v2559 = vpop.f32.mrb[0].mxu0
  %v2560 = vadd.f32 %v2491, %v2559
  %v2561 = vpop.f32.mrb[0].mxu0
  %2562 = vdwg.mxu0
  %vm2563 = vcmask 66560
  %2564 = vst.msk [vmem:[%s7] sm:$0x3] %vm2563, %v2560
  // Predicated region
  $region30: #{stn3d_forward.3} parent=0 // pred_check
    _
  $region31: #{stn3d_forward.3} parent=0 // pred_check_branch
    %2566 = sbr.rel (0) target = $region33
  $region32: #{stn3d_forward.3} parent=0 // pred_region
    _
  $region33: #{stn3d_forward.3} parent=0 // pred_fallthru
    _
  // Predicated region
  $region34: #{stn3d_forward.3} parent=0 // pred_check
    _
  $region35: #{stn3d_forward.3} parent=0 // pred_check_branch
    %2568 = sbr.rel (0) target = $region37
  $region36: #{stn3d_forward.3} parent=0 // pred_region
    _
  $region37: #{stn3d_forward.3} parent=0 // pred_fallthru
    _

</llo_original>
